<compile_context>
chip_gen: v6e
topology: v6e:2x2x1
jax: 0.10.0
libtpu: 0.0.40
codegen_flags: <defaults>
</compile_context>

<pallas_src>
import jax
import jax.numpy as jnp
from jax.experimental import pallas as pl
from jax.experimental.pallas import tpu as pltpu

ACTION_DIM = 28
IN_DIM = 75 * 16      # 1200
H1 = 50 * 16          # 800
H2 = 20 * 16          # 320
H3 = 10 * 16          # 160
PAD_OUT = 128         # 28 -> 128 lane-dense head


def _round_up(x, m):
    return ((x + m - 1) // m) * m


def actor_kernel(x_ref,
                 w1_ref, b1_ref,
                 w2_ref, b2_ref,
                 w3_ref, b3_ref,
                 wmu_ref, bmu_ref,
                 ab_ref,
                 out_ref):
    # In-kernel bf16 cast of the f32 state tile (hidden under layer-1 matmul).
    x = x_ref[...].astype(jnp.bfloat16)

    # layer 1: [Bt,1200](bf16) @ [1200,800](bf16) -> f32, + bias, relu, -> bf16
    h = jnp.dot(x, w1_ref[...], preferred_element_type=jnp.float32)
    h = jnp.maximum(h + b1_ref[...], 0.0).astype(jnp.bfloat16)
    # layer 2
    h = jnp.dot(h, w2_ref[...], preferred_element_type=jnp.float32)
    h = jnp.maximum(h + b2_ref[...], 0.0).astype(jnp.bfloat16)
    # layer 3
    h = jnp.dot(h, w3_ref[...], preferred_element_type=jnp.float32)
    h = jnp.maximum(h + b3_ref[...], 0.0).astype(jnp.bfloat16)
    # mu head (padded to 128 lanes): tanh -> * action_bound (f32 epilogue)
    a = jnp.dot(h, wmu_ref[...], preferred_element_type=jnp.float32)
    a = jnp.tanh(a + bmu_ref[...])
    out_ref[...] = a * ab_ref[...]


def _choose_bt(B, block_b):
    """Batch tile: multiple of 8 (f32 sublane), capped at block_b, and split so
    grid_b >= 2 for large B (second TensorCore on v7x via 'parallel' axis)."""
    bt = _round_up(min(block_b, _round_up(B, 8)), 8)
    if B > 128 and pl.cdiv(B, bt) < 2:
        bt = _round_up(pl.cdiv(B, 2), 8)
    return bt


def actor_forward(state, p, *, block_b=512):
    """state: [B, 1200] float32; p: prepared params (see prepare_params)."""
    B = state.shape[0]
    bt = _choose_bt(B, block_b)
    grid_b = pl.cdiv(B, bt)

    batched = lambda b: (b, 0)    # state/output: stream over batch tiles

    def const_spec(shape):
        # Same block every grid step -> stays resident in VMEM; single buffer.
        return pl.BlockSpec(shape, lambda b: (0, 0),
                            pipeline_mode=pl.Buffered(1))

    in_specs = [
        pl.BlockSpec((bt, IN_DIM), batched),
        const_spec((IN_DIM, H1)), const_spec((1, H1)),
        const_spec((H1, H2)),     const_spec((1, H2)),
        const_spec((H2, H3)),     const_spec((1, H3)),
        const_spec((H3, PAD_OUT)), const_spec((1, PAD_OUT)),
        const_spec((1, PAD_OUT)),
    ]

    weight_elems = IN_DIM * H1 + H1 * H2 + H2 * H3 + H3 * PAD_OUT
    cost = pl.CostEstimate(
        flops=2 * B * weight_elems,
        transcendentals=B * PAD_OUT,
        bytes_accessed=(2 * weight_elems                      # bf16 weights
                        + 4 * (H1 + H2 + H3 + 2 * PAD_OUT)    # f32 biases + bound
                        + 4 * B * IN_DIM                      # f32 state in
                        + 4 * B * PAD_OUT),                   # f32 output
    )

    out = pl.pallas_call(
        actor_kernel,
        out_shape=jax.ShapeDtypeStruct((B, PAD_OUT), jnp.float32),
        grid=(grid_b,),
        in_specs=in_specs,
        out_specs=pl.BlockSpec((bt, PAD_OUT), batched),
        compiler_params=pltpu.CompilerParams(
            dimension_semantics=("parallel",),        # megacore on v7x
            vmem_limit_bytes=48 * 1024 * 1024),       # safe on v7x's 64 MiB VMEM
        cost_estimate=cost,
    )(state, p["w1"], p["b1"], p["w2"], p["b2"], p["w3"], p["b3"],
      p["wmu"], p["bmu"], p["ab"])

    return out[:, :ACTION_DIM]


def init_params(key):
    """Deterministic init mirroring the PyTorch __init__ (f32, unpadded):
       - conv1/conv2/conv3 weights ~ Normal(0, 0.1)
       - their biases keep nn.Linear default: U(-1/sqrt(fan_in), 1/sqrt(fan_in))
       - mu weight & bias ~ U(-0.003, 0.003)
       Weights stored transposed as [in, out]; biases as [1, out]."""
    ks = jax.random.split(key, 9)
    f3 = 0.003

    def normal_w(k, fan_in, fan_out):
        return 0.1 * jax.random.normal(k, (fan_in, fan_out), jnp.float32)

    def default_b(k, fan_in, fan_out):
        bound = 1.0 / jnp.sqrt(jnp.float32(fan_in))
        return jax.random.uniform(k, (1, fan_out), jnp.float32, -bound, bound)

    return {
        "w1": normal_w(ks[0], IN_DIM, H1),
        "b1": default_b(ks[1], IN_DIM, H1),
        "w2": normal_w(ks[2], H1, H2),
        "b2": default_b(ks[3], H1, H2),
        "w3": normal_w(ks[4], H2, H3),
        "b3": default_b(ks[5], H2, H3),
        "wmu": jax.random.uniform(ks[6], (H3, ACTION_DIM), jnp.float32, -f3, f3),
        "bmu": jax.random.uniform(ks[7], (1, ACTION_DIM), jnp.float32, -f3, f3),
        "action_bound": jnp.ones((1, ACTION_DIM), jnp.float32) * 2.0,
    }


def prepare_params(p):
    """Cast weights to bf16 and zero-pad the 28-wide head to 128 lanes.
       Padded bias/action_bound columns are zero, so tanh(0)*0 = 0 in the
       padded columns and the wrapper slice back to 28 is exact."""
    pad = PAD_OUT - ACTION_DIM
    return {
        "w1": p["w1"].astype(jnp.bfloat16),
        "b1": p["b1"],
        "w2": p["w2"].astype(jnp.bfloat16),
        "b2": p["b2"],
        "w3": p["w3"].astype(jnp.bfloat16),
        "b3": p["b3"],
        "wmu": jnp.pad(p["wmu"], ((0, 0), (0, pad))).astype(jnp.bfloat16),
        "bmu": jnp.pad(p["bmu"], ((0, 0), (0, pad))),
        "ab": jnp.pad(p["action_bound"], ((0, 0), (0, pad))),
    }


def actor_forward_ref_bf16(state, p):
    """Plain-JAX reference mirroring the kernel's dtype choices (tight check)."""
    h = jnp.dot(state.astype(jnp.bfloat16), p["w1"],
                preferred_element_type=jnp.float32)
    h = jnp.maximum(h + p["b1"], 0.0).astype(jnp.bfloat16)
    h = jnp.dot(h, p["w2"], preferred_element_type=jnp.float32)
    h = jnp.maximum(h + p["b2"], 0.0).astype(jnp.bfloat16)
    h = jnp.dot(h, p["w3"], preferred_element_type=jnp.float32)
    h = jnp.maximum(h + p["b3"], 0.0).astype(jnp.bfloat16)
    a = jnp.dot(h, p["wmu"], preferred_element_type=jnp.float32)
    a = jnp.tanh(a + p["bmu"]) * p["ab"]
    return a[:, :ACTION_DIM]


def actor_forward_ref_f32(state, p):
    """Full-precision reference of the original PyTorch semantics (loose check)."""
    h = jnp.maximum(state @ p["w1"] + p["b1"], 0.0)
    h = jnp.maximum(h @ p["w2"] + p["b2"], 0.0)
    h = jnp.maximum(h @ p["w3"] + p["b3"], 0.0)
    return jnp.tanh(h @ p["wmu"] + p["bmu"]) * p["action_bound"]


if __name__ == "__main__":
    key = jax.random.PRNGKey(0)
    pkey, skey = jax.random.split(key)
    raw_params = init_params(pkey)
    params = prepare_params(raw_params)

    batch = 8
    state = jax.random.normal(skey, (batch, IN_DIM), jnp.float32)

    out = actor_forward(state, params)
    out = jax.block_until_ready(out)

    assert out.shape == (batch, ACTION_DIM)

    ref_bf16 = actor_forward_ref_bf16(state, params)
    assert jnp.allclose(out, ref_bf16, atol=2e-3, rtol=1e-3), "mismatch vs bf16 reference"

    ref_f32 = actor_forward_ref_f32(state, raw_params)
    assert jnp.allclose(out, ref_f32, atol=5e-2, rtol=0.0), "mismatch vs f32 reference"

    print("KERNEL_OK")
</pallas_src>

<mosaic_0001>
module attributes {stable_mosaic.version = 11 : i64} {
  func.func @actor_kernel(%arg0: i32, %arg1: memref<8x1200xf32, #tpu.memory_space<vmem>>, %arg2: memref<1200x800xbf16, #tpu.memory_space<vmem>>, %arg3: memref<1x800xf32, #tpu.memory_space<vmem>>, %arg4: memref<800x320xbf16, #tpu.memory_space<vmem>>, %arg5: memref<1x320xf32, #tpu.memory_space<vmem>>, %arg6: memref<320x160xbf16, #tpu.memory_space<vmem>>, %arg7: memref<1x160xf32, #tpu.memory_space<vmem>>, %arg8: memref<160x128xbf16, #tpu.memory_space<vmem>>, %arg9: memref<1x128xf32, #tpu.memory_space<vmem>>, %arg10: memref<1x128xf32, #tpu.memory_space<vmem>>, %arg11: memref<8x128xf32, #tpu.memory_space<vmem>>) attributes {dimension_semantics = [#tpu.dimension_semantics<parallel>], iteration_bounds = array<i64: 1>, scalar_prefetch = 0 : i64, scratch_operands = 0 : i64, tpu.core_type = #tpu.core_type<tc>, window_params = [{transform_indices = @transform_0, window_bounds = array<i64: 8, 1200>}, {pipeline_mode = #tpu.pipeline_mode<synchronous>, transform_indices = @transform_1, window_bounds = array<i64: 1200, 800>}, {pipeline_mode = #tpu.pipeline_mode<synchronous>, transform_indices = @transform_2, window_bounds = array<i64: 1, 800>}, {pipeline_mode = #tpu.pipeline_mode<synchronous>, transform_indices = @transform_3, window_bounds = array<i64: 800, 320>}, {pipeline_mode = #tpu.pipeline_mode<synchronous>, transform_indices = @transform_4, window_bounds = array<i64: 1, 320>}, {pipeline_mode = #tpu.pipeline_mode<synchronous>, transform_indices = @transform_5, window_bounds = array<i64: 320, 160>}, {pipeline_mode = #tpu.pipeline_mode<synchronous>, transform_indices = @transform_6, window_bounds = array<i64: 1, 160>}, {pipeline_mode = #tpu.pipeline_mode<synchronous>, transform_indices = @transform_7, window_bounds = array<i64: 160, 128>}, {pipeline_mode = #tpu.pipeline_mode<synchronous>, transform_indices = @transform_8, window_bounds = array<i64: 1, 128>}, {pipeline_mode = #tpu.pipeline_mode<synchronous>, transform_indices = @transform_9, window_bounds = array<i64: 1, 128>}, {transform_indices = @transform_10, window_bounds = array<i64: 8, 128>}]} {
    %c0 = arith.constant 0 : index
    %c0_0 = arith.constant 0 : index
    %0 = vector.load %arg1[%c0, %c0_0] : memref<8x1200xf32, #tpu.memory_space<vmem>>, vector<8x1200xf32>
    %1 = arith.truncf %0 : vector<8x1200xf32> to vector<8x1200xbf16>
    %c0_1 = arith.constant 0 : index
    %c0_2 = arith.constant 0 : index
    %2 = vector.load %arg2[%c0_1, %c0_2] : memref<1200x800xbf16, #tpu.memory_space<vmem>>, vector<1200x800xbf16>
    %cst = arith.constant dense<0.000000e+00> : vector<8x800xf32>
    %3 = tpu.matmul %1, %2, %cst {dimension_numbers = #tpu.dot_dimension_numbers<[1], [0], [0], [1], [0, 0, 1, 1], [], []>} : vector<8x1200xbf16>, vector<1200x800xbf16>, vector<8x800xf32> -> vector<8x800xf32>
    %c0_3 = arith.constant 0 : index
    %c0_4 = arith.constant 0 : index
    %4 = vector.load %arg3[%c0_3, %c0_4] : memref<1x800xf32, #tpu.memory_space<vmem>>, vector<1x800xf32>
    %5 = vector.broadcast %4 : vector<1x800xf32> to vector<8x800xf32>
    %6 = arith.addf %3, %5 : vector<8x800xf32>
    %cst_5 = arith.constant 0.000000e+00 : f32
    %7 = vector.broadcast %cst_5 : f32 to vector<8x800xf32>
    %8 = arith.maximumf %6, %7 : vector<8x800xf32>
    %9 = arith.truncf %8 : vector<8x800xf32> to vector<8x800xbf16>
    %c0_6 = arith.constant 0 : index
    %c0_7 = arith.constant 0 : index
    %10 = vector.load %arg4[%c0_6, %c0_7] : memref<800x320xbf16, #tpu.memory_space<vmem>>, vector<800x320xbf16>
    %cst_8 = arith.constant dense<0.000000e+00> : vector<8x320xf32>
    %11 = tpu.matmul %9, %10, %cst_8 {dimension_numbers = #tpu.dot_dimension_numbers<[1], [0], [0], [1], [0, 0, 1, 1], [], []>} : vector<8x800xbf16>, vector<800x320xbf16>, vector<8x320xf32> -> vector<8x320xf32>
    %c0_9 = arith.constant 0 : index
    %c0_10 = arith.constant 0 : index
    %12 = vector.load %arg5[%c0_9, %c0_10] : memref<1x320xf32, #tpu.memory_space<vmem>>, vector<1x320xf32>
    %13 = vector.broadcast %12 : vector<1x320xf32> to vector<8x320xf32>
    %14 = arith.addf %11, %13 : vector<8x320xf32>
    %cst_11 = arith.constant 0.000000e+00 : f32
    %15 = vector.broadcast %cst_11 : f32 to vector<8x320xf32>
    %16 = arith.maximumf %14, %15 : vector<8x320xf32>
    %17 = arith.truncf %16 : vector<8x320xf32> to vector<8x320xbf16>
    %c0_12 = arith.constant 0 : index
    %c0_13 = arith.constant 0 : index
    %18 = vector.load %arg6[%c0_12, %c0_13] : memref<320x160xbf16, #tpu.memory_space<vmem>>, vector<320x160xbf16>
    %cst_14 = arith.constant dense<0.000000e+00> : vector<8x160xf32>
    %19 = tpu.matmul %17, %18, %cst_14 {dimension_numbers = #tpu.dot_dimension_numbers<[1], [0], [0], [1], [0, 0, 1, 1], [], []>} : vector<8x320xbf16>, vector<320x160xbf16>, vector<8x160xf32> -> vector<8x160xf32>
    %c0_15 = arith.constant 0 : index
    %c0_16 = arith.constant 0 : index
    %20 = vector.load %arg7[%c0_15, %c0_16] : memref<1x160xf32, #tpu.memory_space<vmem>>, vector<1x160xf32>
    %21 = vector.broadcast %20 : vector<1x160xf32> to vector<8x160xf32>
    %22 = arith.addf %19, %21 : vector<8x160xf32>
    %cst_17 = arith.constant 0.000000e+00 : f32
    %23 = vector.broadcast %cst_17 : f32 to vector<8x160xf32>
    %24 = arith.maximumf %22, %23 : vector<8x160xf32>
    %25 = arith.truncf %24 : vector<8x160xf32> to vector<8x160xbf16>
    %c0_18 = arith.constant 0 : index
    %c0_19 = arith.constant 0 : index
    %26 = vector.load %arg8[%c0_18, %c0_19] : memref<160x128xbf16, #tpu.memory_space<vmem>>, vector<160x128xbf16>
    %cst_20 = arith.constant dense<0.000000e+00> : vector<8x128xf32>
    %27 = tpu.matmul %25, %26, %cst_20 {dimension_numbers = #tpu.dot_dimension_numbers<[1], [0], [0], [1], [0, 0, 1, 1], [], []>} : vector<8x160xbf16>, vector<160x128xbf16>, vector<8x128xf32> -> vector<8x128xf32>
    %c0_21 = arith.constant 0 : index
    %c0_22 = arith.constant 0 : index
    %28 = vector.load %arg9[%c0_21, %c0_22] : memref<1x128xf32, #tpu.memory_space<vmem>>, vector<1x128xf32>
    %29 = vector.broadcast %28 : vector<1x128xf32> to vector<8x128xf32>
    %30 = arith.addf %27, %29 : vector<8x128xf32>
    %31 = math.tanh %30 : vector<8x128xf32>
    %c0_23 = arith.constant 0 : index
    %c0_24 = arith.constant 0 : index
    %32 = vector.load %arg10[%c0_23, %c0_24] : memref<1x128xf32, #tpu.memory_space<vmem>>, vector<1x128xf32>
    %33 = vector.broadcast %32 : vector<1x128xf32> to vector<8x128xf32>
    %34 = arith.mulf %31, %33 : vector<8x128xf32>
    %c0_25 = arith.constant 0 : index
    %c0_26 = arith.constant 0 : index
    %35 = vector.load %arg11[%c0_25, %c0_26] : memref<8x128xf32, #tpu.memory_space<vmem>>, vector<8x128xf32>
    tpu.vector_store %arg11[%c0_25, %c0_26], %34 {strides = array<i32>} : memref<8x128xf32, #tpu.memory_space<vmem>>, vector<8x128xf32>,
    return
  }
  func.func @transform_0(%arg0: i32) -> (i32, i32) {
    %c0_i32 = arith.constant 0 : i32
    %c0_i32_0 = arith.constant 0 : i32
    return %arg0, %c0_i32 : i32, i32
  }
  func.func @transform_1(%arg0: i32) -> (i32, i32) {
    %c0_i32 = arith.constant 0 : i32
    %c0_i32_0 = arith.constant 0 : i32
    %c0_i32_1 = arith.constant 0 : i32
    return %c0_i32, %c0_i32_0 : i32, i32
  }
  func.func @transform_2(%arg0: i32) -> (i32, i32) {
    %c0_i32 = arith.constant 0 : i32
    %c0_i32_0 = arith.constant 0 : i32
    %c0_i32_1 = arith.constant 0 : i32
    return %c0_i32, %c0_i32_0 : i32, i32
  }
  func.func @transform_3(%arg0: i32) -> (i32, i32) {
    %c0_i32 = arith.constant 0 : i32
    %c0_i32_0 = arith.constant 0 : i32
    %c0_i32_1 = arith.constant 0 : i32
    return %c0_i32, %c0_i32_0 : i32, i32
  }
  func.func @transform_4(%arg0: i32) -> (i32, i32) {
    %c0_i32 = arith.constant 0 : i32
    %c0_i32_0 = arith.constant 0 : i32
    %c0_i32_1 = arith.constant 0 : i32
    return %c0_i32, %c0_i32_0 : i32, i32
  }
  func.func @transform_5(%arg0: i32) -> (i32, i32) {
    %c0_i32 = arith.constant 0 : i32
    %c0_i32_0 = arith.constant 0 : i32
    %c0_i32_1 = arith.constant 0 : i32
    return %c0_i32, %c0_i32_0 : i32, i32
  }
  func.func @transform_6(%arg0: i32) -> (i32, i32) {
    %c0_i32 = arith.constant 0 : i32
    %c0_i32_0 = arith.constant 0 : i32
    %c0_i32_1 = arith.constant 0 : i32
    return %c0_i32, %c0_i32_0 : i32, i32
  }
  func.func @transform_7(%arg0: i32) -> (i32, i32) {
    %c0_i32 = arith.constant 0 : i32
    %c0_i32_0 = arith.constant 0 : i32
    %c0_i32_1 = arith.constant 0 : i32
    return %c0_i32, %c0_i32_0 : i32, i32
  }
  func.func @transform_8(%arg0: i32) -> (i32, i32) {
    %c0_i32 = arith.constant 0 : i32
    %c0_i32_0 = arith.constant 0 : i32
    %c0_i32_1 = arith.constant 0 : i32
    return %c0_i32, %c0_i32_0 : i32, i32
  }
  func.func @transform_9(%arg0: i32) -> (i32, i32) {
    %c0_i32 = arith.constant 0 : i32
    %c0_i32_0 = arith.constant 0 : i32
    %c0_i32_1 = arith.constant 0 : i32
    return %c0_i32, %c0_i32_0 : i32, i32
  }
  func.func @transform_10(%arg0: i32) -> (i32, i32) {
    %c0_i32 = arith.constant 0 : i32
    %c0_i32_0 = arith.constant 0 : i32
    return %arg0, %c0_i32 : i32, i32
  }
}

</mosaic_0001>

<llo_original>
// kernel: tpu_custom_call.1
$region0: #{tpu_custom_call.1}
  #allocation0 [shape = 'u32[]', space=smem, size = 0x4, offset = 0x4, fixed_abs, tag = 'smem constant byte address 0x4 - core index']
  #allocation1 [shape = 'u32[144,128]{1,0:T(1,128)}', space=vmem, size = 0x12000, scoped, tag = 'internal scratch']
  %s0 = inlined_call_operand.vmem [shape: f32[8,1200], index: 0, kind: input, shape index: {}]
  %s1 = inlined_call_operand.vmem [shape: bf16[1200,800], index: 1, kind: input, shape index: {}]
  %s2 = inlined_call_operand.vmem [shape: f32[1,800], index: 2, kind: input, shape index: {}]
  %s3 = inlined_call_operand.vmem [shape: bf16[800,320], index: 3, kind: input, shape index: {}]
  %s4 = inlined_call_operand.vmem [shape: f32[1,320], index: 4, kind: input, shape index: {}]
  %s5 = inlined_call_operand.vmem [shape: bf16[320,160], index: 5, kind: input, shape index: {}]
  %s6 = inlined_call_operand.vmem [shape: f32[1,160], index: 6, kind: input, shape index: {}]
  %s7 = inlined_call_operand.vmem [shape: bf16[160,128], index: 7, kind: input, shape index: {}]
  %s8 = inlined_call_operand.vmem [shape: f32[1,128], index: 8, kind: input, shape index: {}]
  %s9 = inlined_call_operand.vmem [shape: f32[1,128], index: 9, kind: input, shape index: {}]
  %s10 = inlined_call_operand.hbm [shape: f32[8,128], index: 10, kind: output, shape index: {}]
  %s11 = sld [smem:[#allocation0]]
  $region50: #{tpu_custom_call.1} parent=0
    _
  %s13 = ssub.s32 1, %s11
  %s14 = scalar_select 0, %s13, %s11
  $region1: #{tpu_custom_call.1} parent=0
    #allocation2 [shape = 'u8[4096]{0}', space=vmem, size = 0x1000, scoped, tag = 'output window, operand 0, single buffered']
    #allocation3 [shape = 's32[1]{0}', space=sflag, size = 0x4, scoped, tag = 'scoped memory for tpu_custom_call.1']
    %15 = vsyncpa [#allocation3], 0
    // Predicated region
    $region2: #{tpu_custom_call.1} parent=1 // pred_check
      _
    $region3: #{tpu_custom_call.1} parent=1 // pred_check_branch
      %17 = sbr.rel (0) target = $region5
    $region4: #{tpu_custom_call.1} parent=1 // pred_region
      _
    $region5: #{tpu_custom_call.1} parent=1 // pred_fallthru
      _
    // Predicated region
    $region6: #{tpu_custom_call.1} parent=1 // pred_check
      _
    $region7: #{tpu_custom_call.1} parent=1 // pred_check_branch
      %19 = sbr.rel (0) target = $region9
    $region8: #{tpu_custom_call.1} parent=1 // pred_region
      _
    $region9: #{tpu_custom_call.1} parent=1 // pred_fallthru
      _
    // Predicated region
    $region10: #{tpu_custom_call.1} parent=1 // pred_check
      _
    $region11: #{tpu_custom_call.1} parent=1 // pred_check_branch
      %21 = sbr.rel (0) target = $region13
    $region12: #{tpu_custom_call.1} parent=1 // pred_region
      _
    $region13: #{tpu_custom_call.1} parent=1 // pred_fallthru
      _
    // Predicated region
    $region14: #{tpu_custom_call.1} parent=1 // pred_check
      _
    $region15: #{tpu_custom_call.1} parent=1 // pred_check_branch
      %23 = sbr.rel (0) target = $region17
    $region16: #{tpu_custom_call.1} parent=1 // pred_region
      _
    $region17: #{tpu_custom_call.1} parent=1 // pred_fallthru
      _
    // Predicated region
    $region18: #{tpu_custom_call.1} parent=1 // pred_check
      _
    $region19: #{tpu_custom_call.1} parent=1 // pred_check_branch
      %25 = sbr.rel (0) target = $region21
    $region20: #{tpu_custom_call.1} parent=1 // pred_region
      _
    $region21: #{tpu_custom_call.1} parent=1 // pred_fallthru
      _
    // Predicated region
    $region22: #{tpu_custom_call.1} parent=1 // pred_check
      _
    $region23: #{tpu_custom_call.1} parent=1 // pred_check_branch
      %27 = sbr.rel (0) target = $region25
    $region24: #{tpu_custom_call.1} parent=1 // pred_region
      _
    $region25: #{tpu_custom_call.1} parent=1 // pred_fallthru
      _
    // Predicated region
    $region26: #{tpu_custom_call.1} parent=1 // pred_check
      _
    $region27: #{tpu_custom_call.1} parent=1 // pred_check_branch
      %29 = sbr.rel (0) target = $region29
    $region28: #{tpu_custom_call.1} parent=1 // pred_region
      _
    $region29: #{tpu_custom_call.1} parent=1 // pred_fallthru
      _
    // Predicated region
    $region30: #{tpu_custom_call.1} parent=1 // pred_check
      _
    $region31: #{tpu_custom_call.1} parent=1 // pred_check_branch
      %31 = sbr.rel (0) target = $region33
    $region32: #{tpu_custom_call.1} parent=1 // pred_region
      _
    $region33: #{tpu_custom_call.1} parent=1 // pred_fallthru
      _
    // Predicated region
    $region34: #{tpu_custom_call.1} parent=1 // pred_check
      _
    $region35: #{tpu_custom_call.1} parent=1 // pred_check_branch
      %33 = sbr.rel (0) target = $region37
    $region36: #{tpu_custom_call.1} parent=1 // pred_region
      _
    $region37: #{tpu_custom_call.1} parent=1 // pred_fallthru
      _
    // Predicated region
    $region38: #{tpu_custom_call.1} parent=1 // pred_check
      _
    $region39: #{tpu_custom_call.1} parent=1 // pred_check_branch
      %35 = sbr.rel (0) target = $region41
    $region40: #{tpu_custom_call.1} parent=1 // pred_region
      _
    $region41: #{tpu_custom_call.1} parent=1 // pred_fallthru
      _
    %v37 = vld [vmem:[%s0] sm:$0xff]
    %v38 = vld [vmem:[%s0 + $0x8] sm:$0xff]
    %v39 = vld [vmem:[%s0 + $0x10] sm:$0xff]
    %v40 = vld [vmem:[%s0 + $0x18] sm:$0xff]
    %v41 = vld [vmem:[%s0 + $0x20] sm:$0xff]
    %v42 = vld [vmem:[%s0 + $0x28] sm:$0xff]
    %v43 = vld [vmem:[%s0 + $0x30] sm:$0xff]
    %v44 = vld [vmem:[%s0 + $0x38] sm:$0xff]
    %v45 = vld [vmem:[%s0 + $0x40] sm:$0xff]
    %v46 = vld [vmem:[%s0 + $0x48] sm:$0xff]
    %v47 = vpack.c.bf16 %v37, %v37
    %v48 = vpack.c.bf16 %v38, %v38
    %v49 = vpack.c.bf16 %v39, %v39
    %v50 = vpack.c.bf16 %v40, %v40
    %v51 = vpack.c.bf16 %v41, %v41
    %v52 = vpack.c.bf16 %v42, %v42
    %v53 = vpack.c.bf16 %v43, %v43
    %v54 = vpack.c.bf16 %v44, %v44
    %v55 = vpack.c.bf16 %v45, %v45
    %v56 = vpack.c.bf16 %v46, %v46
    %v57 = vld [vmem:[%s1] sm:$0xff]
    %v58 = vld [vmem:[%s1 + $0x8] sm:$0xff]
    %v59 = vld [vmem:[%s1 + $0x10] sm:$0xff]
    %v60 = vld [vmem:[%s1 + $0x18] sm:$0xf]
    %v61 = vld [vmem:[%s1 + $0x1c] sm:$0xff]
    %v62 = vld [vmem:[%s1 + $0x24] sm:$0xff]
    %v63 = vld [vmem:[%s1 + $0x2c] sm:$0xff]
    %v64 = vld [vmem:[%s1 + $0x34] sm:$0xf]
    %v65 = vld [vmem:[%s1 + $0x38] sm:$0xff]
    %v66 = vld [vmem:[%s1 + $0x40] sm:$0xff]
    %v67 = vld [vmem:[%s1 + $0x48] sm:$0xff]
    %v68 = vld [vmem:[%s1 + $0x50] sm:$0xf]
    %v69 = vld [vmem:[%s1 + $0x54] sm:$0xff]
    %v70 = vld [vmem:[%s1 + $0x5c] sm:$0xff]
    %v71 = vld [vmem:[%s1 + $0x64] sm:$0xff]
    %v72 = vld [vmem:[%s1 + $0x6c] sm:$0xf]
    %v73 = vld [vmem:[%s1 + $0x70] sm:$0xff]
    %v74 = vld [vmem:[%s1 + $0x78] sm:$0xff]
    %v75 = vld [vmem:[%s1 + $0x80] sm:$0xff]
    %v76 = vld [vmem:[%s1 + $0x88] sm:$0xf]
    %v77 = vld [vmem:[%s1 + $0x8c] sm:$0xff]
    %v78 = vld [vmem:[%s1 + $0x94] sm:$0xff]
    %v79 = vld [vmem:[%s1 + $0x9c] sm:$0xff]
    %v80 = vld [vmem:[%s1 + $0xa4] sm:$0xf]
    %v81 = vld [vmem:[%s1 + $0xa8] sm:$0xff]
    %v82 = vld [vmem:[%s1 + $0xb0] sm:$0xff]
    %v83 = vld [vmem:[%s1 + $0xb8] sm:$0xff]
    %v84 = vld [vmem:[%s1 + $0xc0] sm:$0xf]
    %v85 = vld [vmem:[%s1 + $0xc4] sm:$0xff]
    %v86 = vld [vmem:[%s1 + $0xcc] sm:$0xff]
    %v87 = vld [vmem:[%s1 + $0xd4] sm:$0xff]
    %v88 = vld [vmem:[%s1 + $0xdc] sm:$0xf]
    %v89 = vld [vmem:[%s1 + $0xe0] sm:$0xff]
    %v90 = vld [vmem:[%s1 + $0xe8] sm:$0xff]
    %v91 = vld [vmem:[%s1 + $0xf0] sm:$0xff]
    %v92 = vld [vmem:[%s1 + $0xf8] sm:$0xf]
    %v93 = vld [vmem:[%s1 + $0xfc] sm:$0xff]
    %v94 = vld [vmem:[%s1 + $0x104] sm:$0xff]
    %v95 = vld [vmem:[%s1 + $0x10c] sm:$0xff]
    %v96 = vld [vmem:[%s1 + $0x114] sm:$0xf]
    %v97 = vld [vmem:[%s1 + $0x118] sm:$0xff]
    %v98 = vld [vmem:[%s1 + $0x120] sm:$0xff]
    %v99 = vld [vmem:[%s1 + $0x128] sm:$0xff]
    %v100 = vld [vmem:[%s1 + $0x130] sm:$0xf]
    %v101 = vld [vmem:[%s1 + $0x134] sm:$0xff]
    %v102 = vld [vmem:[%s1 + $0x13c] sm:$0xff]
    %v103 = vld [vmem:[%s1 + $0x144] sm:$0xff]
    %v104 = vld [vmem:[%s1 + $0x14c] sm:$0xf]
    %v105 = vld [vmem:[%s1 + $0x150] sm:$0xff]
    %v106 = vld [vmem:[%s1 + $0x158] sm:$0xff]
    %v107 = vld [vmem:[%s1 + $0x160] sm:$0xff]
    %v108 = vld [vmem:[%s1 + $0x168] sm:$0xf]
    %v109 = vld [vmem:[%s1 + $0x16c] sm:$0xff]
    %v110 = vld [vmem:[%s1 + $0x174] sm:$0xff]
    %v111 = vld [vmem:[%s1 + $0x17c] sm:$0xff]
    %v112 = vld [vmem:[%s1 + $0x184] sm:$0xf]
    %v113 = vld [vmem:[%s1 + $0x188] sm:$0xff]
    %v114 = vld [vmem:[%s1 + $0x190] sm:$0xff]
    %v115 = vld [vmem:[%s1 + $0x198] sm:$0xff]
    %v116 = vld [vmem:[%s1 + $0x1a0] sm:$0xf]
    %v117 = vld [vmem:[%s1 + $0x1a4] sm:$0xff]
    %v118 = vld [vmem:[%s1 + $0x1ac] sm:$0xff]
    %v119 = vld [vmem:[%s1 + $0x1b4] sm:$0xff]
    %v120 = vld [vmem:[%s1 + $0x1bc] sm:$0xf]
    %v121 = vld [vmem:[%s1 + $0x1c0] sm:$0xff]
    %v122 = vld [vmem:[%s1 + $0x1c8] sm:$0xff]
    %v123 = vld [vmem:[%s1 + $0x1d0] sm:$0xff]
    %v124 = vld [vmem:[%s1 + $0x1d8] sm:$0xf]
    %v125 = vld [vmem:[%s1 + $0x1dc] sm:$0xff]
    %v126 = vld [vmem:[%s1 + $0x1e4] sm:$0xff]
    %v127 = vld [vmem:[%s1 + $0x1ec] sm:$0xff]
    %v128 = vld [vmem:[%s1 + $0x1f4] sm:$0xf]
    %v129 = vld [vmem:[%s1 + $0x1f8] sm:$0xff]
    %v130 = vld [vmem:[%s1 + $0x200] sm:$0xff]
    %v131 = vld [vmem:[%s1 + $0x208] sm:$0xff]
    %v132 = vld [vmem:[%s1 + $0x210] sm:$0xf]
    %v133 = vld [vmem:[%s1 + $0x214] sm:$0xff]
    %v134 = vld [vmem:[%s1 + $0x21c] sm:$0xff]
    %v135 = vld [vmem:[%s1 + $0x224] sm:$0xff]
    %v136 = vld [vmem:[%s1 + $0x22c] sm:$0xf]
    %v137 = vld [vmem:[%s1 + $0x230] sm:$0xff]
    %v138 = vld [vmem:[%s1 + $0x238] sm:$0xff]
    %v139 = vld [vmem:[%s1 + $0x240] sm:$0xff]
    %v140 = vld [vmem:[%s1 + $0x248] sm:$0xf]
    %v141 = vld [vmem:[%s1 + $0x24c] sm:$0xff]
    %v142 = vld [vmem:[%s1 + $0x254] sm:$0xff]
    %v143 = vld [vmem:[%s1 + $0x25c] sm:$0xff]
    %v144 = vld [vmem:[%s1 + $0x264] sm:$0xf]
    %v145 = vld [vmem:[%s1 + $0x268] sm:$0xff]
    %v146 = vld [vmem:[%s1 + $0x270] sm:$0xff]
    %v147 = vld [vmem:[%s1 + $0x278] sm:$0xff]
    %v148 = vld [vmem:[%s1 + $0x280] sm:$0xf]
    %v149 = vld [vmem:[%s1 + $0x284] sm:$0xff]
    %v150 = vld [vmem:[%s1 + $0x28c] sm:$0xff]
    %v151 = vld [vmem:[%s1 + $0x294] sm:$0xff]
    %v152 = vld [vmem:[%s1 + $0x29c] sm:$0xf]
    %v153 = vld [vmem:[%s1 + $0x2a0] sm:$0xff]
    %v154 = vld [vmem:[%s1 + $0x2a8] sm:$0xff]
    %v155 = vld [vmem:[%s1 + $0x2b0] sm:$0xff]
    %v156 = vld [vmem:[%s1 + $0x2b8] sm:$0xf]
    %v157 = vld [vmem:[%s1 + $0x2bc] sm:$0xff]
    %v158 = vld [vmem:[%s1 + $0x2c4] sm:$0xff]
    %v159 = vld [vmem:[%s1 + $0x2cc] sm:$0xff]
    %v160 = vld [vmem:[%s1 + $0x2d4] sm:$0xf]
    %v161 = vld [vmem:[%s1 + $0x2d8] sm:$0xff]
    %v162 = vld [vmem:[%s1 + $0x2e0] sm:$0xff]
    %v163 = vld [vmem:[%s1 + $0x2e8] sm:$0xff]
    %v164 = vld [vmem:[%s1 + $0x2f0] sm:$0xf]
    %v165 = vld [vmem:[%s1 + $0x2f4] sm:$0xff]
    %v166 = vld [vmem:[%s1 + $0x2fc] sm:$0xff]
    %v167 = vld [vmem:[%s1 + $0x304] sm:$0xff]
    %v168 = vld [vmem:[%s1 + $0x30c] sm:$0xf]
    %v169 = vld [vmem:[%s1 + $0x310] sm:$0xff]
    %v170 = vld [vmem:[%s1 + $0x318] sm:$0xff]
    %v171 = vld [vmem:[%s1 + $0x320] sm:$0xff]
    %v172 = vld [vmem:[%s1 + $0x328] sm:$0xf]
    %v173 = vld [vmem:[%s1 + $0x32c] sm:$0xff]
    %v174 = vld [vmem:[%s1 + $0x334] sm:$0xff]
    %v175 = vld [vmem:[%s1 + $0x33c] sm:$0xff]
    %v176 = vld [vmem:[%s1 + $0x344] sm:$0xf]
    %v177 = vld [vmem:[%s1 + $0x348] sm:$0xff]
    %v178 = vld [vmem:[%s1 + $0x350] sm:$0xff]
    %v179 = vld [vmem:[%s1 + $0x358] sm:$0xff]
    %v180 = vld [vmem:[%s1 + $0x360] sm:$0xf]
    %v181 = vld [vmem:[%s1 + $0x364] sm:$0xff]
    %v182 = vld [vmem:[%s1 + $0x36c] sm:$0xff]
    %v183 = vld [vmem:[%s1 + $0x374] sm:$0xff]
    %v184 = vld [vmem:[%s1 + $0x37c] sm:$0xf]
    %v185 = vld [vmem:[%s1 + $0x380] sm:$0xff]
    %v186 = vld [vmem:[%s1 + $0x388] sm:$0xff]
    %v187 = vld [vmem:[%s1 + $0x390] sm:$0xff]
    %v188 = vld [vmem:[%s1 + $0x398] sm:$0xf]
    %v189 = vld [vmem:[%s1 + $0x39c] sm:$0xff]
    %v190 = vld [vmem:[%s1 + $0x3a4] sm:$0xff]
    %v191 = vld [vmem:[%s1 + $0x3ac] sm:$0xff]
    %v192 = vld [vmem:[%s1 + $0x3b4] sm:$0xf]
    %v193 = vld [vmem:[%s1 + $0x3b8] sm:$0xff]
    %v194 = vld [vmem:[%s1 + $0x3c0] sm:$0xff]
    %v195 = vld [vmem:[%s1 + $0x3c8] sm:$0xff]
    %v196 = vld [vmem:[%s1 + $0x3d0] sm:$0xf]
    %v197 = vld [vmem:[%s1 + $0x3d4] sm:$0xff]
    %v198 = vld [vmem:[%s1 + $0x3dc] sm:$0xff]
    %v199 = vld [vmem:[%s1 + $0x3e4] sm:$0xff]
    %v200 = vld [vmem:[%s1 + $0x3ec] sm:$0xf]
    %v201 = vld [vmem:[%s1 + $0x3f0] sm:$0xff]
    %v202 = vld [vmem:[%s1 + $0x3f8] sm:$0xff]
    %v203 = vld [vmem:[%s1 + $0x400] sm:$0xff]
    %v204 = vld [vmem:[%s1 + $0x408] sm:$0xf]
    %v205 = vld [vmem:[%s1 + $0x40c] sm:$0xff]
    %v206 = vld [vmem:[%s1 + $0x414] sm:$0xff]
    %v207 = vld [vmem:[%s1 + $0x41c] sm:$0xff]
    %v208 = vld [vmem:[%s1 + $0x424] sm:$0xf]
    %v209 = vld [vmem:[%s1 + $0x428] sm:$0xff]
    %v210 = vld [vmem:[%s1 + $0x430] sm:$0xff]
    %v211 = vld [vmem:[%s1 + $0x438] sm:$0xff]
    %v212 = vld [vmem:[%s1 + $0x440] sm:$0xf]
    %v213 = vld [vmem:[%s1 + $0x444] sm:$0xff]
    %v214 = vld [vmem:[%s1 + $0x44c] sm:$0xff]
    %v215 = vld [vmem:[%s1 + $0x454] sm:$0xff]
    %v216 = vld [vmem:[%s1 + $0x45c] sm:$0xf]
    %v217 = vld [vmem:[%s1 + $0x460] sm:$0xff]
    %v218 = vld [vmem:[%s1 + $0x468] sm:$0xff]
    %v219 = vld [vmem:[%s1 + $0x470] sm:$0xff]
    %v220 = vld [vmem:[%s1 + $0x478] sm:$0xf]
    %v221 = vld [vmem:[%s1 + $0x47c] sm:$0xff]
    %v222 = vld [vmem:[%s1 + $0x484] sm:$0xff]
    %v223 = vld [vmem:[%s1 + $0x48c] sm:$0xff]
    %v224 = vld [vmem:[%s1 + $0x494] sm:$0xf]
    %v225 = vld [vmem:[%s1 + $0x498] sm:$0xff]
    %v226 = vld [vmem:[%s1 + $0x4a0] sm:$0xff]
    %v227 = vld [vmem:[%s1 + $0x4a8] sm:$0xff]
    %v228 = vld [vmem:[%s1 + $0x4b0] sm:$0xf]
    %v229 = vld [vmem:[%s1 + $0x4b4] sm:$0xff]
    %v230 = vld [vmem:[%s1 + $0x4bc] sm:$0xff]
    %v231 = vld [vmem:[%s1 + $0x4c4] sm:$0xff]
    %v232 = vld [vmem:[%s1 + $0x4cc] sm:$0xf]
    %v233 = vld [vmem:[%s1 + $0x4d0] sm:$0xff]
    %v234 = vld [vmem:[%s1 + $0x4d8] sm:$0xff]
    %v235 = vld [vmem:[%s1 + $0x4e0] sm:$0xff]
    %v236 = vld [vmem:[%s1 + $0x4e8] sm:$0xf]
    %v237 = vld [vmem:[%s1 + $0x4ec] sm:$0xff]
    %v238 = vld [vmem:[%s1 + $0x4f4] sm:$0xff]
    %v239 = vld [vmem:[%s1 + $0x4fc] sm:$0xff]
    %v240 = vld [vmem:[%s1 + $0x504] sm:$0xf]
    %v241 = vld [vmem:[%s1 + $0x508] sm:$0xff]
    %v242 = vld [vmem:[%s1 + $0x510] sm:$0xff]
    %v243 = vld [vmem:[%s1 + $0x518] sm:$0xff]
    %v244 = vld [vmem:[%s1 + $0x520] sm:$0xf]
    %v245 = vld [vmem:[%s1 + $0x524] sm:$0xff]
    %v246 = vld [vmem:[%s1 + $0x52c] sm:$0xff]
    %v247 = vld [vmem:[%s1 + $0x534] sm:$0xff]
    %v248 = vld [vmem:[%s1 + $0x53c] sm:$0xf]
    %v249 = vld [vmem:[%s1 + $0x540] sm:$0xff]
    %v250 = vld [vmem:[%s1 + $0x548] sm:$0xff]
    %v251 = vld [vmem:[%s1 + $0x550] sm:$0xff]
    %v252 = vld [vmem:[%s1 + $0x558] sm:$0xf]
    %v253 = vld [vmem:[%s1 + $0x55c] sm:$0xff]
    %v254 = vld [vmem:[%s1 + $0x564] sm:$0xff]
    %v255 = vld [vmem:[%s1 + $0x56c] sm:$0xff]
    %v256 = vld [vmem:[%s1 + $0x574] sm:$0xf]
    %v257 = vld [vmem:[%s1 + $0x578] sm:$0xff]
    %v258 = vld [vmem:[%s1 + $0x580] sm:$0xff]
    %v259 = vld [vmem:[%s1 + $0x588] sm:$0xff]
    %v260 = vld [vmem:[%s1 + $0x590] sm:$0xf]
    %v261 = vld [vmem:[%s1 + $0x594] sm:$0xff]
    %v262 = vld [vmem:[%s1 + $0x59c] sm:$0xff]
    %v263 = vld [vmem:[%s1 + $0x5a4] sm:$0xff]
    %v264 = vld [vmem:[%s1 + $0x5ac] sm:$0xf]
    %v265 = vld [vmem:[%s1 + $0x5b0] sm:$0xff]
    %v266 = vld [vmem:[%s1 + $0x5b8] sm:$0xff]
    %v267 = vld [vmem:[%s1 + $0x5c0] sm:$0xff]
    %v268 = vld [vmem:[%s1 + $0x5c8] sm:$0xf]
    %v269 = vld [vmem:[%s1 + $0x5cc] sm:$0xff]
    %v270 = vld [vmem:[%s1 + $0x5d4] sm:$0xff]
    %v271 = vld [vmem:[%s1 + $0x5dc] sm:$0xff]
    %v272 = vld [vmem:[%s1 + $0x5e4] sm:$0xf]
    %v273 = vld [vmem:[%s1 + $0x5e8] sm:$0xff]
    %v274 = vld [vmem:[%s1 + $0x5f0] sm:$0xff]
    %v275 = vld [vmem:[%s1 + $0x5f8] sm:$0xff]
    %v276 = vld [vmem:[%s1 + $0x600] sm:$0xf]
    %v277 = vld [vmem:[%s1 + $0x604] sm:$0xff]
    %v278 = vld [vmem:[%s1 + $0x60c] sm:$0xff]
    %v279 = vld [vmem:[%s1 + $0x614] sm:$0xff]
    %v280 = vld [vmem:[%s1 + $0x61c] sm:$0xf]
    %v281 = vld [vmem:[%s1 + $0x620] sm:$0xff]
    %v282 = vld [vmem:[%s1 + $0x628] sm:$0xff]
    %v283 = vld [vmem:[%s1 + $0x630] sm:$0xff]
    %v284 = vld [vmem:[%s1 + $0x638] sm:$0xf]
    %v285 = vld [vmem:[%s1 + $0x63c] sm:$0xff]
    %v286 = vld [vmem:[%s1 + $0x644] sm:$0xff]
    %v287 = vld [vmem:[%s1 + $0x64c] sm:$0xff]
    %v288 = vld [vmem:[%s1 + $0x654] sm:$0xf]
    %v289 = vld [vmem:[%s1 + $0x658] sm:$0xff]
    %v290 = vld [vmem:[%s1 + $0x660] sm:$0xff]
    %v291 = vld [vmem:[%s1 + $0x668] sm:$0xff]
    %v292 = vld [vmem:[%s1 + $0x670] sm:$0xf]
    %v293 = vld [vmem:[%s1 + $0x674] sm:$0xff]
    %v294 = vld [vmem:[%s1 + $0x67c] sm:$0xff]
    %v295 = vld [vmem:[%s1 + $0x684] sm:$0xff]
    %v296 = vld [vmem:[%s1 + $0x68c] sm:$0xf]
    %v297 = vld [vmem:[%s1 + $0x690] sm:$0xff]
    %v298 = vld [vmem:[%s1 + $0x698] sm:$0xff]
    %v299 = vld [vmem:[%s1 + $0x6a0] sm:$0xff]
    %v300 = vld [vmem:[%s1 + $0x6a8] sm:$0xf]
    %v301 = vld [vmem:[%s1 + $0x6ac] sm:$0xff]
    %v302 = vld [vmem:[%s1 + $0x6b4] sm:$0xff]
    %v303 = vld [vmem:[%s1 + $0x6bc] sm:$0xff]
    %v304 = vld [vmem:[%s1 + $0x6c4] sm:$0xf]
    %v305 = vld [vmem:[%s1 + $0x6c8] sm:$0xff]
    %v306 = vld [vmem:[%s1 + $0x6d0] sm:$0xff]
    %v307 = vld [vmem:[%s1 + $0x6d8] sm:$0xff]
    %v308 = vld [vmem:[%s1 + $0x6e0] sm:$0xf]
    %v309 = vld [vmem:[%s1 + $0x6e4] sm:$0xff]
    %v310 = vld [vmem:[%s1 + $0x6ec] sm:$0xff]
    %v311 = vld [vmem:[%s1 + $0x6f4] sm:$0xff]
    %v312 = vld [vmem:[%s1 + $0x6fc] sm:$0xf]
    %v313 = vld [vmem:[%s1 + $0x700] sm:$0xff]
    %v314 = vld [vmem:[%s1 + $0x708] sm:$0xff]
    %v315 = vld [vmem:[%s1 + $0x710] sm:$0xff]
    %v316 = vld [vmem:[%s1 + $0x718] sm:$0xf]
    %v317 = vld [vmem:[%s1 + $0x71c] sm:$0xff]
    %v318 = vld [vmem:[%s1 + $0x724] sm:$0xff]
    %v319 = vld [vmem:[%s1 + $0x72c] sm:$0xff]
    %v320 = vld [vmem:[%s1 + $0x734] sm:$0xf]
    %v321 = vld [vmem:[%s1 + $0x738] sm:$0xff]
    %v322 = vld [vmem:[%s1 + $0x740] sm:$0xff]
    %v323 = vld [vmem:[%s1 + $0x748] sm:$0xff]
    %v324 = vld [vmem:[%s1 + $0x750] sm:$0xf]
    %v325 = vld [vmem:[%s1 + $0x754] sm:$0xff]
    %v326 = vld [vmem:[%s1 + $0x75c] sm:$0xff]
    %v327 = vld [vmem:[%s1 + $0x764] sm:$0xff]
    %v328 = vld [vmem:[%s1 + $0x76c] sm:$0xf]
    %v329 = vld [vmem:[%s1 + $0x770] sm:$0xff]
    %v330 = vld [vmem:[%s1 + $0x778] sm:$0xff]
    %v331 = vld [vmem:[%s1 + $0x780] sm:$0xff]
    %v332 = vld [vmem:[%s1 + $0x788] sm:$0xf]
    %v333 = vld [vmem:[%s1 + $0x78c] sm:$0xff]
    %v334 = vld [vmem:[%s1 + $0x794] sm:$0xff]
    %v335 = vld [vmem:[%s1 + $0x79c] sm:$0xff]
    %v336 = vld [vmem:[%s1 + $0x7a4] sm:$0xf]
    %v337 = vld [vmem:[%s1 + $0x7a8] sm:$0xff]
    %v338 = vld [vmem:[%s1 + $0x7b0] sm:$0xff]
    %v339 = vld [vmem:[%s1 + $0x7b8] sm:$0xff]
    %v340 = vld [vmem:[%s1 + $0x7c0] sm:$0xf]
    %v341 = vld [vmem:[%s1 + $0x7c4] sm:$0xff]
    %v342 = vld [vmem:[%s1 + $0x7cc] sm:$0xff]
    %v343 = vld [vmem:[%s1 + $0x7d4] sm:$0xff]
    %v344 = vld [vmem:[%s1 + $0x7dc] sm:$0xf]
    %v345 = vld [vmem:[%s1 + $0x7e0] sm:$0xff]
    %v346 = vld [vmem:[%s1 + $0x7e8] sm:$0xff]
    %v347 = vld [vmem:[%s1 + $0x7f0] sm:$0xff]
    %v348 = vld [vmem:[%s1 + $0x7f8] sm:$0xf]
    %v349 = vld [vmem:[%s1 + $0x7fc] sm:$0xff]
    %v350 = vld [vmem:[%s1 + $0x804] sm:$0xff]
    %v351 = vld [vmem:[%s1 + $0x80c] sm:$0xff]
    %v352 = vld [vmem:[%s1 + $0x814] sm:$0xf]
    %v353 = vld [vmem:[%s1 + $0x818] sm:$0xff]
    %v354 = vld [vmem:[%s1 + $0x820] sm:$0xff]
    %v355 = vld [vmem:[%s1 + $0x828] sm:$0xff]
    %v356 = vld [vmem:[%s1 + $0x830] sm:$0xf]
    %v357 = vld [vmem:[%s1 + $0x834] sm:$0xff]
    %v358 = vld [vmem:[%s1 + $0x83c] sm:$0xff]
    %v359 = vld [vmem:[%s1 + $0x844] sm:$0xff]
    %v360 = vld [vmem:[%s1 + $0x84c] sm:$0xf]
    %v361 = vld [vmem:[%s1 + $0x850] sm:$0xff]
    %v362 = vld [vmem:[%s1 + $0x858] sm:$0xff]
    %v363 = vld [vmem:[%s1 + $0x860] sm:$0xff]
    %v364 = vld [vmem:[%s1 + $0x868] sm:$0xf]
    %v365 = vld [vmem:[%s1 + $0x86c] sm:$0xff]
    %v366 = vld [vmem:[%s1 + $0x874] sm:$0xff]
    %v367 = vld [vmem:[%s1 + $0x87c] sm:$0xff]
    %v368 = vld [vmem:[%s1 + $0x884] sm:$0xf]
    %v369 = vld [vmem:[%s1 + $0x888] sm:$0xff]
    %v370 = vld [vmem:[%s1 + $0x890] sm:$0xff]
    %v371 = vld [vmem:[%s1 + $0x898] sm:$0xff]
    %v372 = vld [vmem:[%s1 + $0x8a0] sm:$0xf]
    %v373 = vld [vmem:[%s1 + $0x8a4] sm:$0xff]
    %v374 = vld [vmem:[%s1 + $0x8ac] sm:$0xff]
    %v375 = vld [vmem:[%s1 + $0x8b4] sm:$0xff]
    %v376 = vld [vmem:[%s1 + $0x8bc] sm:$0xf]
    %v377 = vld [vmem:[%s1 + $0x8c0] sm:$0xff]
    %v378 = vld [vmem:[%s1 + $0x8c8] sm:$0xff]
    %v379 = vld [vmem:[%s1 + $0x8d0] sm:$0xff]
    %v380 = vld [vmem:[%s1 + $0x8d8] sm:$0xf]
    %v381 = vld [vmem:[%s1 + $0x8dc] sm:$0xff]
    %v382 = vld [vmem:[%s1 + $0x8e4] sm:$0xff]
    %v383 = vld [vmem:[%s1 + $0x8ec] sm:$0xff]
    %v384 = vld [vmem:[%s1 + $0x8f4] sm:$0xf]
    %v385 = vld [vmem:[%s1 + $0x8f8] sm:$0xff]
    %v386 = vld [vmem:[%s1 + $0x900] sm:$0xff]
    %v387 = vld [vmem:[%s1 + $0x908] sm:$0xff]
    %v388 = vld [vmem:[%s1 + $0x910] sm:$0xf]
    %v389 = vld [vmem:[%s1 + $0x914] sm:$0xff]
    %v390 = vld [vmem:[%s1 + $0x91c] sm:$0xff]
    %v391 = vld [vmem:[%s1 + $0x924] sm:$0xff]
    %v392 = vld [vmem:[%s1 + $0x92c] sm:$0xf]
    %v393 = vld [vmem:[%s1 + $0x930] sm:$0xff]
    %v394 = vld [vmem:[%s1 + $0x938] sm:$0xff]
    %v395 = vld [vmem:[%s1 + $0x940] sm:$0xff]
    %v396 = vld [vmem:[%s1 + $0x948] sm:$0xf]
    %v397 = vld [vmem:[%s1 + $0x94c] sm:$0xff]
    %v398 = vld [vmem:[%s1 + $0x954] sm:$0xff]
    %v399 = vld [vmem:[%s1 + $0x95c] sm:$0xff]
    %v400 = vld [vmem:[%s1 + $0x964] sm:$0xf]
    %v401 = vld [vmem:[%s1 + $0x968] sm:$0xff]
    %v402 = vld [vmem:[%s1 + $0x970] sm:$0xff]
    %v403 = vld [vmem:[%s1 + $0x978] sm:$0xff]
    %v404 = vld [vmem:[%s1 + $0x980] sm:$0xf]
    %v405 = vld [vmem:[%s1 + $0x984] sm:$0xff]
    %v406 = vld [vmem:[%s1 + $0x98c] sm:$0xff]
    %v407 = vld [vmem:[%s1 + $0x994] sm:$0xff]
    %v408 = vld [vmem:[%s1 + $0x99c] sm:$0xf]
    %v409 = vld [vmem:[%s1 + $0x9a0] sm:$0xff]
    %v410 = vld [vmem:[%s1 + $0x9a8] sm:$0xff]
    %v411 = vld [vmem:[%s1 + $0x9b0] sm:$0xff]
    %v412 = vld [vmem:[%s1 + $0x9b8] sm:$0xf]
    %v413 = vld [vmem:[%s1 + $0x9bc] sm:$0xff]
    %v414 = vld [vmem:[%s1 + $0x9c4] sm:$0xff]
    %v415 = vld [vmem:[%s1 + $0x9cc] sm:$0xff]
    %v416 = vld [vmem:[%s1 + $0x9d4] sm:$0xf]
    %v417 = vld [vmem:[%s1 + $0x9d8] sm:$0xff]
    %v418 = vld [vmem:[%s1 + $0x9e0] sm:$0xff]
    %v419 = vld [vmem:[%s1 + $0x9e8] sm:$0xff]
    %v420 = vld [vmem:[%s1 + $0x9f0] sm:$0xf]
    %v421 = vld [vmem:[%s1 + $0x9f4] sm:$0xff]
    %v422 = vld [vmem:[%s1 + $0x9fc] sm:$0xff]
    %v423 = vld [vmem:[%s1 + $0xa04] sm:$0xff]
    %v424 = vld [vmem:[%s1 + $0xa0c] sm:$0xf]
    %v425 = vld [vmem:[%s1 + $0xa10] sm:$0xff]
    %v426 = vld [vmem:[%s1 + $0xa18] sm:$0xff]
    %v427 = vld [vmem:[%s1 + $0xa20] sm:$0xff]
    %v428 = vld [vmem:[%s1 + $0xa28] sm:$0xf]
    %v429 = vld [vmem:[%s1 + $0xa2c] sm:$0xff]
    %v430 = vld [vmem:[%s1 + $0xa34] sm:$0xff]
    %v431 = vld [vmem:[%s1 + $0xa3c] sm:$0xff]
    %v432 = vld [vmem:[%s1 + $0xa44] sm:$0xf]
    %v433 = vld [vmem:[%s1 + $0xa48] sm:$0xff]
    %v434 = vld [vmem:[%s1 + $0xa50] sm:$0xff]
    %v435 = vld [vmem:[%s1 + $0xa58] sm:$0xff]
    %v436 = vld [vmem:[%s1 + $0xa60] sm:$0xf]
    %v437 = vld [vmem:[%s1 + $0xa64] sm:$0xff]
    %v438 = vld [vmem:[%s1 + $0xa6c] sm:$0xff]
    %v439 = vld [vmem:[%s1 + $0xa74] sm:$0xff]
    %v440 = vld [vmem:[%s1 + $0xa7c] sm:$0xf]
    %v441 = vld [vmem:[%s1 + $0xa80] sm:$0xff]
    %v442 = vld [vmem:[%s1 + $0xa88] sm:$0xff]
    %v443 = vld [vmem:[%s1 + $0xa90] sm:$0xff]
    %v444 = vld [vmem:[%s1 + $0xa98] sm:$0xf]
    %v445 = vld [vmem:[%s1 + $0xa9c] sm:$0xff]
    %v446 = vld [vmem:[%s1 + $0xaa4] sm:$0xff]
    %v447 = vld [vmem:[%s1 + $0xaac] sm:$0xff]
    %v448 = vld [vmem:[%s1 + $0xab4] sm:$0xf]
    %v449 = vld [vmem:[%s1 + $0xab8] sm:$0xff]
    %v450 = vld [vmem:[%s1 + $0xac0] sm:$0xff]
    %v451 = vld [vmem:[%s1 + $0xac8] sm:$0xff]
    %v452 = vld [vmem:[%s1 + $0xad0] sm:$0xf]
    %v453 = vld [vmem:[%s1 + $0xad4] sm:$0xff]
    %v454 = vld [vmem:[%s1 + $0xadc] sm:$0xff]
    %v455 = vld [vmem:[%s1 + $0xae4] sm:$0xff]
    %v456 = vld [vmem:[%s1 + $0xaec] sm:$0xf]
    %v457 = vld [vmem:[%s1 + $0xaf0] sm:$0xff]
    %v458 = vld [vmem:[%s1 + $0xaf8] sm:$0xff]
    %v459 = vld [vmem:[%s1 + $0xb00] sm:$0xff]
    %v460 = vld [vmem:[%s1 + $0xb08] sm:$0xf]
    %v461 = vld [vmem:[%s1 + $0xb0c] sm:$0xff]
    %v462 = vld [vmem:[%s1 + $0xb14] sm:$0xff]
    %v463 = vld [vmem:[%s1 + $0xb1c] sm:$0xff]
    %v464 = vld [vmem:[%s1 + $0xb24] sm:$0xf]
    %v465 = vld [vmem:[%s1 + $0xb28] sm:$0xff]
    %v466 = vld [vmem:[%s1 + $0xb30] sm:$0xff]
    %v467 = vld [vmem:[%s1 + $0xb38] sm:$0xff]
    %v468 = vld [vmem:[%s1 + $0xb40] sm:$0xf]
    %v469 = vld [vmem:[%s1 + $0xb44] sm:$0xff]
    %v470 = vld [vmem:[%s1 + $0xb4c] sm:$0xff]
    %v471 = vld [vmem:[%s1 + $0xb54] sm:$0xff]
    %v472 = vld [vmem:[%s1 + $0xb5c] sm:$0xf]
    %v473 = vld [vmem:[%s1 + $0xb60] sm:$0xff]
    %v474 = vld [vmem:[%s1 + $0xb68] sm:$0xff]
    %v475 = vld [vmem:[%s1 + $0xb70] sm:$0xff]
    %v476 = vld [vmem:[%s1 + $0xb78] sm:$0xf]
    %v477 = vld [vmem:[%s1 + $0xb7c] sm:$0xff]
    %v478 = vld [vmem:[%s1 + $0xb84] sm:$0xff]
    %v479 = vld [vmem:[%s1 + $0xb8c] sm:$0xff]
    %v480 = vld [vmem:[%s1 + $0xb94] sm:$0xf]
    %v481 = vld [vmem:[%s1 + $0xb98] sm:$0xff]
    %v482 = vld [vmem:[%s1 + $0xba0] sm:$0xff]
    %v483 = vld [vmem:[%s1 + $0xba8] sm:$0xff]
    %v484 = vld [vmem:[%s1 + $0xbb0] sm:$0xf]
    %v485 = vld [vmem:[%s1 + $0xbb4] sm:$0xff]
    %v486 = vld [vmem:[%s1 + $0xbbc] sm:$0xff]
    %v487 = vld [vmem:[%s1 + $0xbc4] sm:$0xff]
    %v488 = vld [vmem:[%s1 + $0xbcc] sm:$0xf]
    %v489 = vld [vmem:[%s1 + $0xbd0] sm:$0xff]
    %v490 = vld [vmem:[%s1 + $0xbd8] sm:$0xff]
    %v491 = vld [vmem:[%s1 + $0xbe0] sm:$0xff]
    %v492 = vld [vmem:[%s1 + $0xbe8] sm:$0xf]
    %v493 = vld [vmem:[%s1 + $0xbec] sm:$0xff]
    %v494 = vld [vmem:[%s1 + $0xbf4] sm:$0xff]
    %v495 = vld [vmem:[%s1 + $0xbfc] sm:$0xff]
    %v496 = vld [vmem:[%s1 + $0xc04] sm:$0xf]
    %v497 = vld [vmem:[%s1 + $0xc08] sm:$0xff]
    %v498 = vld [vmem:[%s1 + $0xc10] sm:$0xff]
    %v499 = vld [vmem:[%s1 + $0xc18] sm:$0xff]
    %v500 = vld [vmem:[%s1 + $0xc20] sm:$0xf]
    %v501 = vld [vmem:[%s1 + $0xc24] sm:$0xff]
    %v502 = vld [vmem:[%s1 + $0xc2c] sm:$0xff]
    %v503 = vld [vmem:[%s1 + $0xc34] sm:$0xff]
    %v504 = vld [vmem:[%s1 + $0xc3c] sm:$0xf]
    %v505 = vld [vmem:[%s1 + $0xc40] sm:$0xff]
    %v506 = vld [vmem:[%s1 + $0xc48] sm:$0xff]
    %v507 = vld [vmem:[%s1 + $0xc50] sm:$0xff]
    %v508 = vld [vmem:[%s1 + $0xc58] sm:$0xf]
    %v509 = vld [vmem:[%s1 + $0xc5c] sm:$0xff]
    %v510 = vld [vmem:[%s1 + $0xc64] sm:$0xff]
    %v511 = vld [vmem:[%s1 + $0xc6c] sm:$0xff]
    %v512 = vld [vmem:[%s1 + $0xc74] sm:$0xf]
    %v513 = vld [vmem:[%s1 + $0xc78] sm:$0xff]
    %v514 = vld [vmem:[%s1 + $0xc80] sm:$0xff]
    %v515 = vld [vmem:[%s1 + $0xc88] sm:$0xff]
    %v516 = vld [vmem:[%s1 + $0xc90] sm:$0xf]
    %v517 = vld [vmem:[%s1 + $0xc94] sm:$0xff]
    %v518 = vld [vmem:[%s1 + $0xc9c] sm:$0xff]
    %v519 = vld [vmem:[%s1 + $0xca4] sm:$0xff]
    %v520 = vld [vmem:[%s1 + $0xcac] sm:$0xf]
    %v521 = vld [vmem:[%s1 + $0xcb0] sm:$0xff]
    %v522 = vld [vmem:[%s1 + $0xcb8] sm:$0xff]
    %v523 = vld [vmem:[%s1 + $0xcc0] sm:$0xff]
    %v524 = vld [vmem:[%s1 + $0xcc8] sm:$0xf]
    %v525 = vld [vmem:[%s1 + $0xccc] sm:$0xff]
    %v526 = vld [vmem:[%s1 + $0xcd4] sm:$0xff]
    %v527 = vld [vmem:[%s1 + $0xcdc] sm:$0xff]
    %v528 = vld [vmem:[%s1 + $0xce4] sm:$0xf]
    %v529 = vld [vmem:[%s1 + $0xce8] sm:$0xff]
    %v530 = vld [vmem:[%s1 + $0xcf0] sm:$0xff]
    %v531 = vld [vmem:[%s1 + $0xcf8] sm:$0xff]
    %v532 = vld [vmem:[%s1 + $0xd00] sm:$0xf]
    %v533 = vld [vmem:[%s1 + $0xd04] sm:$0xff]
    %v534 = vld [vmem:[%s1 + $0xd0c] sm:$0xff]
    %v535 = vld [vmem:[%s1 + $0xd14] sm:$0xff]
    %v536 = vld [vmem:[%s1 + $0xd1c] sm:$0xf]
    %v537 = vld [vmem:[%s1 + $0xd20] sm:$0xff]
    %v538 = vld [vmem:[%s1 + $0xd28] sm:$0xff]
    %v539 = vld [vmem:[%s1 + $0xd30] sm:$0xff]
    %v540 = vld [vmem:[%s1 + $0xd38] sm:$0xf]
    %v541 = vld [vmem:[%s1 + $0xd3c] sm:$0xff]
    %v542 = vld [vmem:[%s1 + $0xd44] sm:$0xff]
    %v543 = vld [vmem:[%s1 + $0xd4c] sm:$0xff]
    %v544 = vld [vmem:[%s1 + $0xd54] sm:$0xf]
    %v545 = vld [vmem:[%s1 + $0xd58] sm:$0xff]
    %v546 = vld [vmem:[%s1 + $0xd60] sm:$0xff]
    %v547 = vld [vmem:[%s1 + $0xd68] sm:$0xff]
    %v548 = vld [vmem:[%s1 + $0xd70] sm:$0xf]
    %v549 = vld [vmem:[%s1 + $0xd74] sm:$0xff]
    %v550 = vld [vmem:[%s1 + $0xd7c] sm:$0xff]
    %v551 = vld [vmem:[%s1 + $0xd84] sm:$0xff]
    %v552 = vld [vmem:[%s1 + $0xd8c] sm:$0xf]
    %v553 = vld [vmem:[%s1 + $0xd90] sm:$0xff]
    %v554 = vld [vmem:[%s1 + $0xd98] sm:$0xff]
    %v555 = vld [vmem:[%s1 + $0xda0] sm:$0xff]
    %v556 = vld [vmem:[%s1 + $0xda8] sm:$0xf]
    %v557 = vld [vmem:[%s1 + $0xdac] sm:$0xff]
    %v558 = vld [vmem:[%s1 + $0xdb4] sm:$0xff]
    %v559 = vld [vmem:[%s1 + $0xdbc] sm:$0xff]
    %v560 = vld [vmem:[%s1 + $0xdc4] sm:$0xf]
    %v561 = vld [vmem:[%s1 + $0xdc8] sm:$0xff]
    %v562 = vld [vmem:[%s1 + $0xdd0] sm:$0xff]
    %v563 = vld [vmem:[%s1 + $0xdd8] sm:$0xff]
    %v564 = vld [vmem:[%s1 + $0xde0] sm:$0xf]
    %v565 = vld [vmem:[%s1 + $0xde4] sm:$0xff]
    %v566 = vld [vmem:[%s1 + $0xdec] sm:$0xff]
    %v567 = vld [vmem:[%s1 + $0xdf4] sm:$0xff]
    %v568 = vld [vmem:[%s1 + $0xdfc] sm:$0xf]
    %v569 = vld [vmem:[%s1 + $0xe00] sm:$0xff]
    %v570 = vld [vmem:[%s1 + $0xe08] sm:$0xff]
    %v571 = vld [vmem:[%s1 + $0xe10] sm:$0xff]
    %v572 = vld [vmem:[%s1 + $0xe18] sm:$0xf]
    %v573 = vld [vmem:[%s1 + $0xe1c] sm:$0xff]
    %v574 = vld [vmem:[%s1 + $0xe24] sm:$0xff]
    %v575 = vld [vmem:[%s1 + $0xe2c] sm:$0xff]
    %v576 = vld [vmem:[%s1 + $0xe34] sm:$0xf]
    %v577 = vld [vmem:[%s1 + $0xe38] sm:$0xff]
    %v578 = vld [vmem:[%s1 + $0xe40] sm:$0xff]
    %v579 = vld [vmem:[%s1 + $0xe48] sm:$0xff]
    %v580 = vld [vmem:[%s1 + $0xe50] sm:$0xf]
    %v581 = vld [vmem:[%s1 + $0xe54] sm:$0xff]
    %v582 = vld [vmem:[%s1 + $0xe5c] sm:$0xff]
    %v583 = vld [vmem:[%s1 + $0xe64] sm:$0xff]
    %v584 = vld [vmem:[%s1 + $0xe6c] sm:$0xf]
    %v585 = vld [vmem:[%s1 + $0xe70] sm:$0xff]
    %v586 = vld [vmem:[%s1 + $0xe78] sm:$0xff]
    %v587 = vld [vmem:[%s1 + $0xe80] sm:$0xff]
    %v588 = vld [vmem:[%s1 + $0xe88] sm:$0xf]
    %v589 = vld [vmem:[%s1 + $0xe8c] sm:$0xff]
    %v590 = vld [vmem:[%s1 + $0xe94] sm:$0xff]
    %v591 = vld [vmem:[%s1 + $0xe9c] sm:$0xff]
    %v592 = vld [vmem:[%s1 + $0xea4] sm:$0xf]
    %v593 = vld [vmem:[%s1 + $0xea8] sm:$0xff]
    %v594 = vld [vmem:[%s1 + $0xeb0] sm:$0xff]
    %v595 = vld [vmem:[%s1 + $0xeb8] sm:$0xff]
    %v596 = vld [vmem:[%s1 + $0xec0] sm:$0xf]
    %v597 = vld [vmem:[%s1 + $0xec4] sm:$0xff]
    %v598 = vld [vmem:[%s1 + $0xecc] sm:$0xff]
    %v599 = vld [vmem:[%s1 + $0xed4] sm:$0xff]
    %v600 = vld [vmem:[%s1 + $0xedc] sm:$0xf]
    %v601 = vld [vmem:[%s1 + $0xee0] sm:$0xff]
    %v602 = vld [vmem:[%s1 + $0xee8] sm:$0xff]
    %v603 = vld [vmem:[%s1 + $0xef0] sm:$0xff]
    %v604 = vld [vmem:[%s1 + $0xef8] sm:$0xf]
    %v605 = vld [vmem:[%s1 + $0xefc] sm:$0xff]
    %v606 = vld [vmem:[%s1 + $0xf04] sm:$0xff]
    %v607 = vld [vmem:[%s1 + $0xf0c] sm:$0xff]
    %v608 = vld [vmem:[%s1 + $0xf14] sm:$0xf]
    %v609 = vld [vmem:[%s1 + $0xf18] sm:$0xff]
    %v610 = vld [vmem:[%s1 + $0xf20] sm:$0xff]
    %v611 = vld [vmem:[%s1 + $0xf28] sm:$0xff]
    %v612 = vld [vmem:[%s1 + $0xf30] sm:$0xf]
    %v613 = vld [vmem:[%s1 + $0xf34] sm:$0xff]
    %v614 = vld [vmem:[%s1 + $0xf3c] sm:$0xff]
    %v615 = vld [vmem:[%s1 + $0xf44] sm:$0xff]
    %v616 = vld [vmem:[%s1 + $0xf4c] sm:$0xf]
    %v617 = vld [vmem:[%s1 + $0xf50] sm:$0xff]
    %v618 = vld [vmem:[%s1 + $0xf58] sm:$0xff]
    %v619 = vld [vmem:[%s1 + $0xf60] sm:$0xff]
    %v620 = vld [vmem:[%s1 + $0xf68] sm:$0xf]
    %v621 = vld [vmem:[%s1 + $0xf6c] sm:$0xff]
    %v622 = vld [vmem:[%s1 + $0xf74] sm:$0xff]
    %v623 = vld [vmem:[%s1 + $0xf7c] sm:$0xff]
    %v624 = vld [vmem:[%s1 + $0xf84] sm:$0xf]
    %v625 = vld [vmem:[%s1 + $0xf88] sm:$0xff]
    %v626 = vld [vmem:[%s1 + $0xf90] sm:$0xff]
    %v627 = vld [vmem:[%s1 + $0xf98] sm:$0xff]
    %v628 = vld [vmem:[%s1 + $0xfa0] sm:$0xf]
    %v629 = vld [vmem:[%s1 + $0xfa4] sm:$0xff]
    %v630 = vld [vmem:[%s1 + $0xfac] sm:$0xff]
    %v631 = vld [vmem:[%s1 + $0xfb4] sm:$0xff]
    %v632 = vld [vmem:[%s1 + $0xfbc] sm:$0xf]
    %v633 = vld [vmem:[%s1 + $0xfc0] sm:$0xff]
    %v634 = vld [vmem:[%s1 + $0xfc8] sm:$0xff]
    %v635 = vld [vmem:[%s1 + $0xfd0] sm:$0xff]
    %v636 = vld [vmem:[%s1 + $0xfd8] sm:$0xf]
    %v637 = vld [vmem:[%s1 + $0xfdc] sm:$0xff]
    %v638 = vld [vmem:[%s1 + $0xfe4] sm:$0xff]
    %v639 = vld [vmem:[%s1 + $0xfec] sm:$0xff]
    %v640 = vld [vmem:[%s1 + $0xff4] sm:$0xf]
    %v641 = vld [vmem:[%s1 + $0xff8] sm:$0xff]
    %v642 = vld [vmem:[%s1 + $0x1000] sm:$0xff]
    %v643 = vld [vmem:[%s1 + $0x1008] sm:$0xff]
    %v644 = vld [vmem:[%s1 + $0x1010] sm:$0xf]
    %v645 = vld [vmem:[%s1 + $0x1014] sm:$0xff]
    %v646 = vld [vmem:[%s1 + $0x101c] sm:$0xff]
    %v647 = vld [vmem:[%s1 + $0x1024] sm:$0xff]
    %v648 = vld [vmem:[%s1 + $0x102c] sm:$0xf]
    %v649 = vld [vmem:[%s1 + $0x1030] sm:$0xff]
    %v650 = vld [vmem:[%s1 + $0x1038] sm:$0xff]
    %v651 = vld [vmem:[%s1 + $0x1040] sm:$0xff]
    %v652 = vld [vmem:[%s1 + $0x1048] sm:$0xf]
    %v653 = vld [vmem:[%s1 + $0x104c] sm:$0xff]
    %v654 = vld [vmem:[%s1 + $0x1054] sm:$0xff]
    %v655 = vld [vmem:[%s1 + $0x105c] sm:$0xff]
    %v656 = vld [vmem:[%s1 + $0x1064] sm:$0xf]
    %v657 = vld [vmem:[%s2] sm:$0x7f]
    %v659 = vlaneseq
    %v660 = vshrl.u32 %v659, 7
    %v661 = vsub.s32 0, %v660
    %v662 = vrot.slane %v657, %v661
    %v663 = vlaneseq
    %v664 = vshrl.u32 %v663, 7
    %v665 = vsub.s32 1, %v664
    %v666 = vrot.slane %v657, %v665
    %v667 = vlaneseq
    %v668 = vshrl.u32 %v667, 7
    %v669 = vsub.s32 2, %v668
    %v670 = vrot.slane %v657, %v669
    %v671 = vlaneseq
    %v672 = vshrl.u32 %v671, 7
    %v673 = vsub.s32 3, %v672
    %v674 = vrot.slane %v657, %v673
    %v675 = vlaneseq
    %v676 = vshrl.u32 %v675, 7
    %v677 = vsub.s32 4, %v676
    %v678 = vrot.slane %v657, %v677
    %v679 = vlaneseq
    %v680 = vshrl.u32 %v679, 7
    %v681 = vsub.s32 5, %v680
    %v682 = vrot.slane %v657, %v681
    %v683 = vlaneseq
    %v684 = vshrl.u32 %v683, 7
    %v685 = vsub.s32 6, %v684
    %v686 = vrot.slane %v657, %v685
    %v1294 = vunpack.c.l.b16 %v57
    %v1295 = vunpack.c.h.b16 %v57
    %v1296 = vunpack.c.l.b16 %v58
    %v1297 = vunpack.c.h.b16 %v58
    %v1298 = vunpack.c.l.b16 %v59
    %v1299 = vunpack.c.h.b16 %v59
    %v1300 = vunpack.c.l.b16 %v60
    %v1301 = vunpack.c.l.b16 %v61
    %v1302 = vunpack.c.h.b16 %v61
    %v1303 = vunpack.c.l.b16 %v62
    %v1304 = vunpack.c.h.b16 %v62
    %v1305 = vunpack.c.l.b16 %v63
    %v1306 = vunpack.c.h.b16 %v63
    %v1307 = vunpack.c.l.b16 %v64
    %v1308 = vunpack.c.l.b16 %v65
    %v1309 = vunpack.c.h.b16 %v65
    %v1310 = vunpack.c.l.b16 %v66
    %v1311 = vunpack.c.h.b16 %v66
    %v1312 = vunpack.c.l.b16 %v67
    %v1313 = vunpack.c.h.b16 %v67
    %v1314 = vunpack.c.l.b16 %v68
    %v1315 = vunpack.c.l.b16 %v69
    %v1316 = vunpack.c.h.b16 %v69
    %v1317 = vunpack.c.l.b16 %v70
    %v1318 = vunpack.c.h.b16 %v70
    %v1319 = vunpack.c.l.b16 %v71
    %v1320 = vunpack.c.h.b16 %v71
    %v1321 = vunpack.c.l.b16 %v72
    %v1322 = vunpack.c.l.b16 %v73
    %v1323 = vunpack.c.h.b16 %v73
    %v1324 = vunpack.c.l.b16 %v74
    %v1325 = vunpack.c.h.b16 %v74
    %v1326 = vunpack.c.l.b16 %v75
    %v1327 = vunpack.c.h.b16 %v75
    %v1328 = vunpack.c.l.b16 %v76
    %v1329 = vunpack.c.l.b16 %v77
    %v1330 = vunpack.c.h.b16 %v77
    %v1331 = vunpack.c.l.b16 %v78
    %v1332 = vunpack.c.h.b16 %v78
    %v1333 = vunpack.c.l.b16 %v79
    %v1334 = vunpack.c.h.b16 %v79
    %v1335 = vunpack.c.l.b16 %v80
    %v1336 = vunpack.c.l.b16 %v81
    %v1337 = vunpack.c.h.b16 %v81
    %v1338 = vunpack.c.l.b16 %v82
    %v1339 = vunpack.c.h.b16 %v82
    %v1340 = vunpack.c.l.b16 %v83
    %v1341 = vunpack.c.h.b16 %v83
    %v1342 = vunpack.c.l.b16 %v84
    %v1343 = vunpack.c.l.b16 %v85
    %v1344 = vunpack.c.h.b16 %v85
    %v1345 = vunpack.c.l.b16 %v86
    %v1346 = vunpack.c.h.b16 %v86
    %v1347 = vunpack.c.l.b16 %v87
    %v1348 = vunpack.c.h.b16 %v87
    %v1349 = vunpack.c.l.b16 %v88
    %v1350 = vunpack.c.l.b16 %v89
    %v1351 = vunpack.c.h.b16 %v89
    %v1352 = vunpack.c.l.b16 %v90
    %v1353 = vunpack.c.h.b16 %v90
    %v1354 = vunpack.c.l.b16 %v91
    %v1355 = vunpack.c.h.b16 %v91
    %v1356 = vunpack.c.l.b16 %v92
    %v1357 = vunpack.c.l.b16 %v93
    %v1358 = vunpack.c.h.b16 %v93
    %v1359 = vunpack.c.l.b16 %v94
    %v1360 = vunpack.c.h.b16 %v94
    %v1361 = vunpack.c.l.b16 %v95
    %v1362 = vunpack.c.h.b16 %v95
    %v1363 = vunpack.c.l.b16 %v96
    %v1364 = vunpack.c.l.b16 %v97
    %v1365 = vunpack.c.h.b16 %v97
    %v1366 = vunpack.c.l.b16 %v98
    %v1367 = vunpack.c.h.b16 %v98
    %v1368 = vunpack.c.l.b16 %v99
    %v1369 = vunpack.c.h.b16 %v99
    %v1370 = vunpack.c.l.b16 %v100
    %v1371 = vunpack.c.l.b16 %v101
    %v1372 = vunpack.c.h.b16 %v101
    %v1373 = vunpack.c.l.b16 %v102
    %v1374 = vunpack.c.h.b16 %v102
    %v1375 = vunpack.c.l.b16 %v103
    %v1376 = vunpack.c.h.b16 %v103
    %v1377 = vunpack.c.l.b16 %v104
    %v1378 = vunpack.c.l.b16 %v105
    %v1379 = vunpack.c.h.b16 %v105
    %v1380 = vunpack.c.l.b16 %v106
    %v1381 = vunpack.c.h.b16 %v106
    %v1382 = vunpack.c.l.b16 %v107
    %v1383 = vunpack.c.h.b16 %v107
    %v1384 = vunpack.c.l.b16 %v108
    %v1385 = vunpack.c.l.b16 %v109
    %v1386 = vunpack.c.h.b16 %v109
    %v1387 = vunpack.c.l.b16 %v110
    %v1388 = vunpack.c.h.b16 %v110
    %v1389 = vunpack.c.l.b16 %v111
    %v1390 = vunpack.c.h.b16 %v111
    %v1391 = vunpack.c.l.b16 %v112
    %v1392 = vunpack.c.l.b16 %v113
    %v1393 = vunpack.c.h.b16 %v113
    %v1394 = vunpack.c.l.b16 %v114
    %v1395 = vunpack.c.h.b16 %v114
    %v1396 = vunpack.c.l.b16 %v115
    %v1397 = vunpack.c.h.b16 %v115
    %v1398 = vunpack.c.l.b16 %v116
    %v1399 = vunpack.c.l.b16 %v117
    %v1400 = vunpack.c.h.b16 %v117
    %v1401 = vunpack.c.l.b16 %v118
    %v1402 = vunpack.c.h.b16 %v118
    %v1403 = vunpack.c.l.b16 %v119
    %v1404 = vunpack.c.h.b16 %v119
    %v1405 = vunpack.c.l.b16 %v120
    %v1406 = vunpack.c.l.b16 %v121
    %v1407 = vunpack.c.h.b16 %v121
    %v1408 = vunpack.c.l.b16 %v122
    %v1409 = vunpack.c.h.b16 %v122
    %v1410 = vunpack.c.l.b16 %v123
    %v1411 = vunpack.c.h.b16 %v123
    %v1412 = vunpack.c.l.b16 %v124
    %v1413 = vunpack.c.l.b16 %v125
    %v1414 = vunpack.c.h.b16 %v125
    %v1415 = vunpack.c.l.b16 %v126
    %v1416 = vunpack.c.h.b16 %v126
    %v1417 = vunpack.c.l.b16 %v127
    %v1418 = vunpack.c.h.b16 %v127
    %v1419 = vunpack.c.l.b16 %v128
    %v1420 = vunpack.c.l.b16 %v129
    %v1421 = vunpack.c.h.b16 %v129
    %v1422 = vunpack.c.l.b16 %v130
    %v1423 = vunpack.c.h.b16 %v130
    %v1424 = vunpack.c.l.b16 %v131
    %v1425 = vunpack.c.h.b16 %v131
    %v1426 = vunpack.c.l.b16 %v132
    %v1427 = vunpack.c.l.b16 %v133
    %v1428 = vunpack.c.h.b16 %v133
    %v1429 = vunpack.c.l.b16 %v134
    %v1430 = vunpack.c.h.b16 %v134
    %v1431 = vunpack.c.l.b16 %v135
    %v1432 = vunpack.c.h.b16 %v135
    %v1433 = vunpack.c.l.b16 %v136
    %v1434 = vunpack.c.l.b16 %v137
    %v1435 = vunpack.c.h.b16 %v137
    %v1436 = vunpack.c.l.b16 %v138
    %v1437 = vunpack.c.h.b16 %v138
    %v1438 = vunpack.c.l.b16 %v139
    %v1439 = vunpack.c.h.b16 %v139
    %v1440 = vunpack.c.l.b16 %v140
    %v1441 = vunpack.c.l.b16 %v141
    %v1442 = vunpack.c.h.b16 %v141
    %v1443 = vunpack.c.l.b16 %v142
    %v1444 = vunpack.c.h.b16 %v142
    %v1445 = vunpack.c.l.b16 %v143
    %v1446 = vunpack.c.h.b16 %v143
    %v1447 = vunpack.c.l.b16 %v144
    %v1448 = vunpack.c.l.b16 %v145
    %v1449 = vunpack.c.h.b16 %v145
    %v1450 = vunpack.c.l.b16 %v146
    %v1451 = vunpack.c.h.b16 %v146
    %v1452 = vunpack.c.l.b16 %v147
    %v1453 = vunpack.c.h.b16 %v147
    %v1454 = vunpack.c.l.b16 %v148
    %v1455 = vunpack.c.l.b16 %v149
    %v1456 = vunpack.c.h.b16 %v149
    %v1457 = vunpack.c.l.b16 %v150
    %v1458 = vunpack.c.h.b16 %v150
    %v1459 = vunpack.c.l.b16 %v151
    %v1460 = vunpack.c.h.b16 %v151
    %v1461 = vunpack.c.l.b16 %v152
    %v1462 = vunpack.c.l.b16 %v153
    %v1463 = vunpack.c.h.b16 %v153
    %v1464 = vunpack.c.l.b16 %v154
    %v1465 = vunpack.c.h.b16 %v154
    %v1466 = vunpack.c.l.b16 %v155
    %v1467 = vunpack.c.h.b16 %v155
    %v1468 = vunpack.c.l.b16 %v156
    %v1469 = vunpack.c.l.b16 %v157
    %v1470 = vunpack.c.h.b16 %v157
    %v1471 = vunpack.c.l.b16 %v158
    %v1472 = vunpack.c.h.b16 %v158
    %v1473 = vunpack.c.l.b16 %v159
    %v1474 = vunpack.c.h.b16 %v159
    %v1475 = vunpack.c.l.b16 %v160
    %v1476 = vunpack.c.l.b16 %v161
    %v1477 = vunpack.c.h.b16 %v161
    %v1478 = vunpack.c.l.b16 %v162
    %v1479 = vunpack.c.h.b16 %v162
    %v1480 = vunpack.c.l.b16 %v163
    %v1481 = vunpack.c.h.b16 %v163
    %v1482 = vunpack.c.l.b16 %v164
    %v1483 = vunpack.c.l.b16 %v165
    %v1484 = vunpack.c.h.b16 %v165
    %v1485 = vunpack.c.l.b16 %v166
    %v1486 = vunpack.c.h.b16 %v166
    %v1487 = vunpack.c.l.b16 %v167
    %v1488 = vunpack.c.h.b16 %v167
    %v1489 = vunpack.c.l.b16 %v168
    %v1490 = vunpack.c.l.b16 %v169
    %v1491 = vunpack.c.h.b16 %v169
    %v1492 = vunpack.c.l.b16 %v170
    %v1493 = vunpack.c.h.b16 %v170
    %v1494 = vunpack.c.l.b16 %v171
    %v1495 = vunpack.c.h.b16 %v171
    %v1496 = vunpack.c.l.b16 %v172
    %v1497 = vunpack.c.l.b16 %v173
    %v1498 = vunpack.c.h.b16 %v173
    %v1499 = vunpack.c.l.b16 %v174
    %v1500 = vunpack.c.h.b16 %v174
    %v1501 = vunpack.c.l.b16 %v175
    %v1502 = vunpack.c.h.b16 %v175
    %v1503 = vunpack.c.l.b16 %v176
    %v1504 = vunpack.c.l.b16 %v177
    %v1505 = vunpack.c.h.b16 %v177
    %v1506 = vunpack.c.l.b16 %v178
    %v1507 = vunpack.c.h.b16 %v178
    %v1508 = vunpack.c.l.b16 %v179
    %v1509 = vunpack.c.h.b16 %v179
    %v1510 = vunpack.c.l.b16 %v180
    %v1511 = vunpack.c.l.b16 %v181
    %v1512 = vunpack.c.h.b16 %v181
    %v1513 = vunpack.c.l.b16 %v182
    %v1514 = vunpack.c.h.b16 %v182
    %v1515 = vunpack.c.l.b16 %v183
    %v1516 = vunpack.c.h.b16 %v183
    %v1517 = vunpack.c.l.b16 %v184
    %v1518 = vunpack.c.l.b16 %v185
    %v1519 = vunpack.c.h.b16 %v185
    %v1520 = vunpack.c.l.b16 %v186
    %v1521 = vunpack.c.h.b16 %v186
    %v1522 = vunpack.c.l.b16 %v187
    %v1523 = vunpack.c.h.b16 %v187
    %v1524 = vunpack.c.l.b16 %v188
    %v1525 = vunpack.c.l.b16 %v189
    %v1526 = vunpack.c.h.b16 %v189
    %v1527 = vunpack.c.l.b16 %v190
    %v1528 = vunpack.c.h.b16 %v190
    %v1529 = vunpack.c.l.b16 %v191
    %v1530 = vunpack.c.h.b16 %v191
    %v1531 = vunpack.c.l.b16 %v192
    %v1532 = vunpack.c.l.b16 %v193
    %v1533 = vunpack.c.h.b16 %v193
    %v1534 = vunpack.c.l.b16 %v194
    %v1535 = vunpack.c.h.b16 %v194
    %v1536 = vunpack.c.l.b16 %v195
    %v1537 = vunpack.c.h.b16 %v195
    %v1538 = vunpack.c.l.b16 %v196
    %v1539 = vunpack.c.l.b16 %v197
    %v1540 = vunpack.c.h.b16 %v197
    %v1541 = vunpack.c.l.b16 %v198
    %v1542 = vunpack.c.h.b16 %v198
    %v1543 = vunpack.c.l.b16 %v199
    %v1544 = vunpack.c.h.b16 %v199
    %v1545 = vunpack.c.l.b16 %v200
    %v1546 = vunpack.c.l.b16 %v201
    %v1547 = vunpack.c.h.b16 %v201
    %v1548 = vunpack.c.l.b16 %v202
    %v1549 = vunpack.c.h.b16 %v202
    %v1550 = vunpack.c.l.b16 %v203
    %v1551 = vunpack.c.h.b16 %v203
    %v1552 = vunpack.c.l.b16 %v204
    %v1553 = vunpack.c.l.b16 %v205
    %v1554 = vunpack.c.h.b16 %v205
    %v1555 = vunpack.c.l.b16 %v206
    %v1556 = vunpack.c.h.b16 %v206
    %v1557 = vunpack.c.l.b16 %v207
    %v1558 = vunpack.c.h.b16 %v207
    %v1559 = vunpack.c.l.b16 %v208
    %v1560 = vunpack.c.l.b16 %v209
    %v1561 = vunpack.c.h.b16 %v209
    %v1562 = vunpack.c.l.b16 %v210
    %v1563 = vunpack.c.h.b16 %v210
    %v1564 = vunpack.c.l.b16 %v211
    %v1565 = vunpack.c.h.b16 %v211
    %v1566 = vunpack.c.l.b16 %v212
    %v1567 = vunpack.c.l.b16 %v213
    %v1568 = vunpack.c.h.b16 %v213
    %v1569 = vunpack.c.l.b16 %v214
    %v1570 = vunpack.c.h.b16 %v214
    %v1571 = vunpack.c.l.b16 %v215
    %v1572 = vunpack.c.h.b16 %v215
    %v1573 = vunpack.c.l.b16 %v216
    %v1574 = vunpack.c.l.b16 %v217
    %v1575 = vunpack.c.h.b16 %v217
    %v1576 = vunpack.c.l.b16 %v218
    %v1577 = vunpack.c.h.b16 %v218
    %v1578 = vunpack.c.l.b16 %v219
    %v1579 = vunpack.c.h.b16 %v219
    %v1580 = vunpack.c.l.b16 %v220
    %v1581 = vunpack.c.l.b16 %v221
    %v1582 = vunpack.c.h.b16 %v221
    %v1583 = vunpack.c.l.b16 %v222
    %v1584 = vunpack.c.h.b16 %v222
    %v1585 = vunpack.c.l.b16 %v223
    %v1586 = vunpack.c.h.b16 %v223
    %v1587 = vunpack.c.l.b16 %v224
    %v1588 = vunpack.c.l.b16 %v225
    %v1589 = vunpack.c.h.b16 %v225
    %v1590 = vunpack.c.l.b16 %v226
    %v1591 = vunpack.c.h.b16 %v226
    %v1592 = vunpack.c.l.b16 %v227
    %v1593 = vunpack.c.h.b16 %v227
    %v1594 = vunpack.c.l.b16 %v228
    %v1595 = vunpack.c.l.b16 %v229
    %v1596 = vunpack.c.h.b16 %v229
    %v1597 = vunpack.c.l.b16 %v230
    %v1598 = vunpack.c.h.b16 %v230
    %v1599 = vunpack.c.l.b16 %v231
    %v1600 = vunpack.c.h.b16 %v231
    %v1601 = vunpack.c.l.b16 %v232
    %v1602 = vunpack.c.l.b16 %v233
    %v1603 = vunpack.c.h.b16 %v233
    %v1604 = vunpack.c.l.b16 %v234
    %v1605 = vunpack.c.h.b16 %v234
    %v1606 = vunpack.c.l.b16 %v235
    %v1607 = vunpack.c.h.b16 %v235
    %v1608 = vunpack.c.l.b16 %v236
    %v1609 = vunpack.c.l.b16 %v237
    %v1610 = vunpack.c.h.b16 %v237
    %v1611 = vunpack.c.l.b16 %v238
    %v1612 = vunpack.c.h.b16 %v238
    %v1613 = vunpack.c.l.b16 %v239
    %v1614 = vunpack.c.h.b16 %v239
    %v1615 = vunpack.c.l.b16 %v240
    %v1616 = vunpack.c.l.b16 %v241
    %v1617 = vunpack.c.h.b16 %v241
    %v1618 = vunpack.c.l.b16 %v242
    %v1619 = vunpack.c.h.b16 %v242
    %v1620 = vunpack.c.l.b16 %v243
    %v1621 = vunpack.c.h.b16 %v243
    %v1622 = vunpack.c.l.b16 %v244
    %v1623 = vunpack.c.l.b16 %v245
    %v1624 = vunpack.c.h.b16 %v245
    %v1625 = vunpack.c.l.b16 %v246
    %v1626 = vunpack.c.h.b16 %v246
    %v1627 = vunpack.c.l.b16 %v247
    %v1628 = vunpack.c.h.b16 %v247
    %v1629 = vunpack.c.l.b16 %v248
    %v1630 = vunpack.c.l.b16 %v249
    %v1631 = vunpack.c.h.b16 %v249
    %v1632 = vunpack.c.l.b16 %v250
    %v1633 = vunpack.c.h.b16 %v250
    %v1634 = vunpack.c.l.b16 %v251
    %v1635 = vunpack.c.h.b16 %v251
    %v1636 = vunpack.c.l.b16 %v252
    %v1637 = vunpack.c.l.b16 %v253
    %v1638 = vunpack.c.h.b16 %v253
    %v1639 = vunpack.c.l.b16 %v254
    %v1640 = vunpack.c.h.b16 %v254
    %v1641 = vunpack.c.l.b16 %v255
    %v1642 = vunpack.c.h.b16 %v255
    %v1643 = vunpack.c.l.b16 %v256
    %v1644 = vunpack.c.l.b16 %v257
    %v1645 = vunpack.c.h.b16 %v257
    %v1646 = vunpack.c.l.b16 %v258
    %v1647 = vunpack.c.h.b16 %v258
    %v1648 = vunpack.c.l.b16 %v259
    %v1649 = vunpack.c.h.b16 %v259
    %v1650 = vunpack.c.l.b16 %v260
    %v1651 = vunpack.c.l.b16 %v261
    %v1652 = vunpack.c.h.b16 %v261
    %v1653 = vunpack.c.l.b16 %v262
    %v1654 = vunpack.c.h.b16 %v262
    %v1655 = vunpack.c.l.b16 %v263
    %v1656 = vunpack.c.h.b16 %v263
    %v1657 = vunpack.c.l.b16 %v264
    %v1658 = vunpack.c.l.b16 %v265
    %v1659 = vunpack.c.h.b16 %v265
    %v1660 = vunpack.c.l.b16 %v266
    %v1661 = vunpack.c.h.b16 %v266
    %v1662 = vunpack.c.l.b16 %v267
    %v1663 = vunpack.c.h.b16 %v267
    %v1664 = vunpack.c.l.b16 %v268
    %v1665 = vunpack.c.l.b16 %v269
    %v1666 = vunpack.c.h.b16 %v269
    %v1667 = vunpack.c.l.b16 %v270
    %v1668 = vunpack.c.h.b16 %v270
    %v1669 = vunpack.c.l.b16 %v271
    %v1670 = vunpack.c.h.b16 %v271
    %v1671 = vunpack.c.l.b16 %v272
    %v1672 = vunpack.c.l.b16 %v273
    %v1673 = vunpack.c.h.b16 %v273
    %v1674 = vunpack.c.l.b16 %v274
    %v1675 = vunpack.c.h.b16 %v274
    %v1676 = vunpack.c.l.b16 %v275
    %v1677 = vunpack.c.h.b16 %v275
    %v1678 = vunpack.c.l.b16 %v276
    %v1679 = vunpack.c.l.b16 %v277
    %v1680 = vunpack.c.h.b16 %v277
    %v1681 = vunpack.c.l.b16 %v278
    %v1682 = vunpack.c.h.b16 %v278
    %v1683 = vunpack.c.l.b16 %v279
    %v1684 = vunpack.c.h.b16 %v279
    %v1685 = vunpack.c.l.b16 %v280
    %v1686 = vunpack.c.l.b16 %v281
    %v1687 = vunpack.c.h.b16 %v281
    %v1688 = vunpack.c.l.b16 %v282
    %v1689 = vunpack.c.h.b16 %v282
    %v1690 = vunpack.c.l.b16 %v283
    %v1691 = vunpack.c.h.b16 %v283
    %v1692 = vunpack.c.l.b16 %v284
    %v1693 = vunpack.c.l.b16 %v285
    %v1694 = vunpack.c.h.b16 %v285
    %v1695 = vunpack.c.l.b16 %v286
    %v1696 = vunpack.c.h.b16 %v286
    %v1697 = vunpack.c.l.b16 %v287
    %v1698 = vunpack.c.h.b16 %v287
    %v1699 = vunpack.c.l.b16 %v288
    %v1700 = vunpack.c.l.b16 %v289
    %v1701 = vunpack.c.h.b16 %v289
    %v1702 = vunpack.c.l.b16 %v290
    %v1703 = vunpack.c.h.b16 %v290
    %v1704 = vunpack.c.l.b16 %v291
    %v1705 = vunpack.c.h.b16 %v291
    %v1706 = vunpack.c.l.b16 %v292
    %v1707 = vunpack.c.l.b16 %v293
    %v1708 = vunpack.c.h.b16 %v293
    %v1709 = vunpack.c.l.b16 %v294
    %v1710 = vunpack.c.h.b16 %v294
    %v1711 = vunpack.c.l.b16 %v295
    %v1712 = vunpack.c.h.b16 %v295
    %v1713 = vunpack.c.l.b16 %v296
    %v1714 = vunpack.c.l.b16 %v297
    %v1715 = vunpack.c.h.b16 %v297
    %v1716 = vunpack.c.l.b16 %v298
    %v1717 = vunpack.c.h.b16 %v298
    %v1718 = vunpack.c.l.b16 %v299
    %v1719 = vunpack.c.h.b16 %v299
    %v1720 = vunpack.c.l.b16 %v300
    %v1721 = vunpack.c.l.b16 %v301
    %v1722 = vunpack.c.h.b16 %v301
    %v1723 = vunpack.c.l.b16 %v302
    %v1724 = vunpack.c.h.b16 %v302
    %v1725 = vunpack.c.l.b16 %v303
    %v1726 = vunpack.c.h.b16 %v303
    %v1727 = vunpack.c.l.b16 %v304
    %v1728 = vunpack.c.l.b16 %v305
    %v1729 = vunpack.c.h.b16 %v305
    %v1730 = vunpack.c.l.b16 %v306
    %v1731 = vunpack.c.h.b16 %v306
    %v1732 = vunpack.c.l.b16 %v307
    %v1733 = vunpack.c.h.b16 %v307
    %v1734 = vunpack.c.l.b16 %v308
    %v1735 = vunpack.c.l.b16 %v309
    %v1736 = vunpack.c.h.b16 %v309
    %v1737 = vunpack.c.l.b16 %v310
    %v1738 = vunpack.c.h.b16 %v310
    %v1739 = vunpack.c.l.b16 %v311
    %v1740 = vunpack.c.h.b16 %v311
    %v1741 = vunpack.c.l.b16 %v312
    %v1742 = vunpack.c.l.b16 %v313
    %v1743 = vunpack.c.h.b16 %v313
    %v1744 = vunpack.c.l.b16 %v314
    %v1745 = vunpack.c.h.b16 %v314
    %v1746 = vunpack.c.l.b16 %v315
    %v1747 = vunpack.c.h.b16 %v315
    %v1748 = vunpack.c.l.b16 %v316
    %v1749 = vunpack.c.l.b16 %v317
    %v1750 = vunpack.c.h.b16 %v317
    %v1751 = vunpack.c.l.b16 %v318
    %v1752 = vunpack.c.h.b16 %v318
    %v1753 = vunpack.c.l.b16 %v319
    %v1754 = vunpack.c.h.b16 %v319
    %v1755 = vunpack.c.l.b16 %v320
    %v1756 = vunpack.c.l.b16 %v321
    %v1757 = vunpack.c.h.b16 %v321
    %v1758 = vunpack.c.l.b16 %v322
    %v1759 = vunpack.c.h.b16 %v322
    %v1760 = vunpack.c.l.b16 %v323
    %v1761 = vunpack.c.h.b16 %v323
    %v1762 = vunpack.c.l.b16 %v324
    %v1763 = vunpack.c.l.b16 %v325
    %v1764 = vunpack.c.h.b16 %v325
    %v1765 = vunpack.c.l.b16 %v326
    %v1766 = vunpack.c.h.b16 %v326
    %v1767 = vunpack.c.l.b16 %v327
    %v1768 = vunpack.c.h.b16 %v327
    %v1769 = vunpack.c.l.b16 %v328
    %v1770 = vunpack.c.l.b16 %v329
    %v1771 = vunpack.c.h.b16 %v329
    %v1772 = vunpack.c.l.b16 %v330
    %v1773 = vunpack.c.h.b16 %v330
    %v1774 = vunpack.c.l.b16 %v331
    %v1775 = vunpack.c.h.b16 %v331
    %v1776 = vunpack.c.l.b16 %v332
    %v1777 = vunpack.c.l.b16 %v333
    %v1778 = vunpack.c.h.b16 %v333
    %v1779 = vunpack.c.l.b16 %v334
    %v1780 = vunpack.c.h.b16 %v334
    %v1781 = vunpack.c.l.b16 %v335
    %v1782 = vunpack.c.h.b16 %v335
    %v1783 = vunpack.c.l.b16 %v336
    %v1784 = vunpack.c.l.b16 %v337
    %v1785 = vunpack.c.h.b16 %v337
    %v1786 = vunpack.c.l.b16 %v338
    %v1787 = vunpack.c.h.b16 %v338
    %v1788 = vunpack.c.l.b16 %v339
    %v1789 = vunpack.c.h.b16 %v339
    %v1790 = vunpack.c.l.b16 %v340
    %v1791 = vunpack.c.l.b16 %v341
    %v1792 = vunpack.c.h.b16 %v341
    %v1793 = vunpack.c.l.b16 %v342
    %v1794 = vunpack.c.h.b16 %v342
    %v1795 = vunpack.c.l.b16 %v343
    %v1796 = vunpack.c.h.b16 %v343
    %v1797 = vunpack.c.l.b16 %v344
    %v1798 = vunpack.c.l.b16 %v345
    %v1799 = vunpack.c.h.b16 %v345
    %v1800 = vunpack.c.l.b16 %v346
    %v1801 = vunpack.c.h.b16 %v346
    %v1802 = vunpack.c.l.b16 %v347
    %v1803 = vunpack.c.h.b16 %v347
    %v1804 = vunpack.c.l.b16 %v348
    %v1805 = vunpack.c.l.b16 %v349
    %v1806 = vunpack.c.h.b16 %v349
    %v1807 = vunpack.c.l.b16 %v350
    %v1808 = vunpack.c.h.b16 %v350
    %v1809 = vunpack.c.l.b16 %v351
    %v1810 = vunpack.c.h.b16 %v351
    %v1811 = vunpack.c.l.b16 %v352
    %v1812 = vunpack.c.l.b16 %v353
    %v1813 = vunpack.c.h.b16 %v353
    %v1814 = vunpack.c.l.b16 %v354
    %v1815 = vunpack.c.h.b16 %v354
    %v1816 = vunpack.c.l.b16 %v355
    %v1817 = vunpack.c.h.b16 %v355
    %v1818 = vunpack.c.l.b16 %v356
    %v1819 = vunpack.c.l.b16 %v357
    %v1820 = vunpack.c.h.b16 %v357
    %v1821 = vunpack.c.l.b16 %v358
    %v1822 = vunpack.c.h.b16 %v358
    %v1823 = vunpack.c.l.b16 %v359
    %v1824 = vunpack.c.h.b16 %v359
    %v1825 = vunpack.c.l.b16 %v360
    %v1826 = vunpack.c.l.b16 %v361
    %v1827 = vunpack.c.h.b16 %v361
    %v1828 = vunpack.c.l.b16 %v362
    %v1829 = vunpack.c.h.b16 %v362
    %v1830 = vunpack.c.l.b16 %v363
    %v1831 = vunpack.c.h.b16 %v363
    %v1832 = vunpack.c.l.b16 %v364
    %v1833 = vunpack.c.l.b16 %v365
    %v1834 = vunpack.c.h.b16 %v365
    %v1835 = vunpack.c.l.b16 %v366
    %v1836 = vunpack.c.h.b16 %v366
    %v1837 = vunpack.c.l.b16 %v367
    %v1838 = vunpack.c.h.b16 %v367
    %v1839 = vunpack.c.l.b16 %v368
    %v1840 = vunpack.c.l.b16 %v369
    %v1841 = vunpack.c.h.b16 %v369
    %v1842 = vunpack.c.l.b16 %v370
    %v1843 = vunpack.c.h.b16 %v370
    %v1844 = vunpack.c.l.b16 %v371
    %v1845 = vunpack.c.h.b16 %v371
    %v1846 = vunpack.c.l.b16 %v372
    %v1847 = vunpack.c.l.b16 %v373
    %v1848 = vunpack.c.h.b16 %v373
    %v1849 = vunpack.c.l.b16 %v374
    %v1850 = vunpack.c.h.b16 %v374
    %v1851 = vunpack.c.l.b16 %v375
    %v1852 = vunpack.c.h.b16 %v375
    %v1853 = vunpack.c.l.b16 %v376
    %v1854 = vunpack.c.l.b16 %v377
    %v1855 = vunpack.c.h.b16 %v377
    %v1856 = vunpack.c.l.b16 %v378
    %v1857 = vunpack.c.h.b16 %v378
    %v1858 = vunpack.c.l.b16 %v379
    %v1859 = vunpack.c.h.b16 %v379
    %v1860 = vunpack.c.l.b16 %v380
    %v1861 = vunpack.c.l.b16 %v381
    %v1862 = vunpack.c.h.b16 %v381
    %v1863 = vunpack.c.l.b16 %v382
    %v1864 = vunpack.c.h.b16 %v382
    %v1865 = vunpack.c.l.b16 %v383
    %v1866 = vunpack.c.h.b16 %v383
    %v1867 = vunpack.c.l.b16 %v384
    %v1868 = vunpack.c.l.b16 %v385
    %v1869 = vunpack.c.h.b16 %v385
    %v1870 = vunpack.c.l.b16 %v386
    %v1871 = vunpack.c.h.b16 %v386
    %v1872 = vunpack.c.l.b16 %v387
    %v1873 = vunpack.c.h.b16 %v387
    %v1874 = vunpack.c.l.b16 %v388
    %v1875 = vunpack.c.l.b16 %v389
    %v1876 = vunpack.c.h.b16 %v389
    %v1877 = vunpack.c.l.b16 %v390
    %v1878 = vunpack.c.h.b16 %v390
    %v1879 = vunpack.c.l.b16 %v391
    %v1880 = vunpack.c.h.b16 %v391
    %v1881 = vunpack.c.l.b16 %v392
    %v1882 = vunpack.c.l.b16 %v393
    %v1883 = vunpack.c.h.b16 %v393
    %v1884 = vunpack.c.l.b16 %v394
    %v1885 = vunpack.c.h.b16 %v394
    %v1886 = vunpack.c.l.b16 %v395
    %v1887 = vunpack.c.h.b16 %v395
    %v1888 = vunpack.c.l.b16 %v396
    %v1889 = vunpack.c.l.b16 %v397
    %v1890 = vunpack.c.h.b16 %v397
    %v1891 = vunpack.c.l.b16 %v398
    %v1892 = vunpack.c.h.b16 %v398
    %v1893 = vunpack.c.l.b16 %v399
    %v1894 = vunpack.c.h.b16 %v399
    %v1895 = vunpack.c.l.b16 %v400
    %v1896 = vunpack.c.l.b16 %v401
    %v1897 = vunpack.c.h.b16 %v401
    %v1898 = vunpack.c.l.b16 %v402
    %v1899 = vunpack.c.h.b16 %v402
    %v1900 = vunpack.c.l.b16 %v403
    %v1901 = vunpack.c.h.b16 %v403
    %v1902 = vunpack.c.l.b16 %v404
    %v1903 = vunpack.c.l.b16 %v405
    %v1904 = vunpack.c.h.b16 %v405
    %v1905 = vunpack.c.l.b16 %v406
    %v1906 = vunpack.c.h.b16 %v406
    %v1907 = vunpack.c.l.b16 %v407
    %v1908 = vunpack.c.h.b16 %v407
    %v1909 = vunpack.c.l.b16 %v408
    %v1910 = vunpack.c.l.b16 %v409
    %v1911 = vunpack.c.h.b16 %v409
    %v1912 = vunpack.c.l.b16 %v410
    %v1913 = vunpack.c.h.b16 %v410
    %v1914 = vunpack.c.l.b16 %v411
    %v1915 = vunpack.c.h.b16 %v411
    %v1916 = vunpack.c.l.b16 %v412
    %v1917 = vunpack.c.l.b16 %v413
    %v1918 = vunpack.c.h.b16 %v413
    %v1919 = vunpack.c.l.b16 %v414
    %v1920 = vunpack.c.h.b16 %v414
    %v1921 = vunpack.c.l.b16 %v415
    %v1922 = vunpack.c.h.b16 %v415
    %v1923 = vunpack.c.l.b16 %v416
    %v1924 = vunpack.c.l.b16 %v417
    %v1925 = vunpack.c.h.b16 %v417
    %v1926 = vunpack.c.l.b16 %v418
    %v1927 = vunpack.c.h.b16 %v418
    %v1928 = vunpack.c.l.b16 %v419
    %v1929 = vunpack.c.h.b16 %v419
    %v1930 = vunpack.c.l.b16 %v420
    %v1931 = vunpack.c.l.b16 %v421
    %v1932 = vunpack.c.h.b16 %v421
    %v1933 = vunpack.c.l.b16 %v422
    %v1934 = vunpack.c.h.b16 %v422
    %v1935 = vunpack.c.l.b16 %v423
    %v1936 = vunpack.c.h.b16 %v423
    %v1937 = vunpack.c.l.b16 %v424
    %v1938 = vunpack.c.l.b16 %v425
    %v1939 = vunpack.c.h.b16 %v425
    %v1940 = vunpack.c.l.b16 %v426
    %v1941 = vunpack.c.h.b16 %v426
    %v1942 = vunpack.c.l.b16 %v427
    %v1943 = vunpack.c.h.b16 %v427
    %v1944 = vunpack.c.l.b16 %v428
    %v1945 = vunpack.c.l.b16 %v429
    %v1946 = vunpack.c.h.b16 %v429
    %v1947 = vunpack.c.l.b16 %v430
    %v1948 = vunpack.c.h.b16 %v430
    %v1949 = vunpack.c.l.b16 %v431
    %v1950 = vunpack.c.h.b16 %v431
    %v1951 = vunpack.c.l.b16 %v432
    %v1952 = vunpack.c.l.b16 %v433
    %v1953 = vunpack.c.h.b16 %v433
    %v1954 = vunpack.c.l.b16 %v434
    %v1955 = vunpack.c.h.b16 %v434
    %v1956 = vunpack.c.l.b16 %v435
    %v1957 = vunpack.c.h.b16 %v435
    %v1958 = vunpack.c.l.b16 %v436
    %v1959 = vunpack.c.l.b16 %v437
    %v1960 = vunpack.c.h.b16 %v437
    %v1961 = vunpack.c.l.b16 %v438
    %v1962 = vunpack.c.h.b16 %v438
    %v1963 = vunpack.c.l.b16 %v439
    %v1964 = vunpack.c.h.b16 %v439
    %v1965 = vunpack.c.l.b16 %v440
    %v1966 = vunpack.c.l.b16 %v441
    %v1967 = vunpack.c.h.b16 %v441
    %v1968 = vunpack.c.l.b16 %v442
    %v1969 = vunpack.c.h.b16 %v442
    %v1970 = vunpack.c.l.b16 %v443
    %v1971 = vunpack.c.h.b16 %v443
    %v1972 = vunpack.c.l.b16 %v444
    %v1973 = vunpack.c.l.b16 %v445
    %v1974 = vunpack.c.h.b16 %v445
    %v1975 = vunpack.c.l.b16 %v446
    %v1976 = vunpack.c.h.b16 %v446
    %v1977 = vunpack.c.l.b16 %v447
    %v1978 = vunpack.c.h.b16 %v447
    %v1979 = vunpack.c.l.b16 %v448
    %v1980 = vunpack.c.l.b16 %v449
    %v1981 = vunpack.c.h.b16 %v449
    %v1982 = vunpack.c.l.b16 %v450
    %v1983 = vunpack.c.h.b16 %v450
    %v1984 = vunpack.c.l.b16 %v451
    %v1985 = vunpack.c.h.b16 %v451
    %v1986 = vunpack.c.l.b16 %v452
    %v1987 = vunpack.c.l.b16 %v453
    %v1988 = vunpack.c.h.b16 %v453
    %v1989 = vunpack.c.l.b16 %v454
    %v1990 = vunpack.c.h.b16 %v454
    %v1991 = vunpack.c.l.b16 %v455
    %v1992 = vunpack.c.h.b16 %v455
    %v1993 = vunpack.c.l.b16 %v456
    %v1994 = vunpack.c.l.b16 %v457
    %v1995 = vunpack.c.h.b16 %v457
    %v1996 = vunpack.c.l.b16 %v458
    %v1997 = vunpack.c.h.b16 %v458
    %v1998 = vunpack.c.l.b16 %v459
    %v1999 = vunpack.c.h.b16 %v459
    %v2000 = vunpack.c.l.b16 %v460
    %v2001 = vunpack.c.l.b16 %v461
    %v2002 = vunpack.c.h.b16 %v461
    %v2003 = vunpack.c.l.b16 %v462
    %v2004 = vunpack.c.h.b16 %v462
    %v2005 = vunpack.c.l.b16 %v463
    %v2006 = vunpack.c.h.b16 %v463
    %v2007 = vunpack.c.l.b16 %v464
    %v2008 = vunpack.c.l.b16 %v465
    %v2009 = vunpack.c.h.b16 %v465
    %v2010 = vunpack.c.l.b16 %v466
    %v2011 = vunpack.c.h.b16 %v466
    %v2012 = vunpack.c.l.b16 %v467
    %v2013 = vunpack.c.h.b16 %v467
    %v2014 = vunpack.c.l.b16 %v468
    %v2015 = vunpack.c.l.b16 %v469
    %v2016 = vunpack.c.h.b16 %v469
    %v2017 = vunpack.c.l.b16 %v470
    %v2018 = vunpack.c.h.b16 %v470
    %v2019 = vunpack.c.l.b16 %v471
    %v2020 = vunpack.c.h.b16 %v471
    %v2021 = vunpack.c.l.b16 %v472
    %v2022 = vunpack.c.l.b16 %v473
    %v2023 = vunpack.c.h.b16 %v473
    %v2024 = vunpack.c.l.b16 %v474
    %v2025 = vunpack.c.h.b16 %v474
    %v2026 = vunpack.c.l.b16 %v475
    %v2027 = vunpack.c.h.b16 %v475
    %v2028 = vunpack.c.l.b16 %v476
    %v2029 = vunpack.c.l.b16 %v477
    %v2030 = vunpack.c.h.b16 %v477
    %v2031 = vunpack.c.l.b16 %v478
    %v2032 = vunpack.c.h.b16 %v478
    %v2033 = vunpack.c.l.b16 %v479
    %v2034 = vunpack.c.h.b16 %v479
    %v2035 = vunpack.c.l.b16 %v480
    %v2036 = vunpack.c.l.b16 %v481
    %v2037 = vunpack.c.h.b16 %v481
    %v2038 = vunpack.c.l.b16 %v482
    %v2039 = vunpack.c.h.b16 %v482
    %v2040 = vunpack.c.l.b16 %v483
    %v2041 = vunpack.c.h.b16 %v483
    %v2042 = vunpack.c.l.b16 %v484
    %v2043 = vunpack.c.l.b16 %v485
    %v2044 = vunpack.c.h.b16 %v485
    %v2045 = vunpack.c.l.b16 %v486
    %v2046 = vunpack.c.h.b16 %v486
    %v2047 = vunpack.c.l.b16 %v487
    %v2048 = vunpack.c.h.b16 %v487
    %v2049 = vunpack.c.l.b16 %v488
    %v2050 = vunpack.c.l.b16 %v489
    %v2051 = vunpack.c.h.b16 %v489
    %v2052 = vunpack.c.l.b16 %v490
    %v2053 = vunpack.c.h.b16 %v490
    %v2054 = vunpack.c.l.b16 %v491
    %v2055 = vunpack.c.h.b16 %v491
    %v2056 = vunpack.c.l.b16 %v492
    %v2057 = vunpack.c.l.b16 %v493
    %v2058 = vunpack.c.h.b16 %v493
    %v2059 = vunpack.c.l.b16 %v494
    %v2060 = vunpack.c.h.b16 %v494
    %v2061 = vunpack.c.l.b16 %v495
    %v2062 = vunpack.c.h.b16 %v495
    %v2063 = vunpack.c.l.b16 %v496
    %v2064 = vunpack.c.l.b16 %v497
    %v2065 = vunpack.c.h.b16 %v497
    %v2066 = vunpack.c.l.b16 %v498
    %v2067 = vunpack.c.h.b16 %v498
    %v2068 = vunpack.c.l.b16 %v499
    %v2069 = vunpack.c.h.b16 %v499
    %v2070 = vunpack.c.l.b16 %v500
    %v2071 = vunpack.c.l.b16 %v501
    %v2072 = vunpack.c.h.b16 %v501
    %v2073 = vunpack.c.l.b16 %v502
    %v2074 = vunpack.c.h.b16 %v502
    %v2075 = vunpack.c.l.b16 %v503
    %v2076 = vunpack.c.h.b16 %v503
    %v2077 = vunpack.c.l.b16 %v504
    %v2078 = vunpack.c.l.b16 %v505
    %v2079 = vunpack.c.h.b16 %v505
    %v2080 = vunpack.c.l.b16 %v506
    %v2081 = vunpack.c.h.b16 %v506
    %v2082 = vunpack.c.l.b16 %v507
    %v2083 = vunpack.c.h.b16 %v507
    %v2084 = vunpack.c.l.b16 %v508
    %v2085 = vunpack.c.l.b16 %v509
    %v2086 = vunpack.c.h.b16 %v509
    %v2087 = vunpack.c.l.b16 %v510
    %v2088 = vunpack.c.h.b16 %v510
    %v2089 = vunpack.c.l.b16 %v511
    %v2090 = vunpack.c.h.b16 %v511
    %v2091 = vunpack.c.l.b16 %v512
    %v2092 = vunpack.c.l.b16 %v513
    %v2093 = vunpack.c.h.b16 %v513
    %v2094 = vunpack.c.l.b16 %v514
    %v2095 = vunpack.c.h.b16 %v514
    %v2096 = vunpack.c.l.b16 %v515
    %v2097 = vunpack.c.h.b16 %v515
    %v2098 = vunpack.c.l.b16 %v516
    %v2099 = vunpack.c.l.b16 %v517
    %v2100 = vunpack.c.h.b16 %v517
    %v2101 = vunpack.c.l.b16 %v518
    %v2102 = vunpack.c.h.b16 %v518
    %v2103 = vunpack.c.l.b16 %v519
    %v2104 = vunpack.c.h.b16 %v519
    %v2105 = vunpack.c.l.b16 %v520
    %v2106 = vunpack.c.l.b16 %v521
    %v2107 = vunpack.c.h.b16 %v521
    %v2108 = vunpack.c.l.b16 %v522
    %v2109 = vunpack.c.h.b16 %v522
    %v2110 = vunpack.c.l.b16 %v523
    %v2111 = vunpack.c.h.b16 %v523
    %v2112 = vunpack.c.l.b16 %v524
    %v2113 = vunpack.c.l.b16 %v525
    %v2114 = vunpack.c.h.b16 %v525
    %v2115 = vunpack.c.l.b16 %v526
    %v2116 = vunpack.c.h.b16 %v526
    %v2117 = vunpack.c.l.b16 %v527
    %v2118 = vunpack.c.h.b16 %v527
    %v2119 = vunpack.c.l.b16 %v528
    %v2120 = vunpack.c.l.b16 %v529
    %v2121 = vunpack.c.h.b16 %v529
    %v2122 = vunpack.c.l.b16 %v530
    %v2123 = vunpack.c.h.b16 %v530
    %v2124 = vunpack.c.l.b16 %v531
    %v2125 = vunpack.c.h.b16 %v531
    %v2126 = vunpack.c.l.b16 %v532
    %v2127 = vunpack.c.l.b16 %v533
    %v2128 = vunpack.c.h.b16 %v533
    %v2129 = vunpack.c.l.b16 %v534
    %v2130 = vunpack.c.h.b16 %v534
    %v2131 = vunpack.c.l.b16 %v535
    %v2132 = vunpack.c.h.b16 %v535
    %v2133 = vunpack.c.l.b16 %v536
    %v2134 = vunpack.c.l.b16 %v537
    %v2135 = vunpack.c.h.b16 %v537
    %v2136 = vunpack.c.l.b16 %v538
    %v2137 = vunpack.c.h.b16 %v538
    %v2138 = vunpack.c.l.b16 %v539
    %v2139 = vunpack.c.h.b16 %v539
    %v2140 = vunpack.c.l.b16 %v540
    %v2141 = vunpack.c.l.b16 %v541
    %v2142 = vunpack.c.h.b16 %v541
    %v2143 = vunpack.c.l.b16 %v542
    %v2144 = vunpack.c.h.b16 %v542
    %v2145 = vunpack.c.l.b16 %v543
    %v2146 = vunpack.c.h.b16 %v543
    %v2147 = vunpack.c.l.b16 %v544
    %v2148 = vunpack.c.l.b16 %v545
    %v2149 = vunpack.c.h.b16 %v545
    %v2150 = vunpack.c.l.b16 %v546
    %v2151 = vunpack.c.h.b16 %v546
    %v2152 = vunpack.c.l.b16 %v547
    %v2153 = vunpack.c.h.b16 %v547
    %v2154 = vunpack.c.l.b16 %v548
    %v2155 = vunpack.c.l.b16 %v549
    %v2156 = vunpack.c.h.b16 %v549
    %v2157 = vunpack.c.l.b16 %v550
    %v2158 = vunpack.c.h.b16 %v550
    %v2159 = vunpack.c.l.b16 %v551
    %v2160 = vunpack.c.h.b16 %v551
    %v2161 = vunpack.c.l.b16 %v552
    %v2162 = vunpack.c.l.b16 %v553
    %v2163 = vunpack.c.h.b16 %v553
    %v2164 = vunpack.c.l.b16 %v554
    %v2165 = vunpack.c.h.b16 %v554
    %v2166 = vunpack.c.l.b16 %v555
    %v2167 = vunpack.c.h.b16 %v555
    %v2168 = vunpack.c.l.b16 %v556
    %v2169 = vunpack.c.l.b16 %v557
    %v2170 = vunpack.c.h.b16 %v557
    %v2171 = vunpack.c.l.b16 %v558
    %v2172 = vunpack.c.h.b16 %v558
    %v2173 = vunpack.c.l.b16 %v559
    %v2174 = vunpack.c.h.b16 %v559
    %v2175 = vunpack.c.l.b16 %v560
    %v2176 = vunpack.c.l.b16 %v561
    %v2177 = vunpack.c.h.b16 %v561
    %v2178 = vunpack.c.l.b16 %v562
    %v2179 = vunpack.c.h.b16 %v562
    %v2180 = vunpack.c.l.b16 %v563
    %v2181 = vunpack.c.h.b16 %v563
    %v2182 = vunpack.c.l.b16 %v564
    %v2183 = vunpack.c.l.b16 %v565
    %v2184 = vunpack.c.h.b16 %v565
    %v2185 = vunpack.c.l.b16 %v566
    %v2186 = vunpack.c.h.b16 %v566
    %v2187 = vunpack.c.l.b16 %v567
    %v2188 = vunpack.c.h.b16 %v567
    %v2189 = vunpack.c.l.b16 %v568
    %v2190 = vunpack.c.l.b16 %v569
    %v2191 = vunpack.c.h.b16 %v569
    %v2192 = vunpack.c.l.b16 %v570
    %v2193 = vunpack.c.h.b16 %v570
    %v2194 = vunpack.c.l.b16 %v571
    %v2195 = vunpack.c.h.b16 %v571
    %v2196 = vunpack.c.l.b16 %v572
    %v2197 = vunpack.c.l.b16 %v573
    %v2198 = vunpack.c.h.b16 %v573
    %v2199 = vunpack.c.l.b16 %v574
    %v2200 = vunpack.c.h.b16 %v574
    %v2201 = vunpack.c.l.b16 %v575
    %v2202 = vunpack.c.h.b16 %v575
    %v2203 = vunpack.c.l.b16 %v576
    %v2204 = vunpack.c.l.b16 %v577
    %v2205 = vunpack.c.h.b16 %v577
    %v2206 = vunpack.c.l.b16 %v578
    %v2207 = vunpack.c.h.b16 %v578
    %v2208 = vunpack.c.l.b16 %v579
    %v2209 = vunpack.c.h.b16 %v579
    %v2210 = vunpack.c.l.b16 %v580
    %v2211 = vunpack.c.l.b16 %v581
    %v2212 = vunpack.c.h.b16 %v581
    %v2213 = vunpack.c.l.b16 %v582
    %v2214 = vunpack.c.h.b16 %v582
    %v2215 = vunpack.c.l.b16 %v583
    %v2216 = vunpack.c.h.b16 %v583
    %v2217 = vunpack.c.l.b16 %v584
    %v2218 = vunpack.c.l.b16 %v585
    %v2219 = vunpack.c.h.b16 %v585
    %v2220 = vunpack.c.l.b16 %v586
    %v2221 = vunpack.c.h.b16 %v586
    %v2222 = vunpack.c.l.b16 %v587
    %v2223 = vunpack.c.h.b16 %v587
    %v2224 = vunpack.c.l.b16 %v588
    %v2225 = vunpack.c.l.b16 %v589
    %v2226 = vunpack.c.h.b16 %v589
    %v2227 = vunpack.c.l.b16 %v590
    %v2228 = vunpack.c.h.b16 %v590
    %v2229 = vunpack.c.l.b16 %v591
    %v2230 = vunpack.c.h.b16 %v591
    %v2231 = vunpack.c.l.b16 %v592
    %v2232 = vunpack.c.l.b16 %v593
    %v2233 = vunpack.c.h.b16 %v593
    %v2234 = vunpack.c.l.b16 %v594
    %v2235 = vunpack.c.h.b16 %v594
    %v2236 = vunpack.c.l.b16 %v595
    %v2237 = vunpack.c.h.b16 %v595
    %v2238 = vunpack.c.l.b16 %v596
    %v2239 = vunpack.c.l.b16 %v597
    %v2240 = vunpack.c.h.b16 %v597
    %v2241 = vunpack.c.l.b16 %v598
    %v2242 = vunpack.c.h.b16 %v598
    %v2243 = vunpack.c.l.b16 %v599
    %v2244 = vunpack.c.h.b16 %v599
    %v2245 = vunpack.c.l.b16 %v600
    %v2246 = vunpack.c.l.b16 %v601
    %v2247 = vunpack.c.h.b16 %v601
    %v2248 = vunpack.c.l.b16 %v602
    %v2249 = vunpack.c.h.b16 %v602
    %v2250 = vunpack.c.l.b16 %v603
    %v2251 = vunpack.c.h.b16 %v603
    %v2252 = vunpack.c.l.b16 %v604
    %v2253 = vunpack.c.l.b16 %v605
    %v2254 = vunpack.c.h.b16 %v605
    %v2255 = vunpack.c.l.b16 %v606
    %v2256 = vunpack.c.h.b16 %v606
    %v2257 = vunpack.c.l.b16 %v607
    %v2258 = vunpack.c.h.b16 %v607
    %v2259 = vunpack.c.l.b16 %v608
    %v2260 = vunpack.c.l.b16 %v609
    %v2261 = vunpack.c.h.b16 %v609
    %v2262 = vunpack.c.l.b16 %v610
    %v2263 = vunpack.c.h.b16 %v610
    %v2264 = vunpack.c.l.b16 %v611
    %v2265 = vunpack.c.h.b16 %v611
    %v2266 = vunpack.c.l.b16 %v612
    %v2267 = vunpack.c.l.b16 %v613
    %v2268 = vunpack.c.h.b16 %v613
    %v2269 = vunpack.c.l.b16 %v614
    %v2270 = vunpack.c.h.b16 %v614
    %v2271 = vunpack.c.l.b16 %v615
    %v2272 = vunpack.c.h.b16 %v615
    %v2273 = vunpack.c.l.b16 %v616
    %v2274 = vunpack.c.l.b16 %v617
    %v2275 = vunpack.c.h.b16 %v617
    %v2276 = vunpack.c.l.b16 %v618
    %v2277 = vunpack.c.h.b16 %v618
    %v2278 = vunpack.c.l.b16 %v619
    %v2279 = vunpack.c.h.b16 %v619
    %v2280 = vunpack.c.l.b16 %v620
    %v2281 = vunpack.c.l.b16 %v621
    %v2282 = vunpack.c.h.b16 %v621
    %v2283 = vunpack.c.l.b16 %v622
    %v2284 = vunpack.c.h.b16 %v622
    %v2285 = vunpack.c.l.b16 %v623
    %v2286 = vunpack.c.h.b16 %v623
    %v2287 = vunpack.c.l.b16 %v624
    %v2288 = vunpack.c.l.b16 %v625
    %v2289 = vunpack.c.h.b16 %v625
    %v2290 = vunpack.c.l.b16 %v626
    %v2291 = vunpack.c.h.b16 %v626
    %v2292 = vunpack.c.l.b16 %v627
    %v2293 = vunpack.c.h.b16 %v627
    %v2294 = vunpack.c.l.b16 %v628
    %v2295 = vunpack.c.l.b16 %v629
    %v2296 = vunpack.c.h.b16 %v629
    %v2297 = vunpack.c.l.b16 %v630
    %v2298 = vunpack.c.h.b16 %v630
    %v2299 = vunpack.c.l.b16 %v631
    %v2300 = vunpack.c.h.b16 %v631
    %v2301 = vunpack.c.l.b16 %v632
    %v2302 = vunpack.c.l.b16 %v633
    %v2303 = vunpack.c.h.b16 %v633
    %v2304 = vunpack.c.l.b16 %v634
    %v2305 = vunpack.c.h.b16 %v634
    %v2306 = vunpack.c.l.b16 %v635
    %v2307 = vunpack.c.h.b16 %v635
    %v2308 = vunpack.c.l.b16 %v636
    %v2309 = vunpack.c.l.b16 %v637
    %v2310 = vunpack.c.h.b16 %v637
    %v2311 = vunpack.c.l.b16 %v638
    %v2312 = vunpack.c.h.b16 %v638
    %v2313 = vunpack.c.l.b16 %v639
    %v2314 = vunpack.c.h.b16 %v639
    %v2315 = vunpack.c.l.b16 %v640
    %v2316 = vunpack.c.l.b16 %v641
    %v2317 = vunpack.c.h.b16 %v641
    %v2318 = vunpack.c.l.b16 %v642
    %v2319 = vunpack.c.h.b16 %v642
    %v2320 = vunpack.c.l.b16 %v643
    %v2321 = vunpack.c.h.b16 %v643
    %v2322 = vunpack.c.l.b16 %v644
    %v2323 = vunpack.c.l.b16 %v645
    %v2324 = vunpack.c.h.b16 %v645
    %v2325 = vunpack.c.l.b16 %v646
    %v2326 = vunpack.c.h.b16 %v646
    %v2327 = vunpack.c.l.b16 %v647
    %v2328 = vunpack.c.h.b16 %v647
    %v2329 = vunpack.c.l.b16 %v648
    %v2330 = vunpack.c.l.b16 %v649
    %v2331 = vunpack.c.h.b16 %v649
    %v2332 = vunpack.c.l.b16 %v650
    %v2333 = vunpack.c.h.b16 %v650
    %v2334 = vunpack.c.l.b16 %v651
    %v2335 = vunpack.c.h.b16 %v651
    %v2336 = vunpack.c.l.b16 %v652
    %v2337 = vunpack.c.l.b16 %v653
    %v2338 = vunpack.c.h.b16 %v653
    %v2339 = vunpack.c.l.b16 %v654
    %v2340 = vunpack.c.h.b16 %v654
    %v2341 = vunpack.c.l.b16 %v655
    %v2342 = vunpack.c.h.b16 %v655
    %v2343 = vunpack.c.l.b16 %v656
    %v2344 = vpack.c.b16 %v1301, %v1294
    %v2345 = vpack.c.b16 %v1302, %v1295
    %v2346 = vpack.c.b16 %v1303, %v1296
    %v2347 = vpack.c.b16 %v1304, %v1297
    %v2348 = vpack.c.b16 %v1305, %v1298
    %v2349 = vpack.c.b16 %v1306, %v1299
    %v2350 = vpack.c.b16 %v1307, %v1300
    %v2351 = vpack.c.b16 %v1315, %v1308
    %v2352 = vpack.c.b16 %v1316, %v1309
    %v2353 = vpack.c.b16 %v1317, %v1310
    %v2354 = vpack.c.b16 %v1318, %v1311
    %v2355 = vpack.c.b16 %v1319, %v1312
    %v2356 = vpack.c.b16 %v1320, %v1313
    %v2357 = vpack.c.b16 %v1321, %v1314
    %v2358 = vpack.c.b16 %v1329, %v1322
    %v2359 = vpack.c.b16 %v1330, %v1323
    %v2360 = vpack.c.b16 %v1331, %v1324
    %v2361 = vpack.c.b16 %v1332, %v1325
    %v2362 = vpack.c.b16 %v1333, %v1326
    %v2363 = vpack.c.b16 %v1334, %v1327
    %v2364 = vpack.c.b16 %v1335, %v1328
    %v2365 = vpack.c.b16 %v1343, %v1336
    %v2366 = vpack.c.b16 %v1344, %v1337
    %v2367 = vpack.c.b16 %v1345, %v1338
    %v2368 = vpack.c.b16 %v1346, %v1339
    %v2369 = vpack.c.b16 %v1347, %v1340
    %v2370 = vpack.c.b16 %v1348, %v1341
    %v2371 = vpack.c.b16 %v1349, %v1342
    %v2372 = vpack.c.b16 %v1357, %v1350
    %v2373 = vpack.c.b16 %v1358, %v1351
    %v2374 = vpack.c.b16 %v1359, %v1352
    %v2375 = vpack.c.b16 %v1360, %v1353
    %v2376 = vpack.c.b16 %v1361, %v1354
    %v2377 = vpack.c.b16 %v1362, %v1355
    %v2378 = vpack.c.b16 %v1363, %v1356
    %v2379 = vpack.c.b16 %v1371, %v1364
    %v2380 = vpack.c.b16 %v1372, %v1365
    %v2381 = vpack.c.b16 %v1373, %v1366
    %v2382 = vpack.c.b16 %v1374, %v1367
    %v2383 = vpack.c.b16 %v1375, %v1368
    %v2384 = vpack.c.b16 %v1376, %v1369
    %v2385 = vpack.c.b16 %v1377, %v1370
    %v2386 = vpack.c.b16 %v1385, %v1378
    %v2387 = vpack.c.b16 %v1386, %v1379
    %v2388 = vpack.c.b16 %v1387, %v1380
    %v2389 = vpack.c.b16 %v1388, %v1381
    %v2390 = vpack.c.b16 %v1389, %v1382
    %v2391 = vpack.c.b16 %v1390, %v1383
    %v2392 = vpack.c.b16 %v1391, %v1384
    %v2393 = vpack.c.b16 %v1399, %v1392
    %v2394 = vpack.c.b16 %v1400, %v1393
    %v2395 = vpack.c.b16 %v1401, %v1394
    %v2396 = vpack.c.b16 %v1402, %v1395
    %v2397 = vpack.c.b16 %v1403, %v1396
    %v2398 = vpack.c.b16 %v1404, %v1397
    %v2399 = vpack.c.b16 %v1405, %v1398
    %v2400 = vpack.c.b16 %v1413, %v1406
    %v2401 = vpack.c.b16 %v1414, %v1407
    %v2402 = vpack.c.b16 %v1415, %v1408
    %v2403 = vpack.c.b16 %v1416, %v1409
    %v2404 = vpack.c.b16 %v1417, %v1410
    %v2405 = vpack.c.b16 %v1418, %v1411
    %v2406 = vpack.c.b16 %v1419, %v1412
    %v2407 = vpack.c.b16 %v1427, %v1420
    %v2408 = vpack.c.b16 %v1428, %v1421
    %v2409 = vpack.c.b16 %v1429, %v1422
    %v2410 = vpack.c.b16 %v1430, %v1423
    %v2411 = vpack.c.b16 %v1431, %v1424
    %v2412 = vpack.c.b16 %v1432, %v1425
    %v2413 = vpack.c.b16 %v1433, %v1426
    %v2414 = vpack.c.b16 %v1441, %v1434
    %v2415 = vpack.c.b16 %v1442, %v1435
    %v2416 = vpack.c.b16 %v1443, %v1436
    %v2417 = vpack.c.b16 %v1444, %v1437
    %v2418 = vpack.c.b16 %v1445, %v1438
    %v2419 = vpack.c.b16 %v1446, %v1439
    %v2420 = vpack.c.b16 %v1447, %v1440
    %v2421 = vpack.c.b16 %v1455, %v1448
    %v2422 = vpack.c.b16 %v1456, %v1449
    %v2423 = vpack.c.b16 %v1457, %v1450
    %v2424 = vpack.c.b16 %v1458, %v1451
    %v2425 = vpack.c.b16 %v1459, %v1452
    %v2426 = vpack.c.b16 %v1460, %v1453
    %v2427 = vpack.c.b16 %v1461, %v1454
    %v2428 = vpack.c.b16 %v1469, %v1462
    %v2429 = vpack.c.b16 %v1470, %v1463
    %v2430 = vpack.c.b16 %v1471, %v1464
    %v2431 = vpack.c.b16 %v1472, %v1465
    %v2432 = vpack.c.b16 %v1473, %v1466
    %v2433 = vpack.c.b16 %v1474, %v1467
    %v2434 = vpack.c.b16 %v1475, %v1468
    %v2435 = vpack.c.b16 %v1483, %v1476
    %v2436 = vpack.c.b16 %v1484, %v1477
    %v2437 = vpack.c.b16 %v1485, %v1478
    %v2438 = vpack.c.b16 %v1486, %v1479
    %v2439 = vpack.c.b16 %v1487, %v1480
    %v2440 = vpack.c.b16 %v1488, %v1481
    %v2441 = vpack.c.b16 %v1489, %v1482
    %v2442 = vpack.c.b16 %v1497, %v1490
    %v2443 = vpack.c.b16 %v1498, %v1491
    %v2444 = vpack.c.b16 %v1499, %v1492
    %v2445 = vpack.c.b16 %v1500, %v1493
    %v2446 = vpack.c.b16 %v1501, %v1494
    %v2447 = vpack.c.b16 %v1502, %v1495
    %v2448 = vpack.c.b16 %v1503, %v1496
    %v2449 = vpack.c.b16 %v1511, %v1504
    %v2450 = vpack.c.b16 %v1512, %v1505
    %v2451 = vpack.c.b16 %v1513, %v1506
    %v2452 = vpack.c.b16 %v1514, %v1507
    %v2453 = vpack.c.b16 %v1515, %v1508
    %v2454 = vpack.c.b16 %v1516, %v1509
    %v2455 = vpack.c.b16 %v1517, %v1510
    %v2456 = vpack.c.b16 %v1525, %v1518
    %v2457 = vpack.c.b16 %v1526, %v1519
    %v2458 = vpack.c.b16 %v1527, %v1520
    %v2459 = vpack.c.b16 %v1528, %v1521
    %v2460 = vpack.c.b16 %v1529, %v1522
    %v2461 = vpack.c.b16 %v1530, %v1523
    %v2462 = vpack.c.b16 %v1531, %v1524
    %v2463 = vpack.c.b16 %v1539, %v1532
    %v2464 = vpack.c.b16 %v1540, %v1533
    %v2465 = vpack.c.b16 %v1541, %v1534
    %v2466 = vpack.c.b16 %v1542, %v1535
    %v2467 = vpack.c.b16 %v1543, %v1536
    %v2468 = vpack.c.b16 %v1544, %v1537
    %v2469 = vpack.c.b16 %v1545, %v1538
    %v2470 = vpack.c.b16 %v1553, %v1546
    %v2471 = vpack.c.b16 %v1554, %v1547
    %v2472 = vpack.c.b16 %v1555, %v1548
    %v2473 = vpack.c.b16 %v1556, %v1549
    %v2474 = vpack.c.b16 %v1557, %v1550
    %v2475 = vpack.c.b16 %v1558, %v1551
    %v2476 = vpack.c.b16 %v1559, %v1552
    %v2477 = vpack.c.b16 %v1567, %v1560
    %v2478 = vpack.c.b16 %v1568, %v1561
    %v2479 = vpack.c.b16 %v1569, %v1562
    %v2480 = vpack.c.b16 %v1570, %v1563
    %v2481 = vpack.c.b16 %v1571, %v1564
    %v2482 = vpack.c.b16 %v1572, %v1565
    %v2483 = vpack.c.b16 %v1573, %v1566
    %v2484 = vpack.c.b16 %v1581, %v1574
    %v2485 = vpack.c.b16 %v1582, %v1575
    %v2486 = vpack.c.b16 %v1583, %v1576
    %v2487 = vpack.c.b16 %v1584, %v1577
    %v2488 = vpack.c.b16 %v1585, %v1578
    %v2489 = vpack.c.b16 %v1586, %v1579
    %v2490 = vpack.c.b16 %v1587, %v1580
    %v2491 = vpack.c.b16 %v1595, %v1588
    %v2492 = vpack.c.b16 %v1596, %v1589
    %v2493 = vpack.c.b16 %v1597, %v1590
    %v2494 = vpack.c.b16 %v1598, %v1591
    %v2495 = vpack.c.b16 %v1599, %v1592
    %v2496 = vpack.c.b16 %v1600, %v1593
    %v2497 = vpack.c.b16 %v1601, %v1594
    %v2498 = vpack.c.b16 %v1609, %v1602
    %v2499 = vpack.c.b16 %v1610, %v1603
    %v2500 = vpack.c.b16 %v1611, %v1604
    %v2501 = vpack.c.b16 %v1612, %v1605
    %v2502 = vpack.c.b16 %v1613, %v1606
    %v2503 = vpack.c.b16 %v1614, %v1607
    %v2504 = vpack.c.b16 %v1615, %v1608
    %v2505 = vpack.c.b16 %v1623, %v1616
    %v2506 = vpack.c.b16 %v1624, %v1617
    %v2507 = vpack.c.b16 %v1625, %v1618
    %v2508 = vpack.c.b16 %v1626, %v1619
    %v2509 = vpack.c.b16 %v1627, %v1620
    %v2510 = vpack.c.b16 %v1628, %v1621
    %v2511 = vpack.c.b16 %v1629, %v1622
    %v2512 = vpack.c.b16 %v1637, %v1630
    %v2513 = vpack.c.b16 %v1638, %v1631
    %v2514 = vpack.c.b16 %v1639, %v1632
    %v2515 = vpack.c.b16 %v1640, %v1633
    %v2516 = vpack.c.b16 %v1641, %v1634
    %v2517 = vpack.c.b16 %v1642, %v1635
    %v2518 = vpack.c.b16 %v1643, %v1636
    %v2519 = vpack.c.b16 %v1651, %v1644
    %v2520 = vpack.c.b16 %v1652, %v1645
    %v2521 = vpack.c.b16 %v1653, %v1646
    %v2522 = vpack.c.b16 %v1654, %v1647
    %v2523 = vpack.c.b16 %v1655, %v1648
    %v2524 = vpack.c.b16 %v1656, %v1649
    %v2525 = vpack.c.b16 %v1657, %v1650
    %v2526 = vpack.c.b16 %v1665, %v1658
    %v2527 = vpack.c.b16 %v1666, %v1659
    %v2528 = vpack.c.b16 %v1667, %v1660
    %v2529 = vpack.c.b16 %v1668, %v1661
    %v2530 = vpack.c.b16 %v1669, %v1662
    %v2531 = vpack.c.b16 %v1670, %v1663
    %v2532 = vpack.c.b16 %v1671, %v1664
    %v2533 = vpack.c.b16 %v1679, %v1672
    %v2534 = vpack.c.b16 %v1680, %v1673
    %v2535 = vpack.c.b16 %v1681, %v1674
    %v2536 = vpack.c.b16 %v1682, %v1675
    %v2537 = vpack.c.b16 %v1683, %v1676
    %v2538 = vpack.c.b16 %v1684, %v1677
    %v2539 = vpack.c.b16 %v1685, %v1678
    %v2540 = vpack.c.b16 %v1693, %v1686
    %v2541 = vpack.c.b16 %v1694, %v1687
    %v2542 = vpack.c.b16 %v1695, %v1688
    %v2543 = vpack.c.b16 %v1696, %v1689
    %v2544 = vpack.c.b16 %v1697, %v1690
    %v2545 = vpack.c.b16 %v1698, %v1691
    %v2546 = vpack.c.b16 %v1699, %v1692
    %v2547 = vpack.c.b16 %v1707, %v1700
    %v2548 = vpack.c.b16 %v1708, %v1701
    %v2549 = vpack.c.b16 %v1709, %v1702
    %v2550 = vpack.c.b16 %v1710, %v1703
    %v2551 = vpack.c.b16 %v1711, %v1704
    %v2552 = vpack.c.b16 %v1712, %v1705
    %v2553 = vpack.c.b16 %v1713, %v1706
    %v2554 = vpack.c.b16 %v1721, %v1714
    %v2555 = vpack.c.b16 %v1722, %v1715
    %v2556 = vpack.c.b16 %v1723, %v1716
    %v2557 = vpack.c.b16 %v1724, %v1717
    %v2558 = vpack.c.b16 %v1725, %v1718
    %v2559 = vpack.c.b16 %v1726, %v1719
    %v2560 = vpack.c.b16 %v1727, %v1720
    %v2561 = vpack.c.b16 %v1735, %v1728
    %v2562 = vpack.c.b16 %v1736, %v1729
    %v2563 = vpack.c.b16 %v1737, %v1730
    %v2564 = vpack.c.b16 %v1738, %v1731
    %v2565 = vpack.c.b16 %v1739, %v1732
    %v2566 = vpack.c.b16 %v1740, %v1733
    %v2567 = vpack.c.b16 %v1741, %v1734
    %v2568 = vpack.c.b16 %v1749, %v1742
    %v2569 = vpack.c.b16 %v1750, %v1743
    %v2570 = vpack.c.b16 %v1751, %v1744
    %v2571 = vpack.c.b16 %v1752, %v1745
    %v2572 = vpack.c.b16 %v1753, %v1746
    %v2573 = vpack.c.b16 %v1754, %v1747
    %v2574 = vpack.c.b16 %v1755, %v1748
    %v2575 = vpack.c.b16 %v1763, %v1756
    %v2576 = vpack.c.b16 %v1764, %v1757
    %v2577 = vpack.c.b16 %v1765, %v1758
    %v2578 = vpack.c.b16 %v1766, %v1759
    %v2579 = vpack.c.b16 %v1767, %v1760
    %v2580 = vpack.c.b16 %v1768, %v1761
    %v2581 = vpack.c.b16 %v1769, %v1762
    %v2582 = vpack.c.b16 %v1777, %v1770
    %v2583 = vpack.c.b16 %v1778, %v1771
    %v2584 = vpack.c.b16 %v1779, %v1772
    %v2585 = vpack.c.b16 %v1780, %v1773
    %v2586 = vpack.c.b16 %v1781, %v1774
    %v2587 = vpack.c.b16 %v1782, %v1775
    %v2588 = vpack.c.b16 %v1783, %v1776
    %v2589 = vpack.c.b16 %v1791, %v1784
    %v2590 = vpack.c.b16 %v1792, %v1785
    %v2591 = vpack.c.b16 %v1793, %v1786
    %v2592 = vpack.c.b16 %v1794, %v1787
    %v2593 = vpack.c.b16 %v1795, %v1788
    %v2594 = vpack.c.b16 %v1796, %v1789
    %v2595 = vpack.c.b16 %v1797, %v1790
    %v2596 = vpack.c.b16 %v1805, %v1798
    %v2597 = vpack.c.b16 %v1806, %v1799
    %v2598 = vpack.c.b16 %v1807, %v1800
    %v2599 = vpack.c.b16 %v1808, %v1801
    %v2600 = vpack.c.b16 %v1809, %v1802
    %v2601 = vpack.c.b16 %v1810, %v1803
    %v2602 = vpack.c.b16 %v1811, %v1804
    %v2603 = vpack.c.b16 %v1819, %v1812
    %v2604 = vpack.c.b16 %v1820, %v1813
    %v2605 = vpack.c.b16 %v1821, %v1814
    %v2606 = vpack.c.b16 %v1822, %v1815
    %v2607 = vpack.c.b16 %v1823, %v1816
    %v2608 = vpack.c.b16 %v1824, %v1817
    %v2609 = vpack.c.b16 %v1825, %v1818
    %v2610 = vpack.c.b16 %v1833, %v1826
    %v2611 = vpack.c.b16 %v1834, %v1827
    %v2612 = vpack.c.b16 %v1835, %v1828
    %v2613 = vpack.c.b16 %v1836, %v1829
    %v2614 = vpack.c.b16 %v1837, %v1830
    %v2615 = vpack.c.b16 %v1838, %v1831
    %v2616 = vpack.c.b16 %v1839, %v1832
    %v2617 = vpack.c.b16 %v1847, %v1840
    %v2618 = vpack.c.b16 %v1848, %v1841
    %v2619 = vpack.c.b16 %v1849, %v1842
    %v2620 = vpack.c.b16 %v1850, %v1843
    %v2621 = vpack.c.b16 %v1851, %v1844
    %v2622 = vpack.c.b16 %v1852, %v1845
    %v2623 = vpack.c.b16 %v1853, %v1846
    %v2624 = vpack.c.b16 %v1861, %v1854
    %v2625 = vpack.c.b16 %v1862, %v1855
    %v2626 = vpack.c.b16 %v1863, %v1856
    %v2627 = vpack.c.b16 %v1864, %v1857
    %v2628 = vpack.c.b16 %v1865, %v1858
    %v2629 = vpack.c.b16 %v1866, %v1859
    %v2630 = vpack.c.b16 %v1867, %v1860
    %v2631 = vpack.c.b16 %v1875, %v1868
    %v2632 = vpack.c.b16 %v1876, %v1869
    %v2633 = vpack.c.b16 %v1877, %v1870
    %v2634 = vpack.c.b16 %v1878, %v1871
    %v2635 = vpack.c.b16 %v1879, %v1872
    %v2636 = vpack.c.b16 %v1880, %v1873
    %v2637 = vpack.c.b16 %v1881, %v1874
    %v2638 = vpack.c.b16 %v1889, %v1882
    %v2639 = vpack.c.b16 %v1890, %v1883
    %v2640 = vpack.c.b16 %v1891, %v1884
    %v2641 = vpack.c.b16 %v1892, %v1885
    %v2642 = vpack.c.b16 %v1893, %v1886
    %v2643 = vpack.c.b16 %v1894, %v1887
    %v2644 = vpack.c.b16 %v1895, %v1888
    %v2645 = vpack.c.b16 %v1903, %v1896
    %v2646 = vpack.c.b16 %v1904, %v1897
    %v2647 = vpack.c.b16 %v1905, %v1898
    %v2648 = vpack.c.b16 %v1906, %v1899
    %v2649 = vpack.c.b16 %v1907, %v1900
    %v2650 = vpack.c.b16 %v1908, %v1901
    %v2651 = vpack.c.b16 %v1909, %v1902
    %v2652 = vpack.c.b16 %v1917, %v1910
    %v2653 = vpack.c.b16 %v1918, %v1911
    %v2654 = vpack.c.b16 %v1919, %v1912
    %v2655 = vpack.c.b16 %v1920, %v1913
    %v2656 = vpack.c.b16 %v1921, %v1914
    %v2657 = vpack.c.b16 %v1922, %v1915
    %v2658 = vpack.c.b16 %v1923, %v1916
    %v2659 = vpack.c.b16 %v1931, %v1924
    %v2660 = vpack.c.b16 %v1932, %v1925
    %v2661 = vpack.c.b16 %v1933, %v1926
    %v2662 = vpack.c.b16 %v1934, %v1927
    %v2663 = vpack.c.b16 %v1935, %v1928
    %v2664 = vpack.c.b16 %v1936, %v1929
    %v2665 = vpack.c.b16 %v1937, %v1930
    %v2666 = vpack.c.b16 %v1945, %v1938
    %v2667 = vpack.c.b16 %v1946, %v1939
    %v2668 = vpack.c.b16 %v1947, %v1940
    %v2669 = vpack.c.b16 %v1948, %v1941
    %v2670 = vpack.c.b16 %v1949, %v1942
    %v2671 = vpack.c.b16 %v1950, %v1943
    %v2672 = vpack.c.b16 %v1951, %v1944
    %v2673 = vpack.c.b16 %v1959, %v1952
    %v2674 = vpack.c.b16 %v1960, %v1953
    %v2675 = vpack.c.b16 %v1961, %v1954
    %v2676 = vpack.c.b16 %v1962, %v1955
    %v2677 = vpack.c.b16 %v1963, %v1956
    %v2678 = vpack.c.b16 %v1964, %v1957
    %v2679 = vpack.c.b16 %v1965, %v1958
    %v2680 = vpack.c.b16 %v1973, %v1966
    %v2681 = vpack.c.b16 %v1974, %v1967
    %v2682 = vpack.c.b16 %v1975, %v1968
    %v2683 = vpack.c.b16 %v1976, %v1969
    %v2684 = vpack.c.b16 %v1977, %v1970
    %v2685 = vpack.c.b16 %v1978, %v1971
    %v2686 = vpack.c.b16 %v1979, %v1972
    %v2687 = vpack.c.b16 %v1987, %v1980
    %v2688 = vpack.c.b16 %v1988, %v1981
    %v2689 = vpack.c.b16 %v1989, %v1982
    %v2690 = vpack.c.b16 %v1990, %v1983
    %v2691 = vpack.c.b16 %v1991, %v1984
    %v2692 = vpack.c.b16 %v1992, %v1985
    %v2693 = vpack.c.b16 %v1993, %v1986
    %v2694 = vpack.c.b16 %v2001, %v1994
    %v2695 = vpack.c.b16 %v2002, %v1995
    %v2696 = vpack.c.b16 %v2003, %v1996
    %v2697 = vpack.c.b16 %v2004, %v1997
    %v2698 = vpack.c.b16 %v2005, %v1998
    %v2699 = vpack.c.b16 %v2006, %v1999
    %v2700 = vpack.c.b16 %v2007, %v2000
    %v2701 = vpack.c.b16 %v2015, %v2008
    %v2702 = vpack.c.b16 %v2016, %v2009
    %v2703 = vpack.c.b16 %v2017, %v2010
    %v2704 = vpack.c.b16 %v2018, %v2011
    %v2705 = vpack.c.b16 %v2019, %v2012
    %v2706 = vpack.c.b16 %v2020, %v2013
    %v2707 = vpack.c.b16 %v2021, %v2014
    %v2708 = vpack.c.b16 %v2029, %v2022
    %v2709 = vpack.c.b16 %v2030, %v2023
    %v2710 = vpack.c.b16 %v2031, %v2024
    %v2711 = vpack.c.b16 %v2032, %v2025
    %v2712 = vpack.c.b16 %v2033, %v2026
    %v2713 = vpack.c.b16 %v2034, %v2027
    %v2714 = vpack.c.b16 %v2035, %v2028
    %v2715 = vpack.c.b16 %v2043, %v2036
    %v2716 = vpack.c.b16 %v2044, %v2037
    %v2717 = vpack.c.b16 %v2045, %v2038
    %v2718 = vpack.c.b16 %v2046, %v2039
    %v2719 = vpack.c.b16 %v2047, %v2040
    %v2720 = vpack.c.b16 %v2048, %v2041
    %v2721 = vpack.c.b16 %v2049, %v2042
    %v2722 = vpack.c.b16 %v2057, %v2050
    %v2723 = vpack.c.b16 %v2058, %v2051
    %v2724 = vpack.c.b16 %v2059, %v2052
    %v2725 = vpack.c.b16 %v2060, %v2053
    %v2726 = vpack.c.b16 %v2061, %v2054
    %v2727 = vpack.c.b16 %v2062, %v2055
    %v2728 = vpack.c.b16 %v2063, %v2056
    %v2729 = vpack.c.b16 %v2071, %v2064
    %v2730 = vpack.c.b16 %v2072, %v2065
    %v2731 = vpack.c.b16 %v2073, %v2066
    %v2732 = vpack.c.b16 %v2074, %v2067
    %v2733 = vpack.c.b16 %v2075, %v2068
    %v2734 = vpack.c.b16 %v2076, %v2069
    %v2735 = vpack.c.b16 %v2077, %v2070
    %v2736 = vpack.c.b16 %v2085, %v2078
    %v2737 = vpack.c.b16 %v2086, %v2079
    %v2738 = vpack.c.b16 %v2087, %v2080
    %v2739 = vpack.c.b16 %v2088, %v2081
    %v2740 = vpack.c.b16 %v2089, %v2082
    %v2741 = vpack.c.b16 %v2090, %v2083
    %v2742 = vpack.c.b16 %v2091, %v2084
    %v2743 = vpack.c.b16 %v2099, %v2092
    %v2744 = vpack.c.b16 %v2100, %v2093
    %v2745 = vpack.c.b16 %v2101, %v2094
    %v2746 = vpack.c.b16 %v2102, %v2095
    %v2747 = vpack.c.b16 %v2103, %v2096
    %v2748 = vpack.c.b16 %v2104, %v2097
    %v2749 = vpack.c.b16 %v2105, %v2098
    %v2750 = vpack.c.b16 %v2113, %v2106
    %v2751 = vpack.c.b16 %v2114, %v2107
    %v2752 = vpack.c.b16 %v2115, %v2108
    %v2753 = vpack.c.b16 %v2116, %v2109
    %v2754 = vpack.c.b16 %v2117, %v2110
    %v2755 = vpack.c.b16 %v2118, %v2111
    %v2756 = vpack.c.b16 %v2119, %v2112
    %v2757 = vpack.c.b16 %v2127, %v2120
    %v2758 = vpack.c.b16 %v2128, %v2121
    %v2759 = vpack.c.b16 %v2129, %v2122
    %v2760 = vpack.c.b16 %v2130, %v2123
    %v2761 = vpack.c.b16 %v2131, %v2124
    %v2762 = vpack.c.b16 %v2132, %v2125
    %v2763 = vpack.c.b16 %v2133, %v2126
    %v2764 = vpack.c.b16 %v2141, %v2134
    %v2765 = vpack.c.b16 %v2142, %v2135
    %v2766 = vpack.c.b16 %v2143, %v2136
    %v2767 = vpack.c.b16 %v2144, %v2137
    %v2768 = vpack.c.b16 %v2145, %v2138
    %v2769 = vpack.c.b16 %v2146, %v2139
    %v2770 = vpack.c.b16 %v2147, %v2140
    %v2771 = vpack.c.b16 %v2155, %v2148
    %v2772 = vpack.c.b16 %v2156, %v2149
    %v2773 = vpack.c.b16 %v2157, %v2150
    %v2774 = vpack.c.b16 %v2158, %v2151
    %v2775 = vpack.c.b16 %v2159, %v2152
    %v2776 = vpack.c.b16 %v2160, %v2153
    %v2777 = vpack.c.b16 %v2161, %v2154
    %v2778 = vpack.c.b16 %v2169, %v2162
    %v2779 = vpack.c.b16 %v2170, %v2163
    %v2780 = vpack.c.b16 %v2171, %v2164
    %v2781 = vpack.c.b16 %v2172, %v2165
    %v2782 = vpack.c.b16 %v2173, %v2166
    %v2783 = vpack.c.b16 %v2174, %v2167
    %v2784 = vpack.c.b16 %v2175, %v2168
    %v2785 = vpack.c.b16 %v2183, %v2176
    %v2786 = vpack.c.b16 %v2184, %v2177
    %v2787 = vpack.c.b16 %v2185, %v2178
    %v2788 = vpack.c.b16 %v2186, %v2179
    %v2789 = vpack.c.b16 %v2187, %v2180
    %v2790 = vpack.c.b16 %v2188, %v2181
    %v2791 = vpack.c.b16 %v2189, %v2182
    %v2792 = vpack.c.b16 %v2197, %v2190
    %v2793 = vpack.c.b16 %v2198, %v2191
    %v2794 = vpack.c.b16 %v2199, %v2192
    %v2795 = vpack.c.b16 %v2200, %v2193
    %v2796 = vpack.c.b16 %v2201, %v2194
    %v2797 = vpack.c.b16 %v2202, %v2195
    %v2798 = vpack.c.b16 %v2203, %v2196
    %v2799 = vpack.c.b16 %v2211, %v2204
    %v2800 = vpack.c.b16 %v2212, %v2205
    %v2801 = vpack.c.b16 %v2213, %v2206
    %v2802 = vpack.c.b16 %v2214, %v2207
    %v2803 = vpack.c.b16 %v2215, %v2208
    %v2804 = vpack.c.b16 %v2216, %v2209
    %v2805 = vpack.c.b16 %v2217, %v2210
    %v2806 = vpack.c.b16 %v2225, %v2218
    %v2807 = vpack.c.b16 %v2226, %v2219
    %v2808 = vpack.c.b16 %v2227, %v2220
    %v2809 = vpack.c.b16 %v2228, %v2221
    %v2810 = vpack.c.b16 %v2229, %v2222
    %v2811 = vpack.c.b16 %v2230, %v2223
    %v2812 = vpack.c.b16 %v2231, %v2224
    %v2813 = vpack.c.b16 %v2239, %v2232
    %v2814 = vpack.c.b16 %v2240, %v2233
    %v2815 = vpack.c.b16 %v2241, %v2234
    %v2816 = vpack.c.b16 %v2242, %v2235
    %v2817 = vpack.c.b16 %v2243, %v2236
    %v2818 = vpack.c.b16 %v2244, %v2237
    %v2819 = vpack.c.b16 %v2245, %v2238
    %v2820 = vpack.c.b16 %v2253, %v2246
    %v2821 = vpack.c.b16 %v2254, %v2247
    %v2822 = vpack.c.b16 %v2255, %v2248
    %v2823 = vpack.c.b16 %v2256, %v2249
    %v2824 = vpack.c.b16 %v2257, %v2250
    %v2825 = vpack.c.b16 %v2258, %v2251
    %v2826 = vpack.c.b16 %v2259, %v2252
    %v2827 = vpack.c.b16 %v2267, %v2260
    %v2828 = vpack.c.b16 %v2268, %v2261
    %v2829 = vpack.c.b16 %v2269, %v2262
    %v2830 = vpack.c.b16 %v2270, %v2263
    %v2831 = vpack.c.b16 %v2271, %v2264
    %v2832 = vpack.c.b16 %v2272, %v2265
    %v2833 = vpack.c.b16 %v2273, %v2266
    %v2834 = vpack.c.b16 %v2281, %v2274
    %v2835 = vpack.c.b16 %v2282, %v2275
    %v2836 = vpack.c.b16 %v2283, %v2276
    %v2837 = vpack.c.b16 %v2284, %v2277
    %v2838 = vpack.c.b16 %v2285, %v2278
    %v2839 = vpack.c.b16 %v2286, %v2279
    %v2840 = vpack.c.b16 %v2287, %v2280
    %v2841 = vpack.c.b16 %v2295, %v2288
    %v2842 = vpack.c.b16 %v2296, %v2289
    %v2843 = vpack.c.b16 %v2297, %v2290
    %v2844 = vpack.c.b16 %v2298, %v2291
    %v2845 = vpack.c.b16 %v2299, %v2292
    %v2846 = vpack.c.b16 %v2300, %v2293
    %v2847 = vpack.c.b16 %v2301, %v2294
    %v2848 = vpack.c.b16 %v2309, %v2302
    %v2849 = vpack.c.b16 %v2310, %v2303
    %v2850 = vpack.c.b16 %v2311, %v2304
    %v2851 = vpack.c.b16 %v2312, %v2305
    %v2852 = vpack.c.b16 %v2313, %v2306
    %v2853 = vpack.c.b16 %v2314, %v2307
    %v2854 = vpack.c.b16 %v2315, %v2308
    %v2855 = vpack.c.b16 %v2323, %v2316
    %v2856 = vpack.c.b16 %v2324, %v2317
    %v2857 = vpack.c.b16 %v2325, %v2318
    %v2858 = vpack.c.b16 %v2326, %v2319
    %v2859 = vpack.c.b16 %v2327, %v2320
    %v2860 = vpack.c.b16 %v2328, %v2321
    %v2861 = vpack.c.b16 %v2329, %v2322
    %v2862 = vpack.c.b16 %v2337, %v2330
    %v2863 = vpack.c.b16 %v2338, %v2331
    %v2864 = vpack.c.b16 %v2339, %v2332
    %v2865 = vpack.c.b16 %v2340, %v2333
    %v2866 = vpack.c.b16 %v2341, %v2334
    %v2867 = vpack.c.b16 %v2342, %v2335
    %v2868 = vpack.c.b16 %v2343, %v2336
    %vm3394 = vcmask 392192
    %v3396 = vsel %vm3394, %v56, 0
    %3398 = vmatprep.subr.bf16.mxu0 %v2394
    %3399 = vmatpush1.bf16.msra.mxu0 %v2393
    %3400 = vmatprep.subr.bf16.mxu0 %v2387
    %3401 = vmatpush1.bf16.msra.mxu0 %v2386
    %3402 = vmatprep.subr.bf16.mxu0 %v2380
    %3403 = vmatpush1.bf16.msra.mxu0 %v2379
    %3404 = vmatprep.subr.bf16.mxu0 %v2373
    %3405 = vmatpush1.bf16.msra.mxu0 %v2372
    %3406 = vmatprep.subr.bf16.mxu0 %v2366
    %3407 = vmatpush1.bf16.msra.mxu0 %v2365
    %3408 = vmatprep.subr.bf16.mxu0 %v2359
    %3409 = vmatpush1.bf16.msra.mxu0 %v2358
    %3410 = vmatprep.subr.bf16.mxu0 %v2352
    %3411 = vmatpush1.bf16.msra.mxu0 %v2351
    %3412 = vmatprep.subr.bf16.mxu0 %v2345
    %3413 = vmatpush1.bf16.msra.mxu0 %v2344
    %3414 = vmatprep.subr.bf16.mxu0 %v2450
    %3415 = vmatpush2.bf16.msra.mxu0 %v2449
    %3416 = vmatprep.subr.bf16.mxu0 %v2443
    %3417 = vmatpush2.bf16.msra.mxu0 %v2442
    %3418 = vmatprep.subr.bf16.mxu0 %v2436
    %3419 = vmatpush2.bf16.msra.mxu0 %v2435
    %3420 = vmatprep.subr.bf16.mxu0 %v2429
    %3421 = vmatpush2.bf16.msra.mxu0 %v2428
    %3422 = vmatprep.subr.bf16.mxu0 %v2422
    %3423 = vmatpush2.bf16.msra.mxu0 %v2421
    %3424 = vmatprep.subr.bf16.mxu0 %v2415
    %3425 = vmatpush2.bf16.msra.mxu0 %v2414
    %3426 = vmatprep.subr.bf16.mxu0 %v2408
    %3427 = vmatpush2.bf16.msra.mxu0 %v2407
    %3428 = vmatprep.subr.bf16.mxu0 %v2401
    %3429 = vmatpush2.bf16.msra.mxu0 %v2400
    %3430 = vmatprep.mubr.bf16.mxu0 %v48
    %3431 = vmatmul.mubr.bf16.gmra.mxu0 %v47
    %v3432 = vpop.f32.mrf.mxu0
    %v3433 = vadd.f32 %v662, %v3432
    %v3434 = vpop.f32.mrf.mxu0
    %v3435 = vadd.f32 %v666, %v3434
    %v3436 = vpop.f32.mrf.mxu0
    %v3437 = vpop.f32.mrf.mxu0
    %3438 = vdwg.mxu0
    %3439 = vmatprep.subr.bf16.mxu0 %v2506
    %3440 = vmatpush1.bf16.msra.mxu0 %v2505
    %3441 = vmatprep.subr.bf16.mxu0 %v2499
    %3442 = vmatpush1.bf16.msra.mxu0 %v2498
    %3443 = vmatprep.subr.bf16.mxu0 %v2492
    %3444 = vmatpush1.bf16.msra.mxu0 %v2491
    %3445 = vmatprep.subr.bf16.mxu0 %v2485
    %3446 = vmatpush1.bf16.msra.mxu0 %v2484
    %3447 = vmatprep.subr.bf16.mxu0 %v2478
    %3448 = vmatpush1.bf16.msra.mxu0 %v2477
    %3449 = vmatprep.subr.bf16.mxu0 %v2471
    %3450 = vmatpush1.bf16.msra.mxu0 %v2470
    %3451 = vmatprep.subr.bf16.mxu0 %v2464
    %3452 = vmatpush1.bf16.msra.mxu0 %v2463
    %3453 = vmatprep.subr.bf16.mxu0 %v2457
    %3454 = vmatpush1.bf16.msra.mxu0 %v2456
    %3455 = vmatprep.subr.bf16.mxu0 %v2562
    %3456 = vmatpush2.bf16.msra.mxu0 %v2561
    %3457 = vmatprep.subr.bf16.mxu0 %v2555
    %3458 = vmatpush2.bf16.msra.mxu0 %v2554
    %3459 = vmatprep.subr.bf16.mxu0 %v2548
    %3460 = vmatpush2.bf16.msra.mxu0 %v2547
    %3461 = vmatprep.subr.bf16.mxu0 %v2541
    %3462 = vmatpush2.bf16.msra.mxu0 %v2540
    %3463 = vmatprep.subr.bf16.mxu0 %v2534
    %3464 = vmatpush2.bf16.msra.mxu0 %v2533
    %3465 = vmatprep.subr.bf16.mxu0 %v2527
    %3466 = vmatpush2.bf16.msra.mxu0 %v2526
    %3467 = vmatprep.subr.bf16.mxu0 %v2520
    %3468 = vmatpush2.bf16.msra.mxu0 %v2519
    %3469 = vmatprep.subr.bf16.mxu0 %v2513
    %3470 = vmatpush2.bf16.msra.mxu0 %v2512
    %3471 = vmatprep.mubr.bf16.mxu0 %v50
    %3472 = vmatmul.mubr.bf16.gmra.mxu0 %v49
    %v3473 = vpop.f32.mrf.mxu0
    %v3474 = vadd.f32 %v3433, %v3473
    %v3475 = vpop.f32.mrf.mxu0
    %v3476 = vadd.f32 %v3435, %v3475
    %v3477 = vpop.f32.mrf.mxu0
    %v3478 = vpop.f32.mrf.mxu0
    %3479 = vdwg.mxu0
    %3480 = vmatprep.subr.bf16.mxu0 %v2618
    %3481 = vmatpush1.bf16.msra.mxu0 %v2617
    %3482 = vmatprep.subr.bf16.mxu0 %v2611
    %3483 = vmatpush1.bf16.msra.mxu0 %v2610
    %3484 = vmatprep.subr.bf16.mxu0 %v2604
    %3485 = vmatpush1.bf16.msra.mxu0 %v2603
    %3486 = vmatprep.subr.bf16.mxu0 %v2597
    %3487 = vmatpush1.bf16.msra.mxu0 %v2596
    %3488 = vmatprep.subr.bf16.mxu0 %v2590
    %3489 = vmatpush1.bf16.msra.mxu0 %v2589
    %3490 = vmatprep.subr.bf16.mxu0 %v2583
    %3491 = vmatpush1.bf16.msra.mxu0 %v2582
    %3492 = vmatprep.subr.bf16.mxu0 %v2576
    %3493 = vmatpush1.bf16.msra.mxu0 %v2575
    %3494 = vmatprep.subr.bf16.mxu0 %v2569
    %3495 = vmatpush1.bf16.msra.mxu0 %v2568
    %3496 = vmatprep.subr.bf16.mxu0 %v2674
    %3497 = vmatpush2.bf16.msra.mxu0 %v2673
    %3498 = vmatprep.subr.bf16.mxu0 %v2667
    %3499 = vmatpush2.bf16.msra.mxu0 %v2666
    %3500 = vmatprep.subr.bf16.mxu0 %v2660
    %3501 = vmatpush2.bf16.msra.mxu0 %v2659
    %3502 = vmatprep.subr.bf16.mxu0 %v2653
    %3503 = vmatpush2.bf16.msra.mxu0 %v2652
    %3504 = vmatprep.subr.bf16.mxu0 %v2646
    %3505 = vmatpush2.bf16.msra.mxu0 %v2645
    %3506 = vmatprep.subr.bf16.mxu0 %v2639
    %3507 = vmatpush2.bf16.msra.mxu0 %v2638
    %3508 = vmatprep.subr.bf16.mxu0 %v2632
    %3509 = vmatpush2.bf16.msra.mxu0 %v2631
    %3510 = vmatprep.subr.bf16.mxu0 %v2625
    %3511 = vmatpush2.bf16.msra.mxu0 %v2624
    %3512 = vmatprep.mubr.bf16.mxu0 %v52
    %3513 = vmatmul.mubr.bf16.gmra.mxu0 %v51
    %v3514 = vpop.f32.mrf.mxu0
    %v3515 = vadd.f32 %v3474, %v3514
    %v3516 = vpop.f32.mrf.mxu0
    %v3517 = vadd.f32 %v3476, %v3516
    %v3518 = vpop.f32.mrf.mxu0
    %v3519 = vpop.f32.mrf.mxu0
    %3520 = vdwg.mxu0
    %3521 = vmatprep.subr.bf16.mxu0 %v2730
    %3522 = vmatpush1.bf16.msra.mxu0 %v2729
    %3523 = vmatprep.subr.bf16.mxu0 %v2723
    %3524 = vmatpush1.bf16.msra.mxu0 %v2722
    %3525 = vmatprep.subr.bf16.mxu0 %v2716
    %3526 = vmatpush1.bf16.msra.mxu0 %v2715
    %3527 = vmatprep.subr.bf16.mxu0 %v2709
    %3528 = vmatpush1.bf16.msra.mxu0 %v2708
    %3529 = vmatprep.subr.bf16.mxu0 %v2702
    %3530 = vmatpush1.bf16.msra.mxu0 %v2701
    %3531 = vmatprep.subr.bf16.mxu0 %v2695
    %3532 = vmatpush1.bf16.msra.mxu0 %v2694
    %3533 = vmatprep.subr.bf16.mxu0 %v2688
    %3534 = vmatpush1.bf16.msra.mxu0 %v2687
    %3535 = vmatprep.subr.bf16.mxu0 %v2681
    %3536 = vmatpush1.bf16.msra.mxu0 %v2680
    %3537 = vmatprep.subr.bf16.mxu0 %v2786
    %3538 = vmatpush2.bf16.msra.mxu0 %v2785
    %3539 = vmatprep.subr.bf16.mxu0 %v2779
    %3540 = vmatpush2.bf16.msra.mxu0 %v2778
    %3541 = vmatprep.subr.bf16.mxu0 %v2772
    %3542 = vmatpush2.bf16.msra.mxu0 %v2771
    %3543 = vmatprep.subr.bf16.mxu0 %v2765
    %3544 = vmatpush2.bf16.msra.mxu0 %v2764
    %3545 = vmatprep.subr.bf16.mxu0 %v2758
    %3546 = vmatpush2.bf16.msra.mxu0 %v2757
    %3547 = vmatprep.subr.bf16.mxu0 %v2751
    %3548 = vmatpush2.bf16.msra.mxu0 %v2750
    %3549 = vmatprep.subr.bf16.mxu0 %v2744
    %3550 = vmatpush2.bf16.msra.mxu0 %v2743
    %3551 = vmatprep.subr.bf16.mxu0 %v2737
    %3552 = vmatpush2.bf16.msra.mxu0 %v2736
    %3553 = vmatprep.mubr.bf16.mxu0 %v54
    %3554 = vmatmul.mubr.bf16.gmra.mxu0 %v53
    %v3555 = vpop.f32.mrf.mxu0
    %v3556 = vadd.f32 %v3515, %v3555
    %v3557 = vpop.f32.mrf.mxu0
    %v3558 = vadd.f32 %v3517, %v3557
    %v3559 = vpop.f32.mrf.mxu0
    %v3560 = vpop.f32.mrf.mxu0
    %3561 = vdwg.mxu0
    %3562 = vmatprep.subr.bf16.mxu0 %v2842
    %3563 = vmatpush1.bf16.msra.mxu0 %v2841
    %3564 = vmatprep.subr.bf16.mxu0 %v2835
    %3565 = vmatpush1.bf16.msra.mxu0 %v2834
    %3566 = vmatprep.subr.bf16.mxu0 %v2828
    %3567 = vmatpush1.bf16.msra.mxu0 %v2827
    %3568 = vmatprep.subr.bf16.mxu0 %v2821
    %3569 = vmatpush1.bf16.msra.mxu0 %v2820
    %3570 = vmatprep.subr.bf16.mxu0 %v2814
    %3571 = vmatpush1.bf16.msra.mxu0 %v2813
    %3572 = vmatprep.subr.bf16.mxu0 %v2807
    %3573 = vmatpush1.bf16.msra.mxu0 %v2806
    %3574 = vmatprep.subr.bf16.mxu0 %v2800
    %3575 = vmatpush1.bf16.msra.mxu0 %v2799
    %3576 = vmatprep.subr.bf16.mxu0 %v2793
    %3577 = vmatpush1.bf16.msra.mxu0 %v2792
    %3578 = vmatprep.subr.bf16.mxu0 0
    %3579 = vmatpush2.bf16.msra.mxu0 0
    %3580 = vmatprep.subr.bf16.mxu0 0
    %3581 = vmatpush2.bf16.msra.mxu0 0
    %3582 = vmatprep.subr.bf16.mxu0 0
    %3583 = vmatpush2.bf16.msra.mxu0 0
    %3584 = vmatprep.subr.bf16.mxu0 0
    %3585 = vmatpush2.bf16.msra.mxu0 0
    %3586 = vmatprep.subr.bf16.mxu0 0
    %3587 = vmatpush2.bf16.msra.mxu0 0
    %3588 = vmatprep.subr.bf16.mxu0 %v2863
    %3589 = vmatpush2.bf16.msra.mxu0 %v2862
    %3590 = vmatprep.subr.bf16.mxu0 %v2856
    %3591 = vmatpush2.bf16.msra.mxu0 %v2855
    %3592 = vmatprep.subr.bf16.mxu0 %v2849
    %3593 = vmatpush2.bf16.msra.mxu0 %v2848
    %3594 = vmatprep.mubr.bf16.mxu0 %v3396
    %3595 = vmatmul.mubr.bf16.gmra.mxu0 %v55
    %v3596 = vpop.f32.mrf.mxu0
    %v3597 = vadd.f32 %v3556, %v3596
    %v3598 = vpop.f32.mrf.mxu0
    %v3599 = vadd.f32 %v3558, %v3598
    %v3600 = vpop.f32.mrf.mxu0
    %v3601 = vpop.f32.mrf.mxu0
    %3602 = vdwg.mxu0
    %3603 = vmatprep.subr.bf16.mxu0 %v2396
    %3604 = vmatpush1.bf16.msra.mxu0 %v2395
    %3605 = vmatprep.subr.bf16.mxu0 %v2389
    %3606 = vmatpush1.bf16.msra.mxu0 %v2388
    %3607 = vmatprep.subr.bf16.mxu0 %v2382
    %3608 = vmatpush1.bf16.msra.mxu0 %v2381
    %3609 = vmatprep.subr.bf16.mxu0 %v2375
    %3610 = vmatpush1.bf16.msra.mxu0 %v2374
    %3611 = vmatprep.subr.bf16.mxu0 %v2368
    %3612 = vmatpush1.bf16.msra.mxu0 %v2367
    %3613 = vmatprep.subr.bf16.mxu0 %v2361
    %3614 = vmatpush1.bf16.msra.mxu0 %v2360
    %3615 = vmatprep.subr.bf16.mxu0 %v2354
    %3616 = vmatpush1.bf16.msra.mxu0 %v2353
    %3617 = vmatprep.subr.bf16.mxu0 %v2347
    %3618 = vmatpush1.bf16.msra.mxu0 %v2346
    %3619 = vmatprep.subr.bf16.mxu0 %v2452
    %3620 = vmatpush2.bf16.msra.mxu0 %v2451
    %3621 = vmatprep.subr.bf16.mxu0 %v2445
    %3622 = vmatpush2.bf16.msra.mxu0 %v2444
    %3623 = vmatprep.subr.bf16.mxu0 %v2438
    %3624 = vmatpush2.bf16.msra.mxu0 %v2437
    %3625 = vmatprep.subr.bf16.mxu0 %v2431
    %3626 = vmatpush2.bf16.msra.mxu0 %v2430
    %3627 = vmatprep.subr.bf16.mxu0 %v2424
    %3628 = vmatpush2.bf16.msra.mxu0 %v2423
    %3629 = vmatprep.subr.bf16.mxu0 %v2417
    %3630 = vmatpush2.bf16.msra.mxu0 %v2416
    %3631 = vmatprep.subr.bf16.mxu0 %v2410
    %3632 = vmatpush2.bf16.msra.mxu0 %v2409
    %3633 = vmatprep.subr.bf16.mxu0 %v2403
    %3634 = vmatpush2.bf16.msra.mxu0 %v2402
    %3635 = vmatprep.mubr.bf16.mxu0 %v48
    %3636 = vmatmul.mubr.bf16.gmra.mxu0 %v47
    %v3637 = vpop.f32.mrf.mxu0
    %v3638 = vadd.f32 %v670, %v3637
    %v3639 = vpop.f32.mrf.mxu0
    %v3640 = vadd.f32 %v674, %v3639
    %v3641 = vpop.f32.mrf.mxu0
    %v3642 = vpop.f32.mrf.mxu0
    %3643 = vdwg.mxu0
    %3644 = vmatprep.subr.bf16.mxu0 %v2508
    %3645 = vmatpush1.bf16.msra.mxu0 %v2507
    %3646 = vmatprep.subr.bf16.mxu0 %v2501
    %3647 = vmatpush1.bf16.msra.mxu0 %v2500
    %3648 = vmatprep.subr.bf16.mxu0 %v2494
    %3649 = vmatpush1.bf16.msra.mxu0 %v2493
    %3650 = vmatprep.subr.bf16.mxu0 %v2487
    %3651 = vmatpush1.bf16.msra.mxu0 %v2486
    %3652 = vmatprep.subr.bf16.mxu0 %v2480
    %3653 = vmatpush1.bf16.msra.mxu0 %v2479
    %3654 = vmatprep.subr.bf16.mxu0 %v2473
    %3655 = vmatpush1.bf16.msra.mxu0 %v2472
    %3656 = vmatprep.subr.bf16.mxu0 %v2466
    %3657 = vmatpush1.bf16.msra.mxu0 %v2465
    %3658 = vmatprep.subr.bf16.mxu0 %v2459
    %3659 = vmatpush1.bf16.msra.mxu0 %v2458
    %3660 = vmatprep.subr.bf16.mxu0 %v2564
    %3661 = vmatpush2.bf16.msra.mxu0 %v2563
    %3662 = vmatprep.subr.bf16.mxu0 %v2557
    %3663 = vmatpush2.bf16.msra.mxu0 %v2556
    %3664 = vmatprep.subr.bf16.mxu0 %v2550
    %3665 = vmatpush2.bf16.msra.mxu0 %v2549
    %3666 = vmatprep.subr.bf16.mxu0 %v2543
    %3667 = vmatpush2.bf16.msra.mxu0 %v2542
    %3668 = vmatprep.subr.bf16.mxu0 %v2536
    %3669 = vmatpush2.bf16.msra.mxu0 %v2535
    %3670 = vmatprep.subr.bf16.mxu0 %v2529
    %3671 = vmatpush2.bf16.msra.mxu0 %v2528
    %3672 = vmatprep.subr.bf16.mxu0 %v2522
    %3673 = vmatpush2.bf16.msra.mxu0 %v2521
    %3674 = vmatprep.subr.bf16.mxu0 %v2515
    %3675 = vmatpush2.bf16.msra.mxu0 %v2514
    %3676 = vmatprep.mubr.bf16.mxu0 %v50
    %3677 = vmatmul.mubr.bf16.gmra.mxu0 %v49
    %v3678 = vpop.f32.mrf.mxu0
    %v3679 = vadd.f32 %v3638, %v3678
    %v3680 = vpop.f32.mrf.mxu0
    %v3681 = vadd.f32 %v3640, %v3680
    %v3682 = vpop.f32.mrf.mxu0
    %v3683 = vpop.f32.mrf.mxu0
    %3684 = vdwg.mxu0
    %3685 = vmatprep.subr.bf16.mxu0 %v2620
    %3686 = vmatpush1.bf16.msra.mxu0 %v2619
    %3687 = vmatprep.subr.bf16.mxu0 %v2613
    %3688 = vmatpush1.bf16.msra.mxu0 %v2612
    %3689 = vmatprep.subr.bf16.mxu0 %v2606
    %3690 = vmatpush1.bf16.msra.mxu0 %v2605
    %3691 = vmatprep.subr.bf16.mxu0 %v2599
    %3692 = vmatpush1.bf16.msra.mxu0 %v2598
    %3693 = vmatprep.subr.bf16.mxu0 %v2592
    %3694 = vmatpush1.bf16.msra.mxu0 %v2591
    %3695 = vmatprep.subr.bf16.mxu0 %v2585
    %3696 = vmatpush1.bf16.msra.mxu0 %v2584
    %3697 = vmatprep.subr.bf16.mxu0 %v2578
    %3698 = vmatpush1.bf16.msra.mxu0 %v2577
    %3699 = vmatprep.subr.bf16.mxu0 %v2571
    %3700 = vmatpush1.bf16.msra.mxu0 %v2570
    %3701 = vmatprep.subr.bf16.mxu0 %v2676
    %3702 = vmatpush2.bf16.msra.mxu0 %v2675
    %3703 = vmatprep.subr.bf16.mxu0 %v2669
    %3704 = vmatpush2.bf16.msra.mxu0 %v2668
    %3705 = vmatprep.subr.bf16.mxu0 %v2662
    %3706 = vmatpush2.bf16.msra.mxu0 %v2661
    %3707 = vmatprep.subr.bf16.mxu0 %v2655
    %3708 = vmatpush2.bf16.msra.mxu0 %v2654
    %3709 = vmatprep.subr.bf16.mxu0 %v2648
    %3710 = vmatpush2.bf16.msra.mxu0 %v2647
    %3711 = vmatprep.subr.bf16.mxu0 %v2641
    %3712 = vmatpush2.bf16.msra.mxu0 %v2640
    %3713 = vmatprep.subr.bf16.mxu0 %v2634
    %3714 = vmatpush2.bf16.msra.mxu0 %v2633
    %3715 = vmatprep.subr.bf16.mxu0 %v2627
    %3716 = vmatpush2.bf16.msra.mxu0 %v2626
    %3717 = vmatprep.mubr.bf16.mxu0 %v52
    %3718 = vmatmul.mubr.bf16.gmra.mxu0 %v51
    %v3719 = vpop.f32.mrf.mxu0
    %v3720 = vadd.f32 %v3679, %v3719
    %v3721 = vpop.f32.mrf.mxu0
    %v3722 = vadd.f32 %v3681, %v3721
    %v3723 = vpop.f32.mrf.mxu0
    %v3724 = vpop.f32.mrf.mxu0
    %3725 = vdwg.mxu0
    %3726 = vmatprep.subr.bf16.mxu0 %v2732
    %3727 = vmatpush1.bf16.msra.mxu0 %v2731
    %3728 = vmatprep.subr.bf16.mxu0 %v2725
    %3729 = vmatpush1.bf16.msra.mxu0 %v2724
    %3730 = vmatprep.subr.bf16.mxu0 %v2718
    %3731 = vmatpush1.bf16.msra.mxu0 %v2717
    %3732 = vmatprep.subr.bf16.mxu0 %v2711
    %3733 = vmatpush1.bf16.msra.mxu0 %v2710
    %3734 = vmatprep.subr.bf16.mxu0 %v2704
    %3735 = vmatpush1.bf16.msra.mxu0 %v2703
    %3736 = vmatprep.subr.bf16.mxu0 %v2697
    %3737 = vmatpush1.bf16.msra.mxu0 %v2696
    %3738 = vmatprep.subr.bf16.mxu0 %v2690
    %3739 = vmatpush1.bf16.msra.mxu0 %v2689
    %3740 = vmatprep.subr.bf16.mxu0 %v2683
    %3741 = vmatpush1.bf16.msra.mxu0 %v2682
    %3742 = vmatprep.subr.bf16.mxu0 %v2788
    %3743 = vmatpush2.bf16.msra.mxu0 %v2787
    %3744 = vmatprep.subr.bf16.mxu0 %v2781
    %3745 = vmatpush2.bf16.msra.mxu0 %v2780
    %3746 = vmatprep.subr.bf16.mxu0 %v2774
    %3747 = vmatpush2.bf16.msra.mxu0 %v2773
    %3748 = vmatprep.subr.bf16.mxu0 %v2767
    %3749 = vmatpush2.bf16.msra.mxu0 %v2766
    %3750 = vmatprep.subr.bf16.mxu0 %v2760
    %3751 = vmatpush2.bf16.msra.mxu0 %v2759
    %3752 = vmatprep.subr.bf16.mxu0 %v2753
    %3753 = vmatpush2.bf16.msra.mxu0 %v2752
    %3754 = vmatprep.subr.bf16.mxu0 %v2746
    %3755 = vmatpush2.bf16.msra.mxu0 %v2745
    %3756 = vmatprep.subr.bf16.mxu0 %v2739
    %3757 = vmatpush2.bf16.msra.mxu0 %v2738
    %3758 = vmatprep.mubr.bf16.mxu0 %v54
    %3759 = vmatmul.mubr.bf16.gmra.mxu0 %v53
    %v3760 = vpop.f32.mrf.mxu0
    %v3761 = vadd.f32 %v3720, %v3760
    %v3762 = vpop.f32.mrf.mxu0
    %v3763 = vadd.f32 %v3722, %v3762
    %v3764 = vpop.f32.mrf.mxu0
    %v3765 = vpop.f32.mrf.mxu0
    %3766 = vdwg.mxu0
    %3767 = vmatprep.subr.bf16.mxu0 %v2844
    %3768 = vmatpush1.bf16.msra.mxu0 %v2843
    %3769 = vmatprep.subr.bf16.mxu0 %v2837
    %3770 = vmatpush1.bf16.msra.mxu0 %v2836
    %3771 = vmatprep.subr.bf16.mxu0 %v2830
    %3772 = vmatpush1.bf16.msra.mxu0 %v2829
    %3773 = vmatprep.subr.bf16.mxu0 %v2823
    %3774 = vmatpush1.bf16.msra.mxu0 %v2822
    %3775 = vmatprep.subr.bf16.mxu0 %v2816
    %3776 = vmatpush1.bf16.msra.mxu0 %v2815
    %3777 = vmatprep.subr.bf16.mxu0 %v2809
    %3778 = vmatpush1.bf16.msra.mxu0 %v2808
    %3779 = vmatprep.subr.bf16.mxu0 %v2802
    %3780 = vmatpush1.bf16.msra.mxu0 %v2801
    %3781 = vmatprep.subr.bf16.mxu0 %v2795
    %3782 = vmatpush1.bf16.msra.mxu0 %v2794
    %3783 = vmatprep.subr.bf16.mxu0 0
    %3784 = vmatpush2.bf16.msra.mxu0 0
    %3785 = vmatprep.subr.bf16.mxu0 0
    %3786 = vmatpush2.bf16.msra.mxu0 0
    %3787 = vmatprep.subr.bf16.mxu0 0
    %3788 = vmatpush2.bf16.msra.mxu0 0
    %3789 = vmatprep.subr.bf16.mxu0 0
    %3790 = vmatpush2.bf16.msra.mxu0 0
    %3791 = vmatprep.subr.bf16.mxu0 0
    %3792 = vmatpush2.bf16.msra.mxu0 0
    %3793 = vmatprep.subr.bf16.mxu0 %v2865
    %3794 = vmatpush2.bf16.msra.mxu0 %v2864
    %3795 = vmatprep.subr.bf16.mxu0 %v2858
    %3796 = vmatpush2.bf16.msra.mxu0 %v2857
    %3797 = vmatprep.subr.bf16.mxu0 %v2851
    %3798 = vmatpush2.bf16.msra.mxu0 %v2850
    %3799 = vmatprep.mubr.bf16.mxu0 %v3396
    %3800 = vmatmul.mubr.bf16.gmra.mxu0 %v55
    %v3801 = vpop.f32.mrf.mxu0
    %v3802 = vadd.f32 %v3761, %v3801
    %v3803 = vpop.f32.mrf.mxu0
    %v3804 = vadd.f32 %v3763, %v3803
    %v3805 = vpop.f32.mrf.mxu0
    %v3806 = vpop.f32.mrf.mxu0
    %3807 = vdwg.mxu0
    %3808 = vmatprep.subr.bf16.mxu0 %v2398
    %3809 = vmatpush1.bf16.msra.mxu0 %v2397
    %3810 = vmatprep.subr.bf16.mxu0 %v2391
    %3811 = vmatpush1.bf16.msra.mxu0 %v2390
    %3812 = vmatprep.subr.bf16.mxu0 %v2384
    %3813 = vmatpush1.bf16.msra.mxu0 %v2383
    %3814 = vmatprep.subr.bf16.mxu0 %v2377
    %3815 = vmatpush1.bf16.msra.mxu0 %v2376
    %3816 = vmatprep.subr.bf16.mxu0 %v2370
    %3817 = vmatpush1.bf16.msra.mxu0 %v2369
    %3818 = vmatprep.subr.bf16.mxu0 %v2363
    %3819 = vmatpush1.bf16.msra.mxu0 %v2362
    %3820 = vmatprep.subr.bf16.mxu0 %v2356
    %3821 = vmatpush1.bf16.msra.mxu0 %v2355
    %3822 = vmatprep.subr.bf16.mxu0 %v2349
    %3823 = vmatpush1.bf16.msra.mxu0 %v2348
    %3824 = vmatprep.subr.bf16.mxu0 %v2454
    %3825 = vmatpush2.bf16.msra.mxu0 %v2453
    %3826 = vmatprep.subr.bf16.mxu0 %v2447
    %3827 = vmatpush2.bf16.msra.mxu0 %v2446
    %3828 = vmatprep.subr.bf16.mxu0 %v2440
    %3829 = vmatpush2.bf16.msra.mxu0 %v2439
    %3830 = vmatprep.subr.bf16.mxu0 %v2433
    %3831 = vmatpush2.bf16.msra.mxu0 %v2432
    %3832 = vmatprep.subr.bf16.mxu0 %v2426
    %3833 = vmatpush2.bf16.msra.mxu0 %v2425
    %3834 = vmatprep.subr.bf16.mxu0 %v2419
    %3835 = vmatpush2.bf16.msra.mxu0 %v2418
    %3836 = vmatprep.subr.bf16.mxu0 %v2412
    %3837 = vmatpush2.bf16.msra.mxu0 %v2411
    %3838 = vmatprep.subr.bf16.mxu0 %v2405
    %3839 = vmatpush2.bf16.msra.mxu0 %v2404
    %3840 = vmatprep.mubr.bf16.mxu0 %v48
    %3841 = vmatmul.mubr.bf16.gmra.mxu0 %v47
    %v3842 = vpop.f32.mrf.mxu0
    %v3843 = vadd.f32 %v678, %v3842
    %v3844 = vpop.f32.mrf.mxu0
    %v3845 = vadd.f32 %v682, %v3844
    %v3846 = vpop.f32.mrf.mxu0
    %v3847 = vpop.f32.mrf.mxu0
    %3848 = vdwg.mxu0
    %3849 = vmatprep.subr.bf16.mxu0 %v2510
    %3850 = vmatpush1.bf16.msra.mxu0 %v2509
    %3851 = vmatprep.subr.bf16.mxu0 %v2503
    %3852 = vmatpush1.bf16.msra.mxu0 %v2502
    %3853 = vmatprep.subr.bf16.mxu0 %v2496
    %3854 = vmatpush1.bf16.msra.mxu0 %v2495
    %3855 = vmatprep.subr.bf16.mxu0 %v2489
    %3856 = vmatpush1.bf16.msra.mxu0 %v2488
    %3857 = vmatprep.subr.bf16.mxu0 %v2482
    %3858 = vmatpush1.bf16.msra.mxu0 %v2481
    %3859 = vmatprep.subr.bf16.mxu0 %v2475
    %3860 = vmatpush1.bf16.msra.mxu0 %v2474
    %3861 = vmatprep.subr.bf16.mxu0 %v2468
    %3862 = vmatpush1.bf16.msra.mxu0 %v2467
    %3863 = vmatprep.subr.bf16.mxu0 %v2461
    %3864 = vmatpush1.bf16.msra.mxu0 %v2460
    %3865 = vmatprep.subr.bf16.mxu0 %v2566
    %3866 = vmatpush2.bf16.msra.mxu0 %v2565
    %3867 = vmatprep.subr.bf16.mxu0 %v2559
    %3868 = vmatpush2.bf16.msra.mxu0 %v2558
    %3869 = vmatprep.subr.bf16.mxu0 %v2552
    %3870 = vmatpush2.bf16.msra.mxu0 %v2551
    %3871 = vmatprep.subr.bf16.mxu0 %v2545
    %3872 = vmatpush2.bf16.msra.mxu0 %v2544
    %3873 = vmatprep.subr.bf16.mxu0 %v2538
    %3874 = vmatpush2.bf16.msra.mxu0 %v2537
    %3875 = vmatprep.subr.bf16.mxu0 %v2531
    %3876 = vmatpush2.bf16.msra.mxu0 %v2530
    %3877 = vmatprep.subr.bf16.mxu0 %v2524
    %3878 = vmatpush2.bf16.msra.mxu0 %v2523
    %3879 = vmatprep.subr.bf16.mxu0 %v2517
    %3880 = vmatpush2.bf16.msra.mxu0 %v2516
    %3881 = vmatprep.mubr.bf16.mxu0 %v50
    %3882 = vmatmul.mubr.bf16.gmra.mxu0 %v49
    %v3883 = vpop.f32.mrf.mxu0
    %v3884 = vadd.f32 %v3843, %v3883
    %v3885 = vpop.f32.mrf.mxu0
    %v3886 = vadd.f32 %v3845, %v3885
    %v3887 = vpop.f32.mrf.mxu0
    %v3888 = vpop.f32.mrf.mxu0
    %3889 = vdwg.mxu0
    %3890 = vmatprep.subr.bf16.mxu0 %v2622
    %3891 = vmatpush1.bf16.msra.mxu0 %v2621
    %3892 = vmatprep.subr.bf16.mxu0 %v2615
    %3893 = vmatpush1.bf16.msra.mxu0 %v2614
    %3894 = vmatprep.subr.bf16.mxu0 %v2608
    %3895 = vmatpush1.bf16.msra.mxu0 %v2607
    %3896 = vmatprep.subr.bf16.mxu0 %v2601
    %3897 = vmatpush1.bf16.msra.mxu0 %v2600
    %3898 = vmatprep.subr.bf16.mxu0 %v2594
    %3899 = vmatpush1.bf16.msra.mxu0 %v2593
    %3900 = vmatprep.subr.bf16.mxu0 %v2587
    %3901 = vmatpush1.bf16.msra.mxu0 %v2586
    %3902 = vmatprep.subr.bf16.mxu0 %v2580
    %3903 = vmatpush1.bf16.msra.mxu0 %v2579
    %3904 = vmatprep.subr.bf16.mxu0 %v2573
    %3905 = vmatpush1.bf16.msra.mxu0 %v2572
    %3906 = vmatprep.subr.bf16.mxu0 %v2678
    %3907 = vmatpush2.bf16.msra.mxu0 %v2677
    %3908 = vmatprep.subr.bf16.mxu0 %v2671
    %3909 = vmatpush2.bf16.msra.mxu0 %v2670
    %3910 = vmatprep.subr.bf16.mxu0 %v2664
    %3911 = vmatpush2.bf16.msra.mxu0 %v2663
    %3912 = vmatprep.subr.bf16.mxu0 %v2657
    %3913 = vmatpush2.bf16.msra.mxu0 %v2656
    %3914 = vmatprep.subr.bf16.mxu0 %v2650
    %3915 = vmatpush2.bf16.msra.mxu0 %v2649
    %3916 = vmatprep.subr.bf16.mxu0 %v2643
    %3917 = vmatpush2.bf16.msra.mxu0 %v2642
    %3918 = vmatprep.subr.bf16.mxu0 %v2636
    %3919 = vmatpush2.bf16.msra.mxu0 %v2635
    %3920 = vmatprep.subr.bf16.mxu0 %v2629
    %3921 = vmatpush2.bf16.msra.mxu0 %v2628
    %3922 = vmatprep.mubr.bf16.mxu0 %v52
    %3923 = vmatmul.mubr.bf16.gmra.mxu0 %v51
    %v3924 = vpop.f32.mrf.mxu0
    %v3925 = vadd.f32 %v3884, %v3924
    %v3926 = vpop.f32.mrf.mxu0
    %v3927 = vadd.f32 %v3886, %v3926
    %v3928 = vpop.f32.mrf.mxu0
    %v3929 = vpop.f32.mrf.mxu0
    %3930 = vdwg.mxu0
    %3931 = vmatprep.subr.bf16.mxu0 %v2734
    %3932 = vmatpush1.bf16.msra.mxu0 %v2733
    %3933 = vmatprep.subr.bf16.mxu0 %v2727
    %3934 = vmatpush1.bf16.msra.mxu0 %v2726
    %3935 = vmatprep.subr.bf16.mxu0 %v2720
    %3936 = vmatpush1.bf16.msra.mxu0 %v2719
    %3937 = vmatprep.subr.bf16.mxu0 %v2713
    %3938 = vmatpush1.bf16.msra.mxu0 %v2712
    %3939 = vmatprep.subr.bf16.mxu0 %v2706
    %3940 = vmatpush1.bf16.msra.mxu0 %v2705
    %3941 = vmatprep.subr.bf16.mxu0 %v2699
    %3942 = vmatpush1.bf16.msra.mxu0 %v2698
    %3943 = vmatprep.subr.bf16.mxu0 %v2692
    %3944 = vmatpush1.bf16.msra.mxu0 %v2691
    %3945 = vmatprep.subr.bf16.mxu0 %v2685
    %3946 = vmatpush1.bf16.msra.mxu0 %v2684
    %3947 = vmatprep.subr.bf16.mxu0 %v2790
    %3948 = vmatpush2.bf16.msra.mxu0 %v2789
    %3949 = vmatprep.subr.bf16.mxu0 %v2783
    %3950 = vmatpush2.bf16.msra.mxu0 %v2782
    %3951 = vmatprep.subr.bf16.mxu0 %v2776
    %3952 = vmatpush2.bf16.msra.mxu0 %v2775
    %3953 = vmatprep.subr.bf16.mxu0 %v2769
    %3954 = vmatpush2.bf16.msra.mxu0 %v2768
    %3955 = vmatprep.subr.bf16.mxu0 %v2762
    %3956 = vmatpush2.bf16.msra.mxu0 %v2761
    %3957 = vmatprep.subr.bf16.mxu0 %v2755
    %3958 = vmatpush2.bf16.msra.mxu0 %v2754
    %3959 = vmatprep.subr.bf16.mxu0 %v2748
    %3960 = vmatpush2.bf16.msra.mxu0 %v2747
    %3961 = vmatprep.subr.bf16.mxu0 %v2741
    %3962 = vmatpush2.bf16.msra.mxu0 %v2740
    %3963 = vmatprep.mubr.bf16.mxu0 %v54
    %3964 = vmatmul.mubr.bf16.gmra.mxu0 %v53
    %v3965 = vpop.f32.mrf.mxu0
    %v3966 = vadd.f32 %v3925, %v3965
    %v3967 = vpop.f32.mrf.mxu0
    %v3968 = vadd.f32 %v3927, %v3967
    %v3969 = vpop.f32.mrf.mxu0
    %v3970 = vpop.f32.mrf.mxu0
    %3971 = vdwg.mxu0
    %3972 = vmatprep.subr.bf16.mxu0 %v2846
    %3973 = vmatpush1.bf16.msra.mxu0 %v2845
    %3974 = vmatprep.subr.bf16.mxu0 %v2839
    %3975 = vmatpush1.bf16.msra.mxu0 %v2838
    %3976 = vmatprep.subr.bf16.mxu0 %v2832
    %3977 = vmatpush1.bf16.msra.mxu0 %v2831
    %3978 = vmatprep.subr.bf16.mxu0 %v2825
    %3979 = vmatpush1.bf16.msra.mxu0 %v2824
    %3980 = vmatprep.subr.bf16.mxu0 %v2818
    %3981 = vmatpush1.bf16.msra.mxu0 %v2817
    %3982 = vmatprep.subr.bf16.mxu0 %v2811
    %3983 = vmatpush1.bf16.msra.mxu0 %v2810
    %3984 = vmatprep.subr.bf16.mxu0 %v2804
    %3985 = vmatpush1.bf16.msra.mxu0 %v2803
    %3986 = vmatprep.subr.bf16.mxu0 %v2797
    %3987 = vmatpush1.bf16.msra.mxu0 %v2796
    %3988 = vmatprep.subr.bf16.mxu0 0
    %3989 = vmatpush2.bf16.msra.mxu0 0
    %3990 = vmatprep.subr.bf16.mxu0 0
    %3991 = vmatpush2.bf16.msra.mxu0 0
    %3992 = vmatprep.subr.bf16.mxu0 0
    %3993 = vmatpush2.bf16.msra.mxu0 0
    %3994 = vmatprep.subr.bf16.mxu0 0
    %3995 = vmatpush2.bf16.msra.mxu0 0
    %3996 = vmatprep.subr.bf16.mxu0 0
    %3997 = vmatpush2.bf16.msra.mxu0 0
    %3998 = vmatprep.subr.bf16.mxu0 %v2867
    %3999 = vmatpush2.bf16.msra.mxu0 %v2866
    %4000 = vmatprep.subr.bf16.mxu0 %v2860
    %4001 = vmatpush2.bf16.msra.mxu0 %v2859
    %4002 = vmatprep.subr.bf16.mxu0 %v2853
    %4003 = vmatpush2.bf16.msra.mxu0 %v2852
    %4004 = vmatprep.mubr.bf16.mxu0 %v3396
    %4005 = vmatmul.mubr.bf16.gmra.mxu0 %v55
    %v4006 = vpop.f32.mrf.mxu0
    %v4007 = vadd.f32 %v3966, %v4006
    %v4008 = vpop.f32.mrf.mxu0
    %v4009 = vadd.f32 %v3968, %v4008
    %v4010 = vpop.f32.mrf.mxu0
    %v4011 = vpop.f32.mrf.mxu0
    %4012 = vdwg.mxu0
    %4013 = vmatprep.subr.bf16.mxu0 0
    %4014 = vmatpush1.bf16.msra.mxu0 %v2399
    %4015 = vmatprep.subr.bf16.mxu0 0
    %4016 = vmatpush1.bf16.msra.mxu0 %v2392
    %4017 = vmatprep.subr.bf16.mxu0 0
    %4018 = vmatpush1.bf16.msra.mxu0 %v2385
    %4019 = vmatprep.subr.bf16.mxu0 0
    %4020 = vmatpush1.bf16.msra.mxu0 %v2378
    %4021 = vmatprep.subr.bf16.mxu0 0
    %4022 = vmatpush1.bf16.msra.mxu0 %v2371
    %4023 = vmatprep.subr.bf16.mxu0 0
    %4024 = vmatpush1.bf16.msra.mxu0 %v2364
    %4025 = vmatprep.subr.bf16.mxu0 0
    %4026 = vmatpush1.bf16.msra.mxu0 %v2357
    %4027 = vmatprep.subr.bf16.mxu0 0
    %4028 = vmatpush1.bf16.msra.mxu0 %v2350
    %4029 = vmatprep.subr.bf16.mxu0 0
    %4030 = vmatpush2.bf16.msra.mxu0 %v2455
    %4031 = vmatprep.subr.bf16.mxu0 0
    %4032 = vmatpush2.bf16.msra.mxu0 %v2448
    %4033 = vmatprep.subr.bf16.mxu0 0
    %4034 = vmatpush2.bf16.msra.mxu0 %v2441
    %4035 = vmatprep.subr.bf16.mxu0 0
    %4036 = vmatpush2.bf16.msra.mxu0 %v2434
    %4037 = vmatprep.subr.bf16.mxu0 0
    %4038 = vmatpush2.bf16.msra.mxu0 %v2427
    %4039 = vmatprep.subr.bf16.mxu0 0
    %4040 = vmatpush2.bf16.msra.mxu0 %v2420
    %4041 = vmatprep.subr.bf16.mxu0 0
    %4042 = vmatpush2.bf16.msra.mxu0 %v2413
    %4043 = vmatprep.subr.bf16.mxu0 0
    %4044 = vmatpush2.bf16.msra.mxu0 %v2406
    %4045 = vmatprep.mubr.bf16.mxu0 %v48
    %4046 = vmatmul.mubr.bf16.gmra.mxu0 %v47
    %v4047 = vpop.f32.mrf.mxu0
    %v4048 = vadd.f32 %v686, %v4047
    %v4049 = vpop.f32.mrf.mxu0
    %v4050 = vpop.f32.mrf.mxu0
    %v4051 = vpop.f32.mrf.mxu0
    %4052 = vdwg.mxu0
    %4053 = vmatprep.subr.bf16.mxu0 0
    %4054 = vmatpush1.bf16.msra.mxu0 %v2511
    %4055 = vmatprep.subr.bf16.mxu0 0
    %4056 = vmatpush1.bf16.msra.mxu0 %v2504
    %4057 = vmatprep.subr.bf16.mxu0 0
    %4058 = vmatpush1.bf16.msra.mxu0 %v2497
    %4059 = vmatprep.subr.bf16.mxu0 0
    %4060 = vmatpush1.bf16.msra.mxu0 %v2490
    %4061 = vmatprep.subr.bf16.mxu0 0
    %4062 = vmatpush1.bf16.msra.mxu0 %v2483
    %4063 = vmatprep.subr.bf16.mxu0 0
    %4064 = vmatpush1.bf16.msra.mxu0 %v2476
    %4065 = vmatprep.subr.bf16.mxu0 0
    %4066 = vmatpush1.bf16.msra.mxu0 %v2469
    %4067 = vmatprep.subr.bf16.mxu0 0
    %4068 = vmatpush1.bf16.msra.mxu0 %v2462
    %4069 = vmatprep.subr.bf16.mxu0 0
    %4070 = vmatpush2.bf16.msra.mxu0 %v2567
    %4071 = vmatprep.subr.bf16.mxu0 0
    %4072 = vmatpush2.bf16.msra.mxu0 %v2560
    %4073 = vmatprep.subr.bf16.mxu0 0
    %4074 = vmatpush2.bf16.msra.mxu0 %v2553
    %4075 = vmatprep.subr.bf16.mxu0 0
    %4076 = vmatpush2.bf16.msra.mxu0 %v2546
    %4077 = vmatprep.subr.bf16.mxu0 0
    %4078 = vmatpush2.bf16.msra.mxu0 %v2539
    %4079 = vmatprep.subr.bf16.mxu0 0
    %4080 = vmatpush2.bf16.msra.mxu0 %v2532
    %4081 = vmatprep.subr.bf16.mxu0 0
    %4082 = vmatpush2.bf16.msra.mxu0 %v2525
    %4083 = vmatprep.subr.bf16.mxu0 0
    %4084 = vmatpush2.bf16.msra.mxu0 %v2518
    %4085 = vmatprep.mubr.bf16.mxu0 %v50
    %4086 = vmatmul.mubr.bf16.gmra.mxu0 %v49
    %v4087 = vpop.f32.mrf.mxu0
    %v4088 = vadd.f32 %v4048, %v4087
    %v4089 = vpop.f32.mrf.mxu0
    %v4090 = vpop.f32.mrf.mxu0
    %v4091 = vpop.f32.mrf.mxu0
    %4092 = vdwg.mxu0
    %4093 = vmatprep.subr.bf16.mxu0 0
    %4094 = vmatpush1.bf16.msra.mxu0 %v2623
    %4095 = vmatprep.subr.bf16.mxu0 0
    %4096 = vmatpush1.bf16.msra.mxu0 %v2616
    %4097 = vmatprep.subr.bf16.mxu0 0
    %4098 = vmatpush1.bf16.msra.mxu0 %v2609
    %4099 = vmatprep.subr.bf16.mxu0 0
    %4100 = vmatpush1.bf16.msra.mxu0 %v2602
    %4101 = vmatprep.subr.bf16.mxu0 0
    %4102 = vmatpush1.bf16.msra.mxu0 %v2595
    %4103 = vmatprep.subr.bf16.mxu0 0
    %4104 = vmatpush1.bf16.msra.mxu0 %v2588
    %4105 = vmatprep.subr.bf16.mxu0 0
    %4106 = vmatpush1.bf16.msra.mxu0 %v2581
    %4107 = vmatprep.subr.bf16.mxu0 0
    %4108 = vmatpush1.bf16.msra.mxu0 %v2574
    %4109 = vmatprep.subr.bf16.mxu0 0
    %4110 = vmatpush2.bf16.msra.mxu0 %v2679
    %4111 = vmatprep.subr.bf16.mxu0 0
    %4112 = vmatpush2.bf16.msra.mxu0 %v2672
    %4113 = vmatprep.subr.bf16.mxu0 0
    %4114 = vmatpush2.bf16.msra.mxu0 %v2665
    %4115 = vmatprep.subr.bf16.mxu0 0
    %4116 = vmatpush2.bf16.msra.mxu0 %v2658
    %4117 = vmatprep.subr.bf16.mxu0 0
    %4118 = vmatpush2.bf16.msra.mxu0 %v2651
    %4119 = vmatprep.subr.bf16.mxu0 0
    %4120 = vmatpush2.bf16.msra.mxu0 %v2644
    %4121 = vmatprep.subr.bf16.mxu0 0
    %4122 = vmatpush2.bf16.msra.mxu0 %v2637
    %4123 = vmatprep.subr.bf16.mxu0 0
    %4124 = vmatpush2.bf16.msra.mxu0 %v2630
    %4125 = vmatprep.mubr.bf16.mxu0 %v52
    %4126 = vmatmul.mubr.bf16.gmra.mxu0 %v51
    %v4127 = vpop.f32.mrf.mxu0
    %v4128 = vadd.f32 %v4088, %v4127
    %v4129 = vpop.f32.mrf.mxu0
    %v4130 = vpop.f32.mrf.mxu0
    %v4131 = vpop.f32.mrf.mxu0
    %4132 = vdwg.mxu0
    %4133 = vmatprep.subr.bf16.mxu0 0
    %4134 = vmatpush1.bf16.msra.mxu0 %v2735
    %4135 = vmatprep.subr.bf16.mxu0 0
    %4136 = vmatpush1.bf16.msra.mxu0 %v2728
    %4137 = vmatprep.subr.bf16.mxu0 0
    %4138 = vmatpush1.bf16.msra.mxu0 %v2721
    %4139 = vmatprep.subr.bf16.mxu0 0
    %4140 = vmatpush1.bf16.msra.mxu0 %v2714
    %4141 = vmatprep.subr.bf16.mxu0 0
    %4142 = vmatpush1.bf16.msra.mxu0 %v2707
    %4143 = vmatprep.subr.bf16.mxu0 0
    %4144 = vmatpush1.bf16.msra.mxu0 %v2700
    %4145 = vmatprep.subr.bf16.mxu0 0
    %4146 = vmatpush1.bf16.msra.mxu0 %v2693
    %4147 = vmatprep.subr.bf16.mxu0 0
    %4148 = vmatpush1.bf16.msra.mxu0 %v2686
    %4149 = vmatprep.subr.bf16.mxu0 0
    %4150 = vmatpush2.bf16.msra.mxu0 %v2791
    %4151 = vmatprep.subr.bf16.mxu0 0
    %4152 = vmatpush2.bf16.msra.mxu0 %v2784
    %4153 = vmatprep.subr.bf16.mxu0 0
    %4154 = vmatpush2.bf16.msra.mxu0 %v2777
    %4155 = vmatprep.subr.bf16.mxu0 0
    %4156 = vmatpush2.bf16.msra.mxu0 %v2770
    %4157 = vmatprep.subr.bf16.mxu0 0
    %4158 = vmatpush2.bf16.msra.mxu0 %v2763
    %4159 = vmatprep.subr.bf16.mxu0 0
    %4160 = vmatpush2.bf16.msra.mxu0 %v2756
    %4161 = vmatprep.subr.bf16.mxu0 0
    %4162 = vmatpush2.bf16.msra.mxu0 %v2749
    %4163 = vmatprep.subr.bf16.mxu0 0
    %4164 = vmatpush2.bf16.msra.mxu0 %v2742
    %4165 = vmatprep.mubr.bf16.mxu0 %v54
    %4166 = vmatmul.mubr.bf16.gmra.mxu0 %v53
    %v4167 = vpop.f32.mrf.mxu0
    %v4168 = vadd.f32 %v4128, %v4167
    %v4169 = vpop.f32.mrf.mxu0
    %v4170 = vpop.f32.mrf.mxu0
    %v4171 = vpop.f32.mrf.mxu0
    %4172 = vdwg.mxu0
    %4173 = vmatprep.subr.bf16.mxu0 0
    %4174 = vmatpush1.bf16.msra.mxu0 %v2847
    %4175 = vmatprep.subr.bf16.mxu0 0
    %4176 = vmatpush1.bf16.msra.mxu0 %v2840
    %4177 = vmatprep.subr.bf16.mxu0 0
    %4178 = vmatpush1.bf16.msra.mxu0 %v2833
    %4179 = vmatprep.subr.bf16.mxu0 0
    %4180 = vmatpush1.bf16.msra.mxu0 %v2826
    %4181 = vmatprep.subr.bf16.mxu0 0
    %4182 = vmatpush1.bf16.msra.mxu0 %v2819
    %4183 = vmatprep.subr.bf16.mxu0 0
    %4184 = vmatpush1.bf16.msra.mxu0 %v2812
    %4185 = vmatprep.subr.bf16.mxu0 0
    %4186 = vmatpush1.bf16.msra.mxu0 %v2805
    %4187 = vmatprep.subr.bf16.mxu0 0
    %4188 = vmatpush1.bf16.msra.mxu0 %v2798
    %4189 = vmatprep.subr.bf16.mxu0 0
    %4190 = vmatpush2.bf16.msra.mxu0 0
    %4191 = vmatprep.subr.bf16.mxu0 0
    %4192 = vmatpush2.bf16.msra.mxu0 0
    %4193 = vmatprep.subr.bf16.mxu0 0
    %4194 = vmatpush2.bf16.msra.mxu0 0
    %4195 = vmatprep.subr.bf16.mxu0 0
    %4196 = vmatpush2.bf16.msra.mxu0 0
    %4197 = vmatprep.subr.bf16.mxu0 0
    %4198 = vmatpush2.bf16.msra.mxu0 0
    %4199 = vmatprep.subr.bf16.mxu0 0
    %4200 = vmatpush2.bf16.msra.mxu0 %v2868
    %4201 = vmatprep.subr.bf16.mxu0 0
    %4202 = vmatpush2.bf16.msra.mxu0 %v2861
    %4203 = vmatprep.subr.bf16.mxu0 0
    %4204 = vmatpush2.bf16.msra.mxu0 %v2854
    %4205 = vmatprep.mubr.bf16.mxu0 %v3396
    %4206 = vmatmul.mubr.bf16.gmra.mxu0 %v55
    %v4207 = vpop.f32.mrf.mxu0
    %v4208 = vadd.f32 %v4168, %v4207
    %v4209 = vpop.f32.mrf.mxu0
    %v4210 = vpop.f32.mrf.mxu0
    %v4211 = vpop.f32.mrf.mxu0
    %4212 = vdwg.mxu0
    %v4213 = vmax.f32 %v3597, 0.0
    %v4214 = vmax.f32 %v3599, 0.0
    %v4215 = vmax.f32 %v3802, 0.0
    %v4216 = vmax.f32 %v3804, 0.0
    %v4217 = vmax.f32 %v4007, 0.0
    %v4218 = vmax.f32 %v4009, 0.0
    %v4219 = vmax.f32 %v4208, 0.0
    %v4220 = vpack.c.bf16 %v4213, %v4213
    %v4221 = vpack.c.bf16 %v4214, %v4214
    %v4222 = vpack.c.bf16 %v4215, %v4215
    %v4223 = vpack.c.bf16 %v4216, %v4216
    %v4224 = vpack.c.bf16 %v4217, %v4217
    %v4225 = vpack.c.bf16 %v4218, %v4218
    %v4226 = vpack.c.bf16 %v4219, %v4219
    %v4227 = vld [vmem:[%s3] sm:$0xff]
    %v4228 = vld [vmem:[%s3 + $0x8] sm:$0xf]
    %v4229 = vld [vmem:[%s3 + $0xc] sm:$0xff]
    %v4230 = vld [vmem:[%s3 + $0x14] sm:$0xf]
    %v4231 = vld [vmem:[%s3 + $0x18] sm:$0xff]
    %v4232 = vld [vmem:[%s3 + $0x20] sm:$0xf]
    %v4233 = vld [vmem:[%s3 + $0x24] sm:$0xff]
    %v4234 = vld [vmem:[%s3 + $0x2c] sm:$0xf]
    %v4235 = vld [vmem:[%s3 + $0x30] sm:$0xff]
    %v4236 = vld [vmem:[%s3 + $0x38] sm:$0xf]
    %v4237 = vld [vmem:[%s3 + $0x3c] sm:$0xff]
    %v4238 = vld [vmem:[%s3 + $0x44] sm:$0xf]
    %v4239 = vld [vmem:[%s3 + $0x48] sm:$0xff]
    %v4240 = vld [vmem:[%s3 + $0x50] sm:$0xf]
    %v4241 = vld [vmem:[%s3 + $0x54] sm:$0xff]
    %v4242 = vld [vmem:[%s3 + $0x5c] sm:$0xf]
    %v4243 = vld [vmem:[%s3 + $0x60] sm:$0xff]
    %v4244 = vld [vmem:[%s3 + $0x68] sm:$0xf]
    %v4245 = vld [vmem:[%s3 + $0x6c] sm:$0xff]
    %v4246 = vld [vmem:[%s3 + $0x74] sm:$0xf]
    %v4247 = vld [vmem:[%s3 + $0x78] sm:$0xff]
    %v4248 = vld [vmem:[%s3 + $0x80] sm:$0xf]
    %v4249 = vld [vmem:[%s3 + $0x84] sm:$0xff]
    %v4250 = vld [vmem:[%s3 + $0x8c] sm:$0xf]
    %v4251 = vld [vmem:[%s3 + $0x90] sm:$0xff]
    %v4252 = vld [vmem:[%s3 + $0x98] sm:$0xf]
    %v4253 = vld [vmem:[%s3 + $0x9c] sm:$0xff]
    %v4254 = vld [vmem:[%s3 + $0xa4] sm:$0xf]
    %v4255 = vld [vmem:[%s3 + $0xa8] sm:$0xff]
    %v4256 = vld [vmem:[%s3 + $0xb0] sm:$0xf]
    %v4257 = vld [vmem:[%s3 + $0xb4] sm:$0xff]
    %v4258 = vld [vmem:[%s3 + $0xbc] sm:$0xf]
    %v4259 = vld [vmem:[%s3 + $0xc0] sm:$0xff]
    %v4260 = vld [vmem:[%s3 + $0xc8] sm:$0xf]
    %v4261 = vld [vmem:[%s3 + $0xcc] sm:$0xff]
    %v4262 = vld [vmem:[%s3 + $0xd4] sm:$0xf]
    %v4263 = vld [vmem:[%s3 + $0xd8] sm:$0xff]
    %v4264 = vld [vmem:[%s3 + $0xe0] sm:$0xf]
    %v4265 = vld [vmem:[%s3 + $0xe4] sm:$0xff]
    %v4266 = vld [vmem:[%s3 + $0xec] sm:$0xf]
    %v4267 = vld [vmem:[%s3 + $0xf0] sm:$0xff]
    %v4268 = vld [vmem:[%s3 + $0xf8] sm:$0xf]
    %v4269 = vld [vmem:[%s3 + $0xfc] sm:$0xff]
    %v4270 = vld [vmem:[%s3 + $0x104] sm:$0xf]
    %v4271 = vld [vmem:[%s3 + $0x108] sm:$0xff]
    %v4272 = vld [vmem:[%s3 + $0x110] sm:$0xf]
    %v4273 = vld [vmem:[%s3 + $0x114] sm:$0xff]
    %v4274 = vld [vmem:[%s3 + $0x11c] sm:$0xf]
    %v4275 = vld [vmem:[%s3 + $0x120] sm:$0xff]
    %v4276 = vld [vmem:[%s3 + $0x128] sm:$0xf]
    %v4277 = vld [vmem:[%s3 + $0x12c] sm:$0xff]
    %v4278 = vld [vmem:[%s3 + $0x134] sm:$0xf]
    %v4279 = vld [vmem:[%s3 + $0x138] sm:$0xff]
    %v4280 = vld [vmem:[%s3 + $0x140] sm:$0xf]
    %v4281 = vld [vmem:[%s3 + $0x144] sm:$0xff]
    %v4282 = vld [vmem:[%s3 + $0x14c] sm:$0xf]
    %v4283 = vld [vmem:[%s3 + $0x150] sm:$0xff]
    %v4284 = vld [vmem:[%s3 + $0x158] sm:$0xf]
    %v4285 = vld [vmem:[%s3 + $0x15c] sm:$0xff]
    %v4286 = vld [vmem:[%s3 + $0x164] sm:$0xf]
    %v4287 = vld [vmem:[%s3 + $0x168] sm:$0xff]
    %v4288 = vld [vmem:[%s3 + $0x170] sm:$0xf]
    %v4289 = vld [vmem:[%s3 + $0x174] sm:$0xff]
    %v4290 = vld [vmem:[%s3 + $0x17c] sm:$0xf]
    %v4291 = vld [vmem:[%s3 + $0x180] sm:$0xff]
    %v4292 = vld [vmem:[%s3 + $0x188] sm:$0xf]
    %v4293 = vld [vmem:[%s3 + $0x18c] sm:$0xff]
    %v4294 = vld [vmem:[%s3 + $0x194] sm:$0xf]
    %v4295 = vld [vmem:[%s3 + $0x198] sm:$0xff]
    %v4296 = vld [vmem:[%s3 + $0x1a0] sm:$0xf]
    %v4297 = vld [vmem:[%s3 + $0x1a4] sm:$0xff]
    %v4298 = vld [vmem:[%s3 + $0x1ac] sm:$0xf]
    %v4299 = vld [vmem:[%s3 + $0x1b0] sm:$0xff]
    %v4300 = vld [vmem:[%s3 + $0x1b8] sm:$0xf]
    %v4301 = vld [vmem:[%s3 + $0x1bc] sm:$0xff]
    %v4302 = vld [vmem:[%s3 + $0x1c4] sm:$0xf]
    %v4303 = vld [vmem:[%s3 + $0x1c8] sm:$0xff]
    %v4304 = vld [vmem:[%s3 + $0x1d0] sm:$0xf]
    %v4305 = vld [vmem:[%s3 + $0x1d4] sm:$0xff]
    %v4306 = vld [vmem:[%s3 + $0x1dc] sm:$0xf]
    %v4307 = vld [vmem:[%s3 + $0x1e0] sm:$0xff]
    %v4308 = vld [vmem:[%s3 + $0x1e8] sm:$0xf]
    %v4309 = vld [vmem:[%s3 + $0x1ec] sm:$0xff]
    %v4310 = vld [vmem:[%s3 + $0x1f4] sm:$0xf]
    %v4311 = vld [vmem:[%s3 + $0x1f8] sm:$0xff]
    %v4312 = vld [vmem:[%s3 + $0x200] sm:$0xf]
    %v4313 = vld [vmem:[%s3 + $0x204] sm:$0xff]
    %v4314 = vld [vmem:[%s3 + $0x20c] sm:$0xf]
    %v4315 = vld [vmem:[%s3 + $0x210] sm:$0xff]
    %v4316 = vld [vmem:[%s3 + $0x218] sm:$0xf]
    %v4317 = vld [vmem:[%s3 + $0x21c] sm:$0xff]
    %v4318 = vld [vmem:[%s3 + $0x224] sm:$0xf]
    %v4319 = vld [vmem:[%s3 + $0x228] sm:$0xff]
    %v4320 = vld [vmem:[%s3 + $0x230] sm:$0xf]
    %v4321 = vld [vmem:[%s3 + $0x234] sm:$0xff]
    %v4322 = vld [vmem:[%s3 + $0x23c] sm:$0xf]
    %v4323 = vld [vmem:[%s3 + $0x240] sm:$0xff]
    %v4324 = vld [vmem:[%s3 + $0x248] sm:$0xf]
    %v4325 = vld [vmem:[%s3 + $0x24c] sm:$0xff]
    %v4326 = vld [vmem:[%s3 + $0x254] sm:$0xf]
    %v4327 = vld [vmem:[%s3 + $0x258] sm:$0xff]
    %v4328 = vld [vmem:[%s3 + $0x260] sm:$0xf]
    %v4329 = vld [vmem:[%s3 + $0x264] sm:$0xff]
    %v4330 = vld [vmem:[%s3 + $0x26c] sm:$0xf]
    %v4331 = vld [vmem:[%s3 + $0x270] sm:$0xff]
    %v4332 = vld [vmem:[%s3 + $0x278] sm:$0xf]
    %v4333 = vld [vmem:[%s3 + $0x27c] sm:$0xff]
    %v4334 = vld [vmem:[%s3 + $0x284] sm:$0xf]
    %v4335 = vld [vmem:[%s3 + $0x288] sm:$0xff]
    %v4336 = vld [vmem:[%s3 + $0x290] sm:$0xf]
    %v4337 = vld [vmem:[%s3 + $0x294] sm:$0xff]
    %v4338 = vld [vmem:[%s3 + $0x29c] sm:$0xf]
    %v4339 = vld [vmem:[%s3 + $0x2a0] sm:$0xff]
    %v4340 = vld [vmem:[%s3 + $0x2a8] sm:$0xf]
    %v4341 = vld [vmem:[%s3 + $0x2ac] sm:$0xff]
    %v4342 = vld [vmem:[%s3 + $0x2b4] sm:$0xf]
    %v4343 = vld [vmem:[%s3 + $0x2b8] sm:$0xff]
    %v4344 = vld [vmem:[%s3 + $0x2c0] sm:$0xf]
    %v4345 = vld [vmem:[%s3 + $0x2c4] sm:$0xff]
    %v4346 = vld [vmem:[%s3 + $0x2cc] sm:$0xf]
    %v4347 = vld [vmem:[%s3 + $0x2d0] sm:$0xff]
    %v4348 = vld [vmem:[%s3 + $0x2d8] sm:$0xf]
    %v4349 = vld [vmem:[%s3 + $0x2dc] sm:$0xff]
    %v4350 = vld [vmem:[%s3 + $0x2e4] sm:$0xf]
    %v4351 = vld [vmem:[%s3 + $0x2e8] sm:$0xff]
    %v4352 = vld [vmem:[%s3 + $0x2f0] sm:$0xf]
    %v4353 = vld [vmem:[%s3 + $0x2f4] sm:$0xff]
    %v4354 = vld [vmem:[%s3 + $0x2fc] sm:$0xf]
    %v4355 = vld [vmem:[%s3 + $0x300] sm:$0xff]
    %v4356 = vld [vmem:[%s3 + $0x308] sm:$0xf]
    %v4357 = vld [vmem:[%s3 + $0x30c] sm:$0xff]
    %v4358 = vld [vmem:[%s3 + $0x314] sm:$0xf]
    %v4359 = vld [vmem:[%s3 + $0x318] sm:$0xff]
    %v4360 = vld [vmem:[%s3 + $0x320] sm:$0xf]
    %v4361 = vld [vmem:[%s3 + $0x324] sm:$0xff]
    %v4362 = vld [vmem:[%s3 + $0x32c] sm:$0xf]
    %v4363 = vld [vmem:[%s3 + $0x330] sm:$0xff]
    %v4364 = vld [vmem:[%s3 + $0x338] sm:$0xf]
    %v4365 = vld [vmem:[%s3 + $0x33c] sm:$0xff]
    %v4366 = vld [vmem:[%s3 + $0x344] sm:$0xf]
    %v4367 = vld [vmem:[%s3 + $0x348] sm:$0xff]
    %v4368 = vld [vmem:[%s3 + $0x350] sm:$0xf]
    %v4369 = vld [vmem:[%s3 + $0x354] sm:$0xff]
    %v4370 = vld [vmem:[%s3 + $0x35c] sm:$0xf]
    %v4371 = vld [vmem:[%s3 + $0x360] sm:$0xff]
    %v4372 = vld [vmem:[%s3 + $0x368] sm:$0xf]
    %v4373 = vld [vmem:[%s3 + $0x36c] sm:$0xff]
    %v4374 = vld [vmem:[%s3 + $0x374] sm:$0xf]
    %v4375 = vld [vmem:[%s3 + $0x378] sm:$0xff]
    %v4376 = vld [vmem:[%s3 + $0x380] sm:$0xf]
    %v4377 = vld [vmem:[%s3 + $0x384] sm:$0xff]
    %v4378 = vld [vmem:[%s3 + $0x38c] sm:$0xf]
    %v4379 = vld [vmem:[%s3 + $0x390] sm:$0xff]
    %v4380 = vld [vmem:[%s3 + $0x398] sm:$0xf]
    %v4381 = vld [vmem:[%s3 + $0x39c] sm:$0xff]
    %v4382 = vld [vmem:[%s3 + $0x3a4] sm:$0xf]
    %v4383 = vld [vmem:[%s3 + $0x3a8] sm:$0xff]
    %v4384 = vld [vmem:[%s3 + $0x3b0] sm:$0xf]
    %v4385 = vld [vmem:[%s3 + $0x3b4] sm:$0xff]
    %v4386 = vld [vmem:[%s3 + $0x3bc] sm:$0xf]
    %v4387 = vld [vmem:[%s3 + $0x3c0] sm:$0xff]
    %v4388 = vld [vmem:[%s3 + $0x3c8] sm:$0xf]
    %v4389 = vld [vmem:[%s3 + $0x3cc] sm:$0xff]
    %v4390 = vld [vmem:[%s3 + $0x3d4] sm:$0xf]
    %v4391 = vld [vmem:[%s3 + $0x3d8] sm:$0xff]
    %v4392 = vld [vmem:[%s3 + $0x3e0] sm:$0xf]
    %v4393 = vld [vmem:[%s3 + $0x3e4] sm:$0xff]
    %v4394 = vld [vmem:[%s3 + $0x3ec] sm:$0xf]
    %v4395 = vld [vmem:[%s3 + $0x3f0] sm:$0xff]
    %v4396 = vld [vmem:[%s3 + $0x3f8] sm:$0xf]
    %v4397 = vld [vmem:[%s3 + $0x3fc] sm:$0xff]
    %v4398 = vld [vmem:[%s3 + $0x404] sm:$0xf]
    %v4399 = vld [vmem:[%s3 + $0x408] sm:$0xff]
    %v4400 = vld [vmem:[%s3 + $0x410] sm:$0xf]
    %v4401 = vld [vmem:[%s3 + $0x414] sm:$0xff]
    %v4402 = vld [vmem:[%s3 + $0x41c] sm:$0xf]
    %v4403 = vld [vmem:[%s3 + $0x420] sm:$0xff]
    %v4404 = vld [vmem:[%s3 + $0x428] sm:$0xf]
    %v4405 = vld [vmem:[%s3 + $0x42c] sm:$0xff]
    %v4406 = vld [vmem:[%s3 + $0x434] sm:$0xf]
    %v4407 = vld [vmem:[%s3 + $0x438] sm:$0xff]
    %v4408 = vld [vmem:[%s3 + $0x440] sm:$0xf]
    %v4409 = vld [vmem:[%s3 + $0x444] sm:$0xff]
    %v4410 = vld [vmem:[%s3 + $0x44c] sm:$0xf]
    %v4411 = vld [vmem:[%s3 + $0x450] sm:$0xff]
    %v4412 = vld [vmem:[%s3 + $0x458] sm:$0xf]
    %v4413 = vld [vmem:[%s3 + $0x45c] sm:$0xff]
    %v4414 = vld [vmem:[%s3 + $0x464] sm:$0xf]
    %v4415 = vld [vmem:[%s3 + $0x468] sm:$0xff]
    %v4416 = vld [vmem:[%s3 + $0x470] sm:$0xf]
    %v4417 = vld [vmem:[%s3 + $0x474] sm:$0xff]
    %v4418 = vld [vmem:[%s3 + $0x47c] sm:$0xf]
    %v4419 = vld [vmem:[%s3 + $0x480] sm:$0xff]
    %v4420 = vld [vmem:[%s3 + $0x488] sm:$0xf]
    %v4421 = vld [vmem:[%s3 + $0x48c] sm:$0xff]
    %v4422 = vld [vmem:[%s3 + $0x494] sm:$0xf]
    %v4423 = vld [vmem:[%s3 + $0x498] sm:$0xff]
    %v4424 = vld [vmem:[%s3 + $0x4a0] sm:$0xf]
    %v4425 = vld [vmem:[%s3 + $0x4a4] sm:$0xff]
    %v4426 = vld [vmem:[%s3 + $0x4ac] sm:$0xf]
    %v4427 = vld [vmem:[%s4] sm:$0x7]
    %v4429 = vlaneseq
    %v4430 = vshrl.u32 %v4429, 7
    %v4431 = vsub.s32 0, %v4430
    %v4432 = vrot.slane %v4427, %v4431
    %v4433 = vlaneseq
    %v4434 = vshrl.u32 %v4433, 7
    %v4435 = vsub.s32 1, %v4434
    %v4436 = vrot.slane %v4427, %v4435
    %v4437 = vlaneseq
    %v4438 = vshrl.u32 %v4437, 7
    %v4439 = vsub.s32 2, %v4438
    %v4440 = vrot.slane %v4427, %v4439
    %v4644 = vunpack.c.l.b16 %v4227
    %v4645 = vunpack.c.h.b16 %v4227
    %v4646 = vunpack.c.l.b16 %v4228
    %v4647 = vunpack.c.l.b16 %v4229
    %v4648 = vunpack.c.h.b16 %v4229
    %v4649 = vunpack.c.l.b16 %v4230
    %v4650 = vunpack.c.l.b16 %v4231
    %v4651 = vunpack.c.h.b16 %v4231
    %v4652 = vunpack.c.l.b16 %v4232
    %v4653 = vunpack.c.l.b16 %v4233
    %v4654 = vunpack.c.h.b16 %v4233
    %v4655 = vunpack.c.l.b16 %v4234
    %v4656 = vunpack.c.l.b16 %v4235
    %v4657 = vunpack.c.h.b16 %v4235
    %v4658 = vunpack.c.l.b16 %v4236
    %v4659 = vunpack.c.l.b16 %v4237
    %v4660 = vunpack.c.h.b16 %v4237
    %v4661 = vunpack.c.l.b16 %v4238
    %v4662 = vunpack.c.l.b16 %v4239
    %v4663 = vunpack.c.h.b16 %v4239
    %v4664 = vunpack.c.l.b16 %v4240
    %v4665 = vunpack.c.l.b16 %v4241
    %v4666 = vunpack.c.h.b16 %v4241
    %v4667 = vunpack.c.l.b16 %v4242
    %v4668 = vunpack.c.l.b16 %v4243
    %v4669 = vunpack.c.h.b16 %v4243
    %v4670 = vunpack.c.l.b16 %v4244
    %v4671 = vunpack.c.l.b16 %v4245
    %v4672 = vunpack.c.h.b16 %v4245
    %v4673 = vunpack.c.l.b16 %v4246
    %v4674 = vunpack.c.l.b16 %v4247
    %v4675 = vunpack.c.h.b16 %v4247
    %v4676 = vunpack.c.l.b16 %v4248
    %v4677 = vunpack.c.l.b16 %v4249
    %v4678 = vunpack.c.h.b16 %v4249
    %v4679 = vunpack.c.l.b16 %v4250
    %v4680 = vunpack.c.l.b16 %v4251
    %v4681 = vunpack.c.h.b16 %v4251
    %v4682 = vunpack.c.l.b16 %v4252
    %v4683 = vunpack.c.l.b16 %v4253
    %v4684 = vunpack.c.h.b16 %v4253
    %v4685 = vunpack.c.l.b16 %v4254
    %v4686 = vunpack.c.l.b16 %v4255
    %v4687 = vunpack.c.h.b16 %v4255
    %v4688 = vunpack.c.l.b16 %v4256
    %v4689 = vunpack.c.l.b16 %v4257
    %v4690 = vunpack.c.h.b16 %v4257
    %v4691 = vunpack.c.l.b16 %v4258
    %v4692 = vunpack.c.l.b16 %v4259
    %v4693 = vunpack.c.h.b16 %v4259
    %v4694 = vunpack.c.l.b16 %v4260
    %v4695 = vunpack.c.l.b16 %v4261
    %v4696 = vunpack.c.h.b16 %v4261
    %v4697 = vunpack.c.l.b16 %v4262
    %v4698 = vunpack.c.l.b16 %v4263
    %v4699 = vunpack.c.h.b16 %v4263
    %v4700 = vunpack.c.l.b16 %v4264
    %v4701 = vunpack.c.l.b16 %v4265
    %v4702 = vunpack.c.h.b16 %v4265
    %v4703 = vunpack.c.l.b16 %v4266
    %v4704 = vunpack.c.l.b16 %v4267
    %v4705 = vunpack.c.h.b16 %v4267
    %v4706 = vunpack.c.l.b16 %v4268
    %v4707 = vunpack.c.l.b16 %v4269
    %v4708 = vunpack.c.h.b16 %v4269
    %v4709 = vunpack.c.l.b16 %v4270
    %v4710 = vunpack.c.l.b16 %v4271
    %v4711 = vunpack.c.h.b16 %v4271
    %v4712 = vunpack.c.l.b16 %v4272
    %v4713 = vunpack.c.l.b16 %v4273
    %v4714 = vunpack.c.h.b16 %v4273
    %v4715 = vunpack.c.l.b16 %v4274
    %v4716 = vunpack.c.l.b16 %v4275
    %v4717 = vunpack.c.h.b16 %v4275
    %v4718 = vunpack.c.l.b16 %v4276
    %v4719 = vunpack.c.l.b16 %v4277
    %v4720 = vunpack.c.h.b16 %v4277
    %v4721 = vunpack.c.l.b16 %v4278
    %v4722 = vunpack.c.l.b16 %v4279
    %v4723 = vunpack.c.h.b16 %v4279
    %v4724 = vunpack.c.l.b16 %v4280
    %v4725 = vunpack.c.l.b16 %v4281
    %v4726 = vunpack.c.h.b16 %v4281
    %v4727 = vunpack.c.l.b16 %v4282
    %v4728 = vunpack.c.l.b16 %v4283
    %v4729 = vunpack.c.h.b16 %v4283
    %v4730 = vunpack.c.l.b16 %v4284
    %v4731 = vunpack.c.l.b16 %v4285
    %v4732 = vunpack.c.h.b16 %v4285
    %v4733 = vunpack.c.l.b16 %v4286
    %v4734 = vunpack.c.l.b16 %v4287
    %v4735 = vunpack.c.h.b16 %v4287
    %v4736 = vunpack.c.l.b16 %v4288
    %v4737 = vunpack.c.l.b16 %v4289
    %v4738 = vunpack.c.h.b16 %v4289
    %v4739 = vunpack.c.l.b16 %v4290
    %v4740 = vunpack.c.l.b16 %v4291
    %v4741 = vunpack.c.h.b16 %v4291
    %v4742 = vunpack.c.l.b16 %v4292
    %v4743 = vunpack.c.l.b16 %v4293
    %v4744 = vunpack.c.h.b16 %v4293
    %v4745 = vunpack.c.l.b16 %v4294
    %v4746 = vunpack.c.l.b16 %v4295
    %v4747 = vunpack.c.h.b16 %v4295
    %v4748 = vunpack.c.l.b16 %v4296
    %v4749 = vunpack.c.l.b16 %v4297
    %v4750 = vunpack.c.h.b16 %v4297
    %v4751 = vunpack.c.l.b16 %v4298
    %v4752 = vunpack.c.l.b16 %v4299
    %v4753 = vunpack.c.h.b16 %v4299
    %v4754 = vunpack.c.l.b16 %v4300
    %v4755 = vunpack.c.l.b16 %v4301
    %v4756 = vunpack.c.h.b16 %v4301
    %v4757 = vunpack.c.l.b16 %v4302
    %v4758 = vunpack.c.l.b16 %v4303
    %v4759 = vunpack.c.h.b16 %v4303
    %v4760 = vunpack.c.l.b16 %v4304
    %v4761 = vunpack.c.l.b16 %v4305
    %v4762 = vunpack.c.h.b16 %v4305
    %v4763 = vunpack.c.l.b16 %v4306
    %v4764 = vunpack.c.l.b16 %v4307
    %v4765 = vunpack.c.h.b16 %v4307
    %v4766 = vunpack.c.l.b16 %v4308
    %v4767 = vunpack.c.l.b16 %v4309
    %v4768 = vunpack.c.h.b16 %v4309
    %v4769 = vunpack.c.l.b16 %v4310
    %v4770 = vunpack.c.l.b16 %v4311
    %v4771 = vunpack.c.h.b16 %v4311
    %v4772 = vunpack.c.l.b16 %v4312
    %v4773 = vunpack.c.l.b16 %v4313
    %v4774 = vunpack.c.h.b16 %v4313
    %v4775 = vunpack.c.l.b16 %v4314
    %v4776 = vunpack.c.l.b16 %v4315
    %v4777 = vunpack.c.h.b16 %v4315
    %v4778 = vunpack.c.l.b16 %v4316
    %v4779 = vunpack.c.l.b16 %v4317
    %v4780 = vunpack.c.h.b16 %v4317
    %v4781 = vunpack.c.l.b16 %v4318
    %v4782 = vunpack.c.l.b16 %v4319
    %v4783 = vunpack.c.h.b16 %v4319
    %v4784 = vunpack.c.l.b16 %v4320
    %v4785 = vunpack.c.l.b16 %v4321
    %v4786 = vunpack.c.h.b16 %v4321
    %v4787 = vunpack.c.l.b16 %v4322
    %v4788 = vunpack.c.l.b16 %v4323
    %v4789 = vunpack.c.h.b16 %v4323
    %v4790 = vunpack.c.l.b16 %v4324
    %v4791 = vunpack.c.l.b16 %v4325
    %v4792 = vunpack.c.h.b16 %v4325
    %v4793 = vunpack.c.l.b16 %v4326
    %v4794 = vunpack.c.l.b16 %v4327
    %v4795 = vunpack.c.h.b16 %v4327
    %v4796 = vunpack.c.l.b16 %v4328
    %v4797 = vunpack.c.l.b16 %v4329
    %v4798 = vunpack.c.h.b16 %v4329
    %v4799 = vunpack.c.l.b16 %v4330
    %v4800 = vunpack.c.l.b16 %v4331
    %v4801 = vunpack.c.h.b16 %v4331
    %v4802 = vunpack.c.l.b16 %v4332
    %v4803 = vunpack.c.l.b16 %v4333
    %v4804 = vunpack.c.h.b16 %v4333
    %v4805 = vunpack.c.l.b16 %v4334
    %v4806 = vunpack.c.l.b16 %v4335
    %v4807 = vunpack.c.h.b16 %v4335
    %v4808 = vunpack.c.l.b16 %v4336
    %v4809 = vunpack.c.l.b16 %v4337
    %v4810 = vunpack.c.h.b16 %v4337
    %v4811 = vunpack.c.l.b16 %v4338
    %v4812 = vunpack.c.l.b16 %v4339
    %v4813 = vunpack.c.h.b16 %v4339
    %v4814 = vunpack.c.l.b16 %v4340
    %v4815 = vunpack.c.l.b16 %v4341
    %v4816 = vunpack.c.h.b16 %v4341
    %v4817 = vunpack.c.l.b16 %v4342
    %v4818 = vunpack.c.l.b16 %v4343
    %v4819 = vunpack.c.h.b16 %v4343
    %v4820 = vunpack.c.l.b16 %v4344
    %v4821 = vunpack.c.l.b16 %v4345
    %v4822 = vunpack.c.h.b16 %v4345
    %v4823 = vunpack.c.l.b16 %v4346
    %v4824 = vunpack.c.l.b16 %v4347
    %v4825 = vunpack.c.h.b16 %v4347
    %v4826 = vunpack.c.l.b16 %v4348
    %v4827 = vunpack.c.l.b16 %v4349
    %v4828 = vunpack.c.h.b16 %v4349
    %v4829 = vunpack.c.l.b16 %v4350
    %v4830 = vunpack.c.l.b16 %v4351
    %v4831 = vunpack.c.h.b16 %v4351
    %v4832 = vunpack.c.l.b16 %v4352
    %v4833 = vunpack.c.l.b16 %v4353
    %v4834 = vunpack.c.h.b16 %v4353
    %v4835 = vunpack.c.l.b16 %v4354
    %v4836 = vunpack.c.l.b16 %v4355
    %v4837 = vunpack.c.h.b16 %v4355
    %v4838 = vunpack.c.l.b16 %v4356
    %v4839 = vunpack.c.l.b16 %v4357
    %v4840 = vunpack.c.h.b16 %v4357
    %v4841 = vunpack.c.l.b16 %v4358
    %v4842 = vunpack.c.l.b16 %v4359
    %v4843 = vunpack.c.h.b16 %v4359
    %v4844 = vunpack.c.l.b16 %v4360
    %v4845 = vunpack.c.l.b16 %v4361
    %v4846 = vunpack.c.h.b16 %v4361
    %v4847 = vunpack.c.l.b16 %v4362
    %v4848 = vunpack.c.l.b16 %v4363
    %v4849 = vunpack.c.h.b16 %v4363
    %v4850 = vunpack.c.l.b16 %v4364
    %v4851 = vunpack.c.l.b16 %v4365
    %v4852 = vunpack.c.h.b16 %v4365
    %v4853 = vunpack.c.l.b16 %v4366
    %v4854 = vunpack.c.l.b16 %v4367
    %v4855 = vunpack.c.h.b16 %v4367
    %v4856 = vunpack.c.l.b16 %v4368
    %v4857 = vunpack.c.l.b16 %v4369
    %v4858 = vunpack.c.h.b16 %v4369
    %v4859 = vunpack.c.l.b16 %v4370
    %v4860 = vunpack.c.l.b16 %v4371
    %v4861 = vunpack.c.h.b16 %v4371
    %v4862 = vunpack.c.l.b16 %v4372
    %v4863 = vunpack.c.l.b16 %v4373
    %v4864 = vunpack.c.h.b16 %v4373
    %v4865 = vunpack.c.l.b16 %v4374
    %v4866 = vunpack.c.l.b16 %v4375
    %v4867 = vunpack.c.h.b16 %v4375
    %v4868 = vunpack.c.l.b16 %v4376
    %v4869 = vunpack.c.l.b16 %v4377
    %v4870 = vunpack.c.h.b16 %v4377
    %v4871 = vunpack.c.l.b16 %v4378
    %v4872 = vunpack.c.l.b16 %v4379
    %v4873 = vunpack.c.h.b16 %v4379
    %v4874 = vunpack.c.l.b16 %v4380
    %v4875 = vunpack.c.l.b16 %v4381
    %v4876 = vunpack.c.h.b16 %v4381
    %v4877 = vunpack.c.l.b16 %v4382
    %v4878 = vunpack.c.l.b16 %v4383
    %v4879 = vunpack.c.h.b16 %v4383
    %v4880 = vunpack.c.l.b16 %v4384
    %v4881 = vunpack.c.l.b16 %v4385
    %v4882 = vunpack.c.h.b16 %v4385
    %v4883 = vunpack.c.l.b16 %v4386
    %v4884 = vunpack.c.l.b16 %v4387
    %v4885 = vunpack.c.h.b16 %v4387
    %v4886 = vunpack.c.l.b16 %v4388
    %v4887 = vunpack.c.l.b16 %v4389
    %v4888 = vunpack.c.h.b16 %v4389
    %v4889 = vunpack.c.l.b16 %v4390
    %v4890 = vunpack.c.l.b16 %v4391
    %v4891 = vunpack.c.h.b16 %v4391
    %v4892 = vunpack.c.l.b16 %v4392
    %v4893 = vunpack.c.l.b16 %v4393
    %v4894 = vunpack.c.h.b16 %v4393
    %v4895 = vunpack.c.l.b16 %v4394
    %v4896 = vunpack.c.l.b16 %v4395
    %v4897 = vunpack.c.h.b16 %v4395
    %v4898 = vunpack.c.l.b16 %v4396
    %v4899 = vunpack.c.l.b16 %v4397
    %v4900 = vunpack.c.h.b16 %v4397
    %v4901 = vunpack.c.l.b16 %v4398
    %v4902 = vunpack.c.l.b16 %v4399
    %v4903 = vunpack.c.h.b16 %v4399
    %v4904 = vunpack.c.l.b16 %v4400
    %v4905 = vunpack.c.l.b16 %v4401
    %v4906 = vunpack.c.h.b16 %v4401
    %v4907 = vunpack.c.l.b16 %v4402
    %v4908 = vunpack.c.l.b16 %v4403
    %v4909 = vunpack.c.h.b16 %v4403
    %v4910 = vunpack.c.l.b16 %v4404
    %v4911 = vunpack.c.l.b16 %v4405
    %v4912 = vunpack.c.h.b16 %v4405
    %v4913 = vunpack.c.l.b16 %v4406
    %v4914 = vunpack.c.l.b16 %v4407
    %v4915 = vunpack.c.h.b16 %v4407
    %v4916 = vunpack.c.l.b16 %v4408
    %v4917 = vunpack.c.l.b16 %v4409
    %v4918 = vunpack.c.h.b16 %v4409
    %v4919 = vunpack.c.l.b16 %v4410
    %v4920 = vunpack.c.l.b16 %v4411
    %v4921 = vunpack.c.h.b16 %v4411
    %v4922 = vunpack.c.l.b16 %v4412
    %v4923 = vunpack.c.l.b16 %v4413
    %v4924 = vunpack.c.h.b16 %v4413
    %v4925 = vunpack.c.l.b16 %v4414
    %v4926 = vunpack.c.l.b16 %v4415
    %v4927 = vunpack.c.h.b16 %v4415
    %v4928 = vunpack.c.l.b16 %v4416
    %v4929 = vunpack.c.l.b16 %v4417
    %v4930 = vunpack.c.h.b16 %v4417
    %v4931 = vunpack.c.l.b16 %v4418
    %v4932 = vunpack.c.l.b16 %v4419
    %v4933 = vunpack.c.h.b16 %v4419
    %v4934 = vunpack.c.l.b16 %v4420
    %v4935 = vunpack.c.l.b16 %v4421
    %v4936 = vunpack.c.h.b16 %v4421
    %v4937 = vunpack.c.l.b16 %v4422
    %v4938 = vunpack.c.l.b16 %v4423
    %v4939 = vunpack.c.h.b16 %v4423
    %v4940 = vunpack.c.l.b16 %v4424
    %v4941 = vunpack.c.l.b16 %v4425
    %v4942 = vunpack.c.h.b16 %v4425
    %v4943 = vunpack.c.l.b16 %v4426
    %v4944 = vpack.c.b16 %v4647, %v4644
    %v4945 = vpack.c.b16 %v4648, %v4645
    %v4946 = vpack.c.b16 %v4649, %v4646
    %v4947 = vpack.c.b16 %v4653, %v4650
    %v4948 = vpack.c.b16 %v4654, %v4651
    %v4949 = vpack.c.b16 %v4655, %v4652
    %v4950 = vpack.c.b16 %v4659, %v4656
    %v4951 = vpack.c.b16 %v4660, %v4657
    %v4952 = vpack.c.b16 %v4661, %v4658
    %v4953 = vpack.c.b16 %v4665, %v4662
    %v4954 = vpack.c.b16 %v4666, %v4663
    %v4955 = vpack.c.b16 %v4667, %v4664
    %v4956 = vpack.c.b16 %v4671, %v4668
    %v4957 = vpack.c.b16 %v4672, %v4669
    %v4958 = vpack.c.b16 %v4673, %v4670
    %v4959 = vpack.c.b16 %v4677, %v4674
    %v4960 = vpack.c.b16 %v4678, %v4675
    %v4961 = vpack.c.b16 %v4679, %v4676
    %v4962 = vpack.c.b16 %v4683, %v4680
    %v4963 = vpack.c.b16 %v4684, %v4681
    %v4964 = vpack.c.b16 %v4685, %v4682
    %v4965 = vpack.c.b16 %v4689, %v4686
    %v4966 = vpack.c.b16 %v4690, %v4687
    %v4967 = vpack.c.b16 %v4691, %v4688
    %v4968 = vpack.c.b16 %v4695, %v4692
    %v4969 = vpack.c.b16 %v4696, %v4693
    %v4970 = vpack.c.b16 %v4697, %v4694
    %v4971 = vpack.c.b16 %v4701, %v4698
    %v4972 = vpack.c.b16 %v4702, %v4699
    %v4973 = vpack.c.b16 %v4703, %v4700
    %v4974 = vpack.c.b16 %v4707, %v4704
    %v4975 = vpack.c.b16 %v4708, %v4705
    %v4976 = vpack.c.b16 %v4709, %v4706
    %v4977 = vpack.c.b16 %v4713, %v4710
    %v4978 = vpack.c.b16 %v4714, %v4711
    %v4979 = vpack.c.b16 %v4715, %v4712
    %v4980 = vpack.c.b16 %v4719, %v4716
    %v4981 = vpack.c.b16 %v4720, %v4717
    %v4982 = vpack.c.b16 %v4721, %v4718
    %v4983 = vpack.c.b16 %v4725, %v4722
    %v4984 = vpack.c.b16 %v4726, %v4723
    %v4985 = vpack.c.b16 %v4727, %v4724
    %v4986 = vpack.c.b16 %v4731, %v4728
    %v4987 = vpack.c.b16 %v4732, %v4729
    %v4988 = vpack.c.b16 %v4733, %v4730
    %v4989 = vpack.c.b16 %v4737, %v4734
    %v4990 = vpack.c.b16 %v4738, %v4735
    %v4991 = vpack.c.b16 %v4739, %v4736
    %v4992 = vpack.c.b16 %v4743, %v4740
    %v4993 = vpack.c.b16 %v4744, %v4741
    %v4994 = vpack.c.b16 %v4745, %v4742
    %v4995 = vpack.c.b16 %v4749, %v4746
    %v4996 = vpack.c.b16 %v4750, %v4747
    %v4997 = vpack.c.b16 %v4751, %v4748
    %v4998 = vpack.c.b16 %v4755, %v4752
    %v4999 = vpack.c.b16 %v4756, %v4753
    %v5000 = vpack.c.b16 %v4757, %v4754
    %v5001 = vpack.c.b16 %v4761, %v4758
    %v5002 = vpack.c.b16 %v4762, %v4759
    %v5003 = vpack.c.b16 %v4763, %v4760
    %v5004 = vpack.c.b16 %v4767, %v4764
    %v5005 = vpack.c.b16 %v4768, %v4765
    %v5006 = vpack.c.b16 %v4769, %v4766
    %v5007 = vpack.c.b16 %v4773, %v4770
    %v5008 = vpack.c.b16 %v4774, %v4771
    %v5009 = vpack.c.b16 %v4775, %v4772
    %v5010 = vpack.c.b16 %v4779, %v4776
    %v5011 = vpack.c.b16 %v4780, %v4777
    %v5012 = vpack.c.b16 %v4781, %v4778
    %v5013 = vpack.c.b16 %v4785, %v4782
    %v5014 = vpack.c.b16 %v4786, %v4783
    %v5015 = vpack.c.b16 %v4787, %v4784
    %v5016 = vpack.c.b16 %v4791, %v4788
    %v5017 = vpack.c.b16 %v4792, %v4789
    %v5018 = vpack.c.b16 %v4793, %v4790
    %v5019 = vpack.c.b16 %v4797, %v4794
    %v5020 = vpack.c.b16 %v4798, %v4795
    %v5021 = vpack.c.b16 %v4799, %v4796
    %v5022 = vpack.c.b16 %v4803, %v4800
    %v5023 = vpack.c.b16 %v4804, %v4801
    %v5024 = vpack.c.b16 %v4805, %v4802
    %v5025 = vpack.c.b16 %v4809, %v4806
    %v5026 = vpack.c.b16 %v4810, %v4807
    %v5027 = vpack.c.b16 %v4811, %v4808
    %v5028 = vpack.c.b16 %v4815, %v4812
    %v5029 = vpack.c.b16 %v4816, %v4813
    %v5030 = vpack.c.b16 %v4817, %v4814
    %v5031 = vpack.c.b16 %v4821, %v4818
    %v5032 = vpack.c.b16 %v4822, %v4819
    %v5033 = vpack.c.b16 %v4823, %v4820
    %v5034 = vpack.c.b16 %v4827, %v4824
    %v5035 = vpack.c.b16 %v4828, %v4825
    %v5036 = vpack.c.b16 %v4829, %v4826
    %v5037 = vpack.c.b16 %v4833, %v4830
    %v5038 = vpack.c.b16 %v4834, %v4831
    %v5039 = vpack.c.b16 %v4835, %v4832
    %v5040 = vpack.c.b16 %v4839, %v4836
    %v5041 = vpack.c.b16 %v4840, %v4837
    %v5042 = vpack.c.b16 %v4841, %v4838
    %v5043 = vpack.c.b16 %v4845, %v4842
    %v5044 = vpack.c.b16 %v4846, %v4843
    %v5045 = vpack.c.b16 %v4847, %v4844
    %v5046 = vpack.c.b16 %v4851, %v4848
    %v5047 = vpack.c.b16 %v4852, %v4849
    %v5048 = vpack.c.b16 %v4853, %v4850
    %v5049 = vpack.c.b16 %v4857, %v4854
    %v5050 = vpack.c.b16 %v4858, %v4855
    %v5051 = vpack.c.b16 %v4859, %v4856
    %v5052 = vpack.c.b16 %v4863, %v4860
    %v5053 = vpack.c.b16 %v4864, %v4861
    %v5054 = vpack.c.b16 %v4865, %v4862
    %v5055 = vpack.c.b16 %v4869, %v4866
    %v5056 = vpack.c.b16 %v4870, %v4867
    %v5057 = vpack.c.b16 %v4871, %v4868
    %v5058 = vpack.c.b16 %v4875, %v4872
    %v5059 = vpack.c.b16 %v4876, %v4873
    %v5060 = vpack.c.b16 %v4877, %v4874
    %v5061 = vpack.c.b16 %v4881, %v4878
    %v5062 = vpack.c.b16 %v4882, %v4879
    %v5063 = vpack.c.b16 %v4883, %v4880
    %v5064 = vpack.c.b16 %v4887, %v4884
    %v5065 = vpack.c.b16 %v4888, %v4885
    %v5066 = vpack.c.b16 %v4889, %v4886
    %v5067 = vpack.c.b16 %v4893, %v4890
    %v5068 = vpack.c.b16 %v4894, %v4891
    %v5069 = vpack.c.b16 %v4895, %v4892
    %v5070 = vpack.c.b16 %v4899, %v4896
    %v5071 = vpack.c.b16 %v4900, %v4897
    %v5072 = vpack.c.b16 %v4901, %v4898
    %v5073 = vpack.c.b16 %v4905, %v4902
    %v5074 = vpack.c.b16 %v4906, %v4903
    %v5075 = vpack.c.b16 %v4907, %v4904
    %v5076 = vpack.c.b16 %v4911, %v4908
    %v5077 = vpack.c.b16 %v4912, %v4909
    %v5078 = vpack.c.b16 %v4913, %v4910
    %v5079 = vpack.c.b16 %v4917, %v4914
    %v5080 = vpack.c.b16 %v4918, %v4915
    %v5081 = vpack.c.b16 %v4919, %v4916
    %v5082 = vpack.c.b16 %v4923, %v4920
    %v5083 = vpack.c.b16 %v4924, %v4921
    %v5084 = vpack.c.b16 %v4925, %v4922
    %v5085 = vpack.c.b16 %v4929, %v4926
    %v5086 = vpack.c.b16 %v4930, %v4927
    %v5087 = vpack.c.b16 %v4931, %v4928
    %v5088 = vpack.c.b16 %v4935, %v4932
    %v5089 = vpack.c.b16 %v4936, %v4933
    %v5090 = vpack.c.b16 %v4937, %v4934
    %v5091 = vpack.c.b16 %v4941, %v4938
    %v5092 = vpack.c.b16 %v4942, %v4939
    %v5093 = vpack.c.b16 %v4943, %v4940
    %vm5244 = vcmask 261120
    %v5246 = vsel %vm5244, %v4226, 0
    %5248 = vmatprep.subr.bf16.mxu0 %v4966
    %5249 = vmatpush1.bf16.msra.mxu0 %v4965
    %5250 = vmatprep.subr.bf16.mxu0 %v4963
    %5251 = vmatpush1.bf16.msra.mxu0 %v4962
    %5252 = vmatprep.subr.bf16.mxu0 %v4960
    %5253 = vmatpush1.bf16.msra.mxu0 %v4959
    %5254 = vmatprep.subr.bf16.mxu0 %v4957
    %5255 = vmatpush1.bf16.msra.mxu0 %v4956
    %5256 = vmatprep.subr.bf16.mxu0 %v4954
    %5257 = vmatpush1.bf16.msra.mxu0 %v4953
    %5258 = vmatprep.subr.bf16.mxu0 %v4951
    %5259 = vmatpush1.bf16.msra.mxu0 %v4950
    %5260 = vmatprep.subr.bf16.mxu0 %v4948
    %5261 = vmatpush1.bf16.msra.mxu0 %v4947
    %5262 = vmatprep.subr.bf16.mxu0 %v4945
    %5263 = vmatpush1.bf16.msra.mxu0 %v4944
    %5264 = vmatprep.subr.bf16.mxu0 %v4990
    %5265 = vmatpush2.bf16.msra.mxu0 %v4989
    %5266 = vmatprep.subr.bf16.mxu0 %v4987
    %5267 = vmatpush2.bf16.msra.mxu0 %v4986
    %5268 = vmatprep.subr.bf16.mxu0 %v4984
    %5269 = vmatpush2.bf16.msra.mxu0 %v4983
    %5270 = vmatprep.subr.bf16.mxu0 %v4981
    %5271 = vmatpush2.bf16.msra.mxu0 %v4980
    %5272 = vmatprep.subr.bf16.mxu0 %v4978
    %5273 = vmatpush2.bf16.msra.mxu0 %v4977
    %5274 = vmatprep.subr.bf16.mxu0 %v4975
    %5275 = vmatpush2.bf16.msra.mxu0 %v4974
    %5276 = vmatprep.subr.bf16.mxu0 %v4972
    %5277 = vmatpush2.bf16.msra.mxu0 %v4971
    %5278 = vmatprep.subr.bf16.mxu0 %v4969
    %5279 = vmatpush2.bf16.msra.mxu0 %v4968
    %5280 = vmatprep.mubr.bf16.mxu0 %v4221
    %5281 = vmatmul.mubr.bf16.gmra.mxu0 %v4220
    %v5282 = vpop.f32.mrf.mxu0
    %v5283 = vadd.f32 %v4432, %v5282
    %v5284 = vpop.f32.mrf.mxu0
    %v5285 = vadd.f32 %v4436, %v5284
    %v5286 = vpop.f32.mrf.mxu0
    %v5287 = vpop.f32.mrf.mxu0
    %5288 = vdwg.mxu0
    %5289 = vmatprep.subr.bf16.mxu0 %v5014
    %5290 = vmatpush1.bf16.msra.mxu0 %v5013
    %5291 = vmatprep.subr.bf16.mxu0 %v5011
    %5292 = vmatpush1.bf16.msra.mxu0 %v5010
    %5293 = vmatprep.subr.bf16.mxu0 %v5008
    %5294 = vmatpush1.bf16.msra.mxu0 %v5007
    %5295 = vmatprep.subr.bf16.mxu0 %v5005
    %5296 = vmatpush1.bf16.msra.mxu0 %v5004
    %5297 = vmatprep.subr.bf16.mxu0 %v5002
    %5298 = vmatpush1.bf16.msra.mxu0 %v5001
    %5299 = vmatprep.subr.bf16.mxu0 %v4999
    %5300 = vmatpush1.bf16.msra.mxu0 %v4998
    %5301 = vmatprep.subr.bf16.mxu0 %v4996
    %5302 = vmatpush1.bf16.msra.mxu0 %v4995
    %5303 = vmatprep.subr.bf16.mxu0 %v4993
    %5304 = vmatpush1.bf16.msra.mxu0 %v4992
    %5305 = vmatprep.subr.bf16.mxu0 %v5038
    %5306 = vmatpush2.bf16.msra.mxu0 %v5037
    %5307 = vmatprep.subr.bf16.mxu0 %v5035
    %5308 = vmatpush2.bf16.msra.mxu0 %v5034
    %5309 = vmatprep.subr.bf16.mxu0 %v5032
    %5310 = vmatpush2.bf16.msra.mxu0 %v5031
    %5311 = vmatprep.subr.bf16.mxu0 %v5029
    %5312 = vmatpush2.bf16.msra.mxu0 %v5028
    %5313 = vmatprep.subr.bf16.mxu0 %v5026
    %5314 = vmatpush2.bf16.msra.mxu0 %v5025
    %5315 = vmatprep.subr.bf16.mxu0 %v5023
    %5316 = vmatpush2.bf16.msra.mxu0 %v5022
    %5317 = vmatprep.subr.bf16.mxu0 %v5020
    %5318 = vmatpush2.bf16.msra.mxu0 %v5019
    %5319 = vmatprep.subr.bf16.mxu0 %v5017
    %5320 = vmatpush2.bf16.msra.mxu0 %v5016
    %5321 = vmatprep.mubr.bf16.mxu0 %v4223
    %5322 = vmatmul.mubr.bf16.gmra.mxu0 %v4222
    %v5323 = vpop.f32.mrf.mxu0
    %v5324 = vadd.f32 %v5283, %v5323
    %v5325 = vpop.f32.mrf.mxu0
    %v5326 = vadd.f32 %v5285, %v5325
    %v5327 = vpop.f32.mrf.mxu0
    %v5328 = vpop.f32.mrf.mxu0
    %5329 = vdwg.mxu0
    %5330 = vmatprep.subr.bf16.mxu0 %v5062
    %5331 = vmatpush1.bf16.msra.mxu0 %v5061
    %5332 = vmatprep.subr.bf16.mxu0 %v5059
    %5333 = vmatpush1.bf16.msra.mxu0 %v5058
    %5334 = vmatprep.subr.bf16.mxu0 %v5056
    %5335 = vmatpush1.bf16.msra.mxu0 %v5055
    %5336 = vmatprep.subr.bf16.mxu0 %v5053
    %5337 = vmatpush1.bf16.msra.mxu0 %v5052
    %5338 = vmatprep.subr.bf16.mxu0 %v5050
    %5339 = vmatpush1.bf16.msra.mxu0 %v5049
    %5340 = vmatprep.subr.bf16.mxu0 %v5047
    %5341 = vmatpush1.bf16.msra.mxu0 %v5046
    %5342 = vmatprep.subr.bf16.mxu0 %v5044
    %5343 = vmatpush1.bf16.msra.mxu0 %v5043
    %5344 = vmatprep.subr.bf16.mxu0 %v5041
    %5345 = vmatpush1.bf16.msra.mxu0 %v5040
    %5346 = vmatprep.subr.bf16.mxu0 %v5086
    %5347 = vmatpush2.bf16.msra.mxu0 %v5085
    %5348 = vmatprep.subr.bf16.mxu0 %v5083
    %5349 = vmatpush2.bf16.msra.mxu0 %v5082
    %5350 = vmatprep.subr.bf16.mxu0 %v5080
    %5351 = vmatpush2.bf16.msra.mxu0 %v5079
    %5352 = vmatprep.subr.bf16.mxu0 %v5077
    %5353 = vmatpush2.bf16.msra.mxu0 %v5076
    %5354 = vmatprep.subr.bf16.mxu0 %v5074
    %5355 = vmatpush2.bf16.msra.mxu0 %v5073
    %5356 = vmatprep.subr.bf16.mxu0 %v5071
    %5357 = vmatpush2.bf16.msra.mxu0 %v5070
    %5358 = vmatprep.subr.bf16.mxu0 %v5068
    %5359 = vmatpush2.bf16.msra.mxu0 %v5067
    %5360 = vmatprep.subr.bf16.mxu0 %v5065
    %5361 = vmatpush2.bf16.msra.mxu0 %v5064
    %5362 = vmatprep.mubr.bf16.mxu0 %v4225
    %5363 = vmatmul.mubr.bf16.gmra.mxu0 %v4224
    %v5364 = vpop.f32.mrf.mxu0
    %v5365 = vadd.f32 %v5324, %v5364
    %v5366 = vpop.f32.mrf.mxu0
    %v5367 = vadd.f32 %v5326, %v5366
    %v5368 = vpop.f32.mrf.mxu0
    %v5369 = vpop.f32.mrf.mxu0
    %5370 = vdwg.mxu0
    %5371 = vmatprep.subr.bf16.mxu0 0
    %5372 = vmatpush1.bf16.msra.mxu0 0
    %5373 = vmatprep.subr.bf16.mxu0 0
    %5374 = vmatpush1.bf16.msra.mxu0 0
    %5375 = vmatprep.subr.bf16.mxu0 0
    %5376 = vmatpush1.bf16.msra.mxu0 0
    %5377 = vmatprep.subr.bf16.mxu0 0
    %5378 = vmatpush1.bf16.msra.mxu0 0
    %5379 = vmatprep.subr.bf16.mxu0 0
    %5380 = vmatpush1.bf16.msra.mxu0 0
    %5381 = vmatprep.subr.bf16.mxu0 0
    %5382 = vmatpush1.bf16.msra.mxu0 0
    %5383 = vmatprep.subr.bf16.mxu0 %v5092
    %5384 = vmatpush1.bf16.msra.mxu0 %v5091
    %5385 = vmatprep.subr.bf16.mxu0 %v5089
    %5386 = vmatpush1.bf16.msra.mxu0 %v5088
    %5387 = vmatprep.subr.bf16.mxu0 0
    %5388 = vmatpush2.bf16.msra.mxu0 0
    %5389 = vmatprep.subr.bf16.mxu0 0
    %5390 = vmatpush2.bf16.msra.mxu0 0
    %5391 = vmatprep.subr.bf16.mxu0 0
    %5392 = vmatpush2.bf16.msra.mxu0 0
    %5393 = vmatprep.subr.bf16.mxu0 0
    %5394 = vmatpush2.bf16.msra.mxu0 0
    %5395 = vmatprep.subr.bf16.mxu0 0
    %5396 = vmatpush2.bf16.msra.mxu0 0
    %5397 = vmatprep.subr.bf16.mxu0 0
    %5398 = vmatpush2.bf16.msra.mxu0 0
    %5399 = vmatprep.subr.bf16.mxu0 0
    %5400 = vmatpush2.bf16.msra.mxu0 0
    %5401 = vmatprep.subr.bf16.mxu0 0
    %5402 = vmatpush2.bf16.msra.mxu0 0
    %5403 = vmatprep.mubr.bf16.mxu0 0
    %5404 = vmatmul.mubr.bf16.gmra.mxu0 %v5246
    %v5405 = vpop.f32.mrf.mxu0
    %v5406 = vadd.f32 %v5365, %v5405
    %v5407 = vpop.f32.mrf.mxu0
    %v5408 = vadd.f32 %v5367, %v5407
    %v5409 = vpop.f32.mrf.mxu0
    %v5410 = vpop.f32.mrf.mxu0
    %5411 = vdwg.mxu0
    %5412 = vmatprep.subr.bf16.mxu0 0
    %5413 = vmatpush1.bf16.msra.mxu0 %v4967
    %5414 = vmatprep.subr.bf16.mxu0 0
    %5415 = vmatpush1.bf16.msra.mxu0 %v4964
    %5416 = vmatprep.subr.bf16.mxu0 0
    %5417 = vmatpush1.bf16.msra.mxu0 %v4961
    %5418 = vmatprep.subr.bf16.mxu0 0
    %5419 = vmatpush1.bf16.msra.mxu0 %v4958
    %5420 = vmatprep.subr.bf16.mxu0 0
    %5421 = vmatpush1.bf16.msra.mxu0 %v4955
    %5422 = vmatprep.subr.bf16.mxu0 0
    %5423 = vmatpush1.bf16.msra.mxu0 %v4952
    %5424 = vmatprep.subr.bf16.mxu0 0
    %5425 = vmatpush1.bf16.msra.mxu0 %v4949
    %5426 = vmatprep.subr.bf16.mxu0 0
    %5427 = vmatpush1.bf16.msra.mxu0 %v4946
    %5428 = vmatprep.subr.bf16.mxu0 0
    %5429 = vmatpush2.bf16.msra.mxu0 %v4991
    %5430 = vmatprep.subr.bf16.mxu0 0
    %5431 = vmatpush2.bf16.msra.mxu0 %v4988
    %5432 = vmatprep.subr.bf16.mxu0 0
    %5433 = vmatpush2.bf16.msra.mxu0 %v4985
    %5434 = vmatprep.subr.bf16.mxu0 0
    %5435 = vmatpush2.bf16.msra.mxu0 %v4982
    %5436 = vmatprep.subr.bf16.mxu0 0
    %5437 = vmatpush2.bf16.msra.mxu0 %v4979
    %5438 = vmatprep.subr.bf16.mxu0 0
    %5439 = vmatpush2.bf16.msra.mxu0 %v4976
    %5440 = vmatprep.subr.bf16.mxu0 0
    %5441 = vmatpush2.bf16.msra.mxu0 %v4973
    %5442 = vmatprep.subr.bf16.mxu0 0
    %5443 = vmatpush2.bf16.msra.mxu0 %v4970
    %5444 = vmatprep.mubr.bf16.mxu0 %v4221
    %5445 = vmatmul.mubr.bf16.gmra.mxu0 %v4220
    %v5446 = vpop.f32.mrf.mxu0
    %v5447 = vadd.f32 %v4440, %v5446
    %v5448 = vpop.f32.mrf.mxu0
    %v5449 = vpop.f32.mrf.mxu0
    %v5450 = vpop.f32.mrf.mxu0
    %5451 = vdwg.mxu0
    %5452 = vmatprep.subr.bf16.mxu0 0
    %5453 = vmatpush1.bf16.msra.mxu0 %v5015
    %5454 = vmatprep.subr.bf16.mxu0 0
    %5455 = vmatpush1.bf16.msra.mxu0 %v5012
    %5456 = vmatprep.subr.bf16.mxu0 0
    %5457 = vmatpush1.bf16.msra.mxu0 %v5009
    %5458 = vmatprep.subr.bf16.mxu0 0
    %5459 = vmatpush1.bf16.msra.mxu0 %v5006
    %5460 = vmatprep.subr.bf16.mxu0 0
    %5461 = vmatpush1.bf16.msra.mxu0 %v5003
    %5462 = vmatprep.subr.bf16.mxu0 0
    %5463 = vmatpush1.bf16.msra.mxu0 %v5000
    %5464 = vmatprep.subr.bf16.mxu0 0
    %5465 = vmatpush1.bf16.msra.mxu0 %v4997
    %5466 = vmatprep.subr.bf16.mxu0 0
    %5467 = vmatpush1.bf16.msra.mxu0 %v4994
    %5468 = vmatprep.subr.bf16.mxu0 0
    %5469 = vmatpush2.bf16.msra.mxu0 %v5039
    %5470 = vmatprep.subr.bf16.mxu0 0
    %5471 = vmatpush2.bf16.msra.mxu0 %v5036
    %5472 = vmatprep.subr.bf16.mxu0 0
    %5473 = vmatpush2.bf16.msra.mxu0 %v5033
    %5474 = vmatprep.subr.bf16.mxu0 0
    %5475 = vmatpush2.bf16.msra.mxu0 %v5030
    %5476 = vmatprep.subr.bf16.mxu0 0
    %5477 = vmatpush2.bf16.msra.mxu0 %v5027
    %5478 = vmatprep.subr.bf16.mxu0 0
    %5479 = vmatpush2.bf16.msra.mxu0 %v5024
    %5480 = vmatprep.subr.bf16.mxu0 0
    %5481 = vmatpush2.bf16.msra.mxu0 %v5021
    %5482 = vmatprep.subr.bf16.mxu0 0
    %5483 = vmatpush2.bf16.msra.mxu0 %v5018
    %5484 = vmatprep.mubr.bf16.mxu0 %v4223
    %5485 = vmatmul.mubr.bf16.gmra.mxu0 %v4222
    %v5486 = vpop.f32.mrf.mxu0
    %v5487 = vadd.f32 %v5447, %v5486
    %v5488 = vpop.f32.mrf.mxu0
    %v5489 = vpop.f32.mrf.mxu0
    %v5490 = vpop.f32.mrf.mxu0
    %5491 = vdwg.mxu0
    %5492 = vmatprep.subr.bf16.mxu0 0
    %5493 = vmatpush1.bf16.msra.mxu0 %v5063
    %5494 = vmatprep.subr.bf16.mxu0 0
    %5495 = vmatpush1.bf16.msra.mxu0 %v5060
    %5496 = vmatprep.subr.bf16.mxu0 0
    %5497 = vmatpush1.bf16.msra.mxu0 %v5057
    %5498 = vmatprep.subr.bf16.mxu0 0
    %5499 = vmatpush1.bf16.msra.mxu0 %v5054
    %5500 = vmatprep.subr.bf16.mxu0 0
    %5501 = vmatpush1.bf16.msra.mxu0 %v5051
    %5502 = vmatprep.subr.bf16.mxu0 0
    %5503 = vmatpush1.bf16.msra.mxu0 %v5048
    %5504 = vmatprep.subr.bf16.mxu0 0
    %5505 = vmatpush1.bf16.msra.mxu0 %v5045
    %5506 = vmatprep.subr.bf16.mxu0 0
    %5507 = vmatpush1.bf16.msra.mxu0 %v5042
    %5508 = vmatprep.subr.bf16.mxu0 0
    %5509 = vmatpush2.bf16.msra.mxu0 %v5087
    %5510 = vmatprep.subr.bf16.mxu0 0
    %5511 = vmatpush2.bf16.msra.mxu0 %v5084
    %5512 = vmatprep.subr.bf16.mxu0 0
    %5513 = vmatpush2.bf16.msra.mxu0 %v5081
    %5514 = vmatprep.subr.bf16.mxu0 0
    %5515 = vmatpush2.bf16.msra.mxu0 %v5078
    %5516 = vmatprep.subr.bf16.mxu0 0
    %5517 = vmatpush2.bf16.msra.mxu0 %v5075
    %5518 = vmatprep.subr.bf16.mxu0 0
    %5519 = vmatpush2.bf16.msra.mxu0 %v5072
    %5520 = vmatprep.subr.bf16.mxu0 0
    %5521 = vmatpush2.bf16.msra.mxu0 %v5069
    %5522 = vmatprep.subr.bf16.mxu0 0
    %5523 = vmatpush2.bf16.msra.mxu0 %v5066
    %5524 = vmatprep.mubr.bf16.mxu0 %v4225
    %5525 = vmatmul.mubr.bf16.gmra.mxu0 %v4224
    %v5526 = vpop.f32.mrf.mxu0
    %v5527 = vadd.f32 %v5487, %v5526
    %v5528 = vpop.f32.mrf.mxu0
    %v5529 = vpop.f32.mrf.mxu0
    %v5530 = vpop.f32.mrf.mxu0
    %5531 = vdwg.mxu0
    %5532 = vmatprep.subr.bf16.mxu0 0
    %5533 = vmatpush1.bf16.msra.mxu0 0
    %5534 = vmatprep.subr.bf16.mxu0 0
    %5535 = vmatpush1.bf16.msra.mxu0 0
    %5536 = vmatprep.subr.bf16.mxu0 0
    %5537 = vmatpush1.bf16.msra.mxu0 0
    %5538 = vmatprep.subr.bf16.mxu0 0
    %5539 = vmatpush1.bf16.msra.mxu0 0
    %5540 = vmatprep.subr.bf16.mxu0 0
    %5541 = vmatpush1.bf16.msra.mxu0 0
    %5542 = vmatprep.subr.bf16.mxu0 0
    %5543 = vmatpush1.bf16.msra.mxu0 0
    %5544 = vmatprep.subr.bf16.mxu0 0
    %5545 = vmatpush1.bf16.msra.mxu0 %v5093
    %5546 = vmatprep.subr.bf16.mxu0 0
    %5547 = vmatpush1.bf16.msra.mxu0 %v5090
    %5548 = vmatprep.subr.bf16.mxu0 0
    %5549 = vmatpush2.bf16.msra.mxu0 0
    %5550 = vmatprep.subr.bf16.mxu0 0
    %5551 = vmatpush2.bf16.msra.mxu0 0
    %5552 = vmatprep.subr.bf16.mxu0 0
    %5553 = vmatpush2.bf16.msra.mxu0 0
    %5554 = vmatprep.subr.bf16.mxu0 0
    %5555 = vmatpush2.bf16.msra.mxu0 0
    %5556 = vmatprep.subr.bf16.mxu0 0
    %5557 = vmatpush2.bf16.msra.mxu0 0
    %5558 = vmatprep.subr.bf16.mxu0 0
    %5559 = vmatpush2.bf16.msra.mxu0 0
    %5560 = vmatprep.subr.bf16.mxu0 0
    %5561 = vmatpush2.bf16.msra.mxu0 0
    %5562 = vmatprep.subr.bf16.mxu0 0
    %5563 = vmatpush2.bf16.msra.mxu0 0
    %5564 = vmatprep.mubr.bf16.mxu0 0
    %5565 = vmatmul.mubr.bf16.gmra.mxu0 %v5246
    %v5566 = vpop.f32.mrf.mxu0
    %v5567 = vadd.f32 %v5527, %v5566
    %v5568 = vpop.f32.mrf.mxu0
    %v5569 = vpop.f32.mrf.mxu0
    %v5570 = vpop.f32.mrf.mxu0
    %5571 = vdwg.mxu0
    %v5572 = vmax.f32 %v5406, 0.0
    %v5573 = vmax.f32 %v5408, 0.0
    %v5574 = vmax.f32 %v5567, 0.0
    %v5575 = vpack.c.bf16 %v5572, %v5572
    %v5576 = vpack.c.bf16 %v5573, %v5573
    %v5577 = vpack.c.bf16 %v5574, %v5574
    %v5578 = vld [vmem:[%s5] sm:$0xff]
    %v5579 = vld [vmem:[%s5 + $0x8] sm:$0xff]
    %v5580 = vld [vmem:[%s5 + $0x10] sm:$0xff]
    %v5581 = vld [vmem:[%s5 + $0x18] sm:$0xff]
    %v5582 = vld [vmem:[%s5 + $0x20] sm:$0xff]
    %v5583 = vld [vmem:[%s5 + $0x28] sm:$0xff]
    %v5584 = vld [vmem:[%s5 + $0x30] sm:$0xff]
    %v5585 = vld [vmem:[%s5 + $0x38] sm:$0xff]
    %v5586 = vld [vmem:[%s5 + $0x40] sm:$0xff]
    %v5587 = vld [vmem:[%s5 + $0x48] sm:$0xff]
    %v5588 = vld [vmem:[%s5 + $0x50] sm:$0xff]
    %v5589 = vld [vmem:[%s5 + $0x58] sm:$0xff]
    %v5590 = vld [vmem:[%s5 + $0x60] sm:$0xff]
    %v5591 = vld [vmem:[%s5 + $0x68] sm:$0xff]
    %v5592 = vld [vmem:[%s5 + $0x70] sm:$0xff]
    %v5593 = vld [vmem:[%s5 + $0x78] sm:$0xff]
    %v5594 = vld [vmem:[%s5 + $0x80] sm:$0xff]
    %v5595 = vld [vmem:[%s5 + $0x88] sm:$0xff]
    %v5596 = vld [vmem:[%s5 + $0x90] sm:$0xff]
    %v5597 = vld [vmem:[%s5 + $0x98] sm:$0xff]
    %v5598 = vld [vmem:[%s5 + $0xa0] sm:$0xff]
    %v5599 = vld [vmem:[%s5 + $0xa8] sm:$0xff]
    %v5600 = vld [vmem:[%s5 + $0xb0] sm:$0xff]
    %v5601 = vld [vmem:[%s5 + $0xb8] sm:$0xff]
    %v5602 = vld [vmem:[%s5 + $0xc0] sm:$0xff]
    %v5603 = vld [vmem:[%s5 + $0xc8] sm:$0xff]
    %v5604 = vld [vmem:[%s5 + $0xd0] sm:$0xff]
    %v5605 = vld [vmem:[%s5 + $0xd8] sm:$0xff]
    %v5606 = vld [vmem:[%s5 + $0xe0] sm:$0xff]
    %v5607 = vld [vmem:[%s5 + $0xe8] sm:$0xff]
    %v5608 = vld [vmem:[%s5 + $0xf0] sm:$0xff]
    %v5609 = vld [vmem:[%s5 + $0xf8] sm:$0xff]
    %v5610 = vld [vmem:[%s5 + $0x100] sm:$0xff]
    %v5611 = vld [vmem:[%s5 + $0x108] sm:$0xff]
    %v5612 = vld [vmem:[%s5 + $0x110] sm:$0xff]
    %v5613 = vld [vmem:[%s5 + $0x118] sm:$0xff]
    %v5614 = vld [vmem:[%s5 + $0x120] sm:$0xff]
    %v5615 = vld [vmem:[%s5 + $0x128] sm:$0xff]
    %v5616 = vld [vmem:[%s5 + $0x130] sm:$0xff]
    %v5617 = vld [vmem:[%s5 + $0x138] sm:$0xff]
    %v5618 = vld [vmem:[%s6] sm:$0x3]
    %v5620 = vlaneseq
    %v5621 = vshrl.u32 %v5620, 7
    %v5622 = vsub.s32 0, %v5621
    %v5623 = vrot.slane %v5618, %v5622
    %v5624 = vlaneseq
    %v5625 = vshrl.u32 %v5624, 7
    %v5626 = vsub.s32 1, %v5625
    %v5627 = vrot.slane %v5618, %v5626
    %v5670 = vunpack.c.l.b16 %v5578
    %v5671 = vunpack.c.h.b16 %v5578
    %v5672 = vunpack.c.l.b16 %v5579
    %v5673 = vunpack.c.h.b16 %v5579
    %v5674 = vunpack.c.l.b16 %v5580
    %v5675 = vunpack.c.h.b16 %v5580
    %v5676 = vunpack.c.l.b16 %v5581
    %v5677 = vunpack.c.h.b16 %v5581
    %v5678 = vunpack.c.l.b16 %v5582
    %v5679 = vunpack.c.h.b16 %v5582
    %v5680 = vunpack.c.l.b16 %v5583
    %v5681 = vunpack.c.h.b16 %v5583
    %v5682 = vunpack.c.l.b16 %v5584
    %v5683 = vunpack.c.h.b16 %v5584
    %v5684 = vunpack.c.l.b16 %v5585
    %v5685 = vunpack.c.h.b16 %v5585
    %v5686 = vunpack.c.l.b16 %v5586
    %v5687 = vunpack.c.h.b16 %v5586
    %v5688 = vunpack.c.l.b16 %v5587
    %v5689 = vunpack.c.h.b16 %v5587
    %v5690 = vunpack.c.l.b16 %v5588
    %v5691 = vunpack.c.h.b16 %v5588
    %v5692 = vunpack.c.l.b16 %v5589
    %v5693 = vunpack.c.h.b16 %v5589
    %v5694 = vunpack.c.l.b16 %v5590
    %v5695 = vunpack.c.h.b16 %v5590
    %v5696 = vunpack.c.l.b16 %v5591
    %v5697 = vunpack.c.h.b16 %v5591
    %v5698 = vunpack.c.l.b16 %v5592
    %v5699 = vunpack.c.h.b16 %v5592
    %v5700 = vunpack.c.l.b16 %v5593
    %v5701 = vunpack.c.h.b16 %v5593
    %v5702 = vunpack.c.l.b16 %v5594
    %v5703 = vunpack.c.h.b16 %v5594
    %v5704 = vunpack.c.l.b16 %v5595
    %v5705 = vunpack.c.h.b16 %v5595
    %v5706 = vunpack.c.l.b16 %v5596
    %v5707 = vunpack.c.h.b16 %v5596
    %v5708 = vunpack.c.l.b16 %v5597
    %v5709 = vunpack.c.h.b16 %v5597
    %v5710 = vunpack.c.l.b16 %v5598
    %v5711 = vunpack.c.h.b16 %v5598
    %v5712 = vunpack.c.l.b16 %v5599
    %v5713 = vunpack.c.h.b16 %v5599
    %v5714 = vunpack.c.l.b16 %v5600
    %v5715 = vunpack.c.h.b16 %v5600
    %v5716 = vunpack.c.l.b16 %v5601
    %v5717 = vunpack.c.h.b16 %v5601
    %v5718 = vunpack.c.l.b16 %v5602
    %v5719 = vunpack.c.h.b16 %v5602
    %v5720 = vunpack.c.l.b16 %v5603
    %v5721 = vunpack.c.h.b16 %v5603
    %v5722 = vunpack.c.l.b16 %v5604
    %v5723 = vunpack.c.h.b16 %v5604
    %v5724 = vunpack.c.l.b16 %v5605
    %v5725 = vunpack.c.h.b16 %v5605
    %v5726 = vunpack.c.l.b16 %v5606
    %v5727 = vunpack.c.h.b16 %v5606
    %v5728 = vunpack.c.l.b16 %v5607
    %v5729 = vunpack.c.h.b16 %v5607
    %v5730 = vunpack.c.l.b16 %v5608
    %v5731 = vunpack.c.h.b16 %v5608
    %v5732 = vunpack.c.l.b16 %v5609
    %v5733 = vunpack.c.h.b16 %v5609
    %v5734 = vunpack.c.l.b16 %v5610
    %v5735 = vunpack.c.h.b16 %v5610
    %v5736 = vunpack.c.l.b16 %v5611
    %v5737 = vunpack.c.h.b16 %v5611
    %v5738 = vunpack.c.l.b16 %v5612
    %v5739 = vunpack.c.h.b16 %v5612
    %v5740 = vunpack.c.l.b16 %v5613
    %v5741 = vunpack.c.h.b16 %v5613
    %v5742 = vunpack.c.l.b16 %v5614
    %v5743 = vunpack.c.h.b16 %v5614
    %v5744 = vunpack.c.l.b16 %v5615
    %v5745 = vunpack.c.h.b16 %v5615
    %v5746 = vunpack.c.l.b16 %v5616
    %v5747 = vunpack.c.h.b16 %v5616
    %v5748 = vunpack.c.l.b16 %v5617
    %v5749 = vunpack.c.h.b16 %v5617
    %v5750 = vpack.c.b16 %v5672, %v5670
    %v5751 = vpack.c.b16 %v5673, %v5671
    %v5752 = vpack.c.b16 %v5676, %v5674
    %v5753 = vpack.c.b16 %v5677, %v5675
    %v5754 = vpack.c.b16 %v5680, %v5678
    %v5755 = vpack.c.b16 %v5681, %v5679
    %v5756 = vpack.c.b16 %v5684, %v5682
    %v5757 = vpack.c.b16 %v5685, %v5683
    %v5758 = vpack.c.b16 %v5688, %v5686
    %v5759 = vpack.c.b16 %v5689, %v5687
    %v5760 = vpack.c.b16 %v5692, %v5690
    %v5761 = vpack.c.b16 %v5693, %v5691
    %v5762 = vpack.c.b16 %v5696, %v5694
    %v5763 = vpack.c.b16 %v5697, %v5695
    %v5764 = vpack.c.b16 %v5700, %v5698
    %v5765 = vpack.c.b16 %v5701, %v5699
    %v5766 = vpack.c.b16 %v5704, %v5702
    %v5767 = vpack.c.b16 %v5705, %v5703
    %v5768 = vpack.c.b16 %v5708, %v5706
    %v5769 = vpack.c.b16 %v5709, %v5707
    %v5770 = vpack.c.b16 %v5712, %v5710
    %v5771 = vpack.c.b16 %v5713, %v5711
    %v5772 = vpack.c.b16 %v5716, %v5714
    %v5773 = vpack.c.b16 %v5717, %v5715
    %v5774 = vpack.c.b16 %v5720, %v5718
    %v5775 = vpack.c.b16 %v5721, %v5719
    %v5776 = vpack.c.b16 %v5724, %v5722
    %v5777 = vpack.c.b16 %v5725, %v5723
    %v5778 = vpack.c.b16 %v5728, %v5726
    %v5779 = vpack.c.b16 %v5729, %v5727
    %v5780 = vpack.c.b16 %v5732, %v5730
    %v5781 = vpack.c.b16 %v5733, %v5731
    %v5782 = vpack.c.b16 %v5736, %v5734
    %v5783 = vpack.c.b16 %v5737, %v5735
    %v5784 = vpack.c.b16 %v5740, %v5738
    %v5785 = vpack.c.b16 %v5741, %v5739
    %v5786 = vpack.c.b16 %v5744, %v5742
    %v5787 = vpack.c.b16 %v5745, %v5743
    %v5788 = vpack.c.b16 %v5748, %v5746
    %v5789 = vpack.c.b16 %v5749, %v5747
    %vm5830 = vcmask 523264
    %v5832 = vsel %vm5830, %v5577, 0
    %5834 = vmatprep.subr.bf16.mxu0 %v5765
    %5835 = vmatpush1.bf16.msra.mxu0 %v5764
    %5836 = vmatprep.subr.bf16.mxu0 %v5763
    %5837 = vmatpush1.bf16.msra.mxu0 %v5762
    %5838 = vmatprep.subr.bf16.mxu0 %v5761
    %5839 = vmatpush1.bf16.msra.mxu0 %v5760
    %5840 = vmatprep.subr.bf16.mxu0 %v5759
    %5841 = vmatpush1.bf16.msra.mxu0 %v5758
    %5842 = vmatprep.subr.bf16.mxu0 %v5757
    %5843 = vmatpush1.bf16.msra.mxu0 %v5756
    %5844 = vmatprep.subr.bf16.mxu0 %v5755
    %5845 = vmatpush1.bf16.msra.mxu0 %v5754
    %5846 = vmatprep.subr.bf16.mxu0 %v5753
    %5847 = vmatpush1.bf16.msra.mxu0 %v5752
    %5848 = vmatprep.subr.bf16.mxu0 %v5751
    %5849 = vmatpush1.bf16.msra.mxu0 %v5750
    %5850 = vmatprep.subr.bf16.mxu0 %v5781
    %5851 = vmatpush2.bf16.msra.mxu0 %v5780
    %5852 = vmatprep.subr.bf16.mxu0 %v5779
    %5853 = vmatpush2.bf16.msra.mxu0 %v5778
    %5854 = vmatprep.subr.bf16.mxu0 %v5777
    %5855 = vmatpush2.bf16.msra.mxu0 %v5776
    %5856 = vmatprep.subr.bf16.mxu0 %v5775
    %5857 = vmatpush2.bf16.msra.mxu0 %v5774
    %5858 = vmatprep.subr.bf16.mxu0 %v5773
    %5859 = vmatpush2.bf16.msra.mxu0 %v5772
    %5860 = vmatprep.subr.bf16.mxu0 %v5771
    %5861 = vmatpush2.bf16.msra.mxu0 %v5770
    %5862 = vmatprep.subr.bf16.mxu0 %v5769
    %5863 = vmatpush2.bf16.msra.mxu0 %v5768
    %5864 = vmatprep.subr.bf16.mxu0 %v5767
    %5865 = vmatpush2.bf16.msra.mxu0 %v5766
    %5866 = vmatprep.mubr.bf16.mxu0 %v5576
    %5867 = vmatmul.mubr.bf16.gmra.mxu0 %v5575
    %v5868 = vpop.f32.mrf.mxu0
    %v5869 = vadd.f32 %v5623, %v5868
    %v5870 = vpop.f32.mrf.mxu0
    %v5871 = vadd.f32 %v5627, %v5870
    %v5872 = vpop.f32.mrf.mxu0
    %v5873 = vpop.f32.mrf.mxu0
    %5874 = vdwg.mxu0
    %5875 = vmatprep.subr.bf16.mxu0 0
    %5876 = vmatpush1.bf16.msra.mxu0 0
    %5877 = vmatprep.subr.bf16.mxu0 0
    %5878 = vmatpush1.bf16.msra.mxu0 0
    %5879 = vmatprep.subr.bf16.mxu0 0
    %5880 = vmatpush1.bf16.msra.mxu0 0
    %5881 = vmatprep.subr.bf16.mxu0 0
    %5882 = vmatpush1.bf16.msra.mxu0 0
    %5883 = vmatprep.subr.bf16.mxu0 %v5789
    %5884 = vmatpush1.bf16.msra.mxu0 %v5788
    %5885 = vmatprep.subr.bf16.mxu0 %v5787
    %5886 = vmatpush1.bf16.msra.mxu0 %v5786
    %5887 = vmatprep.subr.bf16.mxu0 %v5785
    %5888 = vmatpush1.bf16.msra.mxu0 %v5784
    %5889 = vmatprep.subr.bf16.mxu0 %v5783
    %5890 = vmatpush1.bf16.msra.mxu0 %v5782
    %5891 = vmatprep.subr.bf16.mxu0 0
    %5892 = vmatpush2.bf16.msra.mxu0 0
    %5893 = vmatprep.subr.bf16.mxu0 0
    %5894 = vmatpush2.bf16.msra.mxu0 0
    %5895 = vmatprep.subr.bf16.mxu0 0
    %5896 = vmatpush2.bf16.msra.mxu0 0
    %5897 = vmatprep.subr.bf16.mxu0 0
    %5898 = vmatpush2.bf16.msra.mxu0 0
    %5899 = vmatprep.subr.bf16.mxu0 0
    %5900 = vmatpush2.bf16.msra.mxu0 0
    %5901 = vmatprep.subr.bf16.mxu0 0
    %5902 = vmatpush2.bf16.msra.mxu0 0
    %5903 = vmatprep.subr.bf16.mxu0 0
    %5904 = vmatpush2.bf16.msra.mxu0 0
    %5905 = vmatprep.subr.bf16.mxu0 0
    %5906 = vmatpush2.bf16.msra.mxu0 0
    %5907 = vmatprep.mubr.bf16.mxu0 0
    %5908 = vmatmul.mubr.bf16.gmra.mxu0 %v5832
    %v5909 = vpop.f32.mrf.mxu0
    %v5910 = vadd.f32 %v5869, %v5909
    %v5911 = vpop.f32.mrf.mxu0
    %v5912 = vadd.f32 %v5871, %v5911
    %v5913 = vpop.f32.mrf.mxu0
    %v5914 = vpop.f32.mrf.mxu0
    %5915 = vdwg.mxu0
    %v5916 = vmax.f32 %v5910, 0.0
    %v5917 = vmax.f32 %v5912, 0.0
    %v5918 = vpack.c.bf16 %v5916, %v5916
    %v5919 = vpack.c.bf16 %v5917, %v5917
    %v5920 = vld [vmem:[%s7] sm:$0xf]
    %v5921 = vld [vmem:[%s7 + $0x4] sm:$0xf]
    %v5922 = vld [vmem:[%s7 + $0x8] sm:$0xf]
    %v5923 = vld [vmem:[%s7 + $0xc] sm:$0xf]
    %v5924 = vld [vmem:[%s7 + $0x10] sm:$0xf]
    %v5925 = vld [vmem:[%s7 + $0x14] sm:$0xf]
    %v5926 = vld [vmem:[%s7 + $0x18] sm:$0xf]
    %v5927 = vld [vmem:[%s7 + $0x1c] sm:$0xf]
    %v5928 = vld [vmem:[%s7 + $0x20] sm:$0xf]
    %v5929 = vld [vmem:[%s7 + $0x24] sm:$0xf]
    %v5930 = vld [vmem:[%s7 + $0x28] sm:$0xf]
    %v5931 = vld [vmem:[%s7 + $0x2c] sm:$0xf]
    %v5932 = vld [vmem:[%s7 + $0x30] sm:$0xf]
    %v5933 = vld [vmem:[%s7 + $0x34] sm:$0xf]
    %v5934 = vld [vmem:[%s7 + $0x38] sm:$0xf]
    %v5935 = vld [vmem:[%s7 + $0x3c] sm:$0xf]
    %v5936 = vld [vmem:[%s7 + $0x40] sm:$0xf]
    %v5937 = vld [vmem:[%s7 + $0x44] sm:$0xf]
    %v5938 = vld [vmem:[%s7 + $0x48] sm:$0xf]
    %v5939 = vld [vmem:[%s7 + $0x4c] sm:$0xf]
    %v5940 = vld [vmem:[%s8] sm:$0x1]
    %v5942 = vlaneseq
    %v5943 = vshrl.u32 %v5942, 7
    %v5944 = vsub.s32 0, %v5943
    %v5945 = vrot.slane %v5940, %v5944
    %v5967 = vunpack.c.l.b16 %v5920
    %v5968 = vunpack.c.l.b16 %v5921
    %v5969 = vunpack.c.l.b16 %v5922
    %v5970 = vunpack.c.l.b16 %v5923
    %v5971 = vunpack.c.l.b16 %v5924
    %v5972 = vunpack.c.l.b16 %v5925
    %v5973 = vunpack.c.l.b16 %v5926
    %v5974 = vunpack.c.l.b16 %v5927
    %v5975 = vunpack.c.l.b16 %v5928
    %v5976 = vunpack.c.l.b16 %v5929
    %v5977 = vunpack.c.l.b16 %v5930
    %v5978 = vunpack.c.l.b16 %v5931
    %v5979 = vunpack.c.l.b16 %v5932
    %v5980 = vunpack.c.l.b16 %v5933
    %v5981 = vunpack.c.l.b16 %v5934
    %v5982 = vunpack.c.l.b16 %v5935
    %v5983 = vunpack.c.l.b16 %v5936
    %v5984 = vunpack.c.l.b16 %v5937
    %v5985 = vunpack.c.l.b16 %v5938
    %v5986 = vunpack.c.l.b16 %v5939
    %v5987 = vpack.c.b16 %v5968, %v5967
    %v5988 = vpack.c.b16 %v5970, %v5969
    %v5989 = vpack.c.b16 %v5972, %v5971
    %v5990 = vpack.c.b16 %v5974, %v5973
    %v5991 = vpack.c.b16 %v5976, %v5975
    %v5992 = vpack.c.b16 %v5978, %v5977
    %v5993 = vpack.c.b16 %v5980, %v5979
    %v5994 = vpack.c.b16 %v5982, %v5981
    %v5995 = vpack.c.b16 %v5984, %v5983
    %v5996 = vpack.c.b16 %v5986, %v5985
    %v6008 = vsel %vm5244, %v5919, 0
    %6010 = vmatprep.subr.bf16.mxu0 0
    %6011 = vmatpush1.bf16.msra.mxu0 %v5994
    %6012 = vmatprep.subr.bf16.mxu0 0
    %6013 = vmatpush1.bf16.msra.mxu0 %v5993
    %6014 = vmatprep.subr.bf16.mxu0 0
    %6015 = vmatpush1.bf16.msra.mxu0 %v5992
    %6016 = vmatprep.subr.bf16.mxu0 0
    %6017 = vmatpush1.bf16.msra.mxu0 %v5991
    %6018 = vmatprep.subr.bf16.mxu0 0
    %6019 = vmatpush1.bf16.msra.mxu0 %v5990
    %6020 = vmatprep.subr.bf16.mxu0 0
    %6021 = vmatpush1.bf16.msra.mxu0 %v5989
    %6022 = vmatprep.subr.bf16.mxu0 0
    %6023 = vmatpush1.bf16.msra.mxu0 %v5988
    %6024 = vmatprep.subr.bf16.mxu0 0
    %6025 = vmatpush1.bf16.msra.mxu0 %v5987
    %6026 = vmatprep.subr.bf16.mxu0 0
    %6027 = vmatpush2.bf16.msra.mxu0 0
    %6028 = vmatprep.subr.bf16.mxu0 0
    %6029 = vmatpush2.bf16.msra.mxu0 0
    %6030 = vmatprep.subr.bf16.mxu0 0
    %6031 = vmatpush2.bf16.msra.mxu0 0
    %6032 = vmatprep.subr.bf16.mxu0 0
    %6033 = vmatpush2.bf16.msra.mxu0 0
    %6034 = vmatprep.subr.bf16.mxu0 0
    %6035 = vmatpush2.bf16.msra.mxu0 0
    %6036 = vmatprep.subr.bf16.mxu0 0
    %6037 = vmatpush2.bf16.msra.mxu0 0
    %6038 = vmatprep.subr.bf16.mxu0 0
    %6039 = vmatpush2.bf16.msra.mxu0 %v5996
    %6040 = vmatprep.subr.bf16.mxu0 0
    %6041 = vmatpush2.bf16.msra.mxu0 %v5995
    %6042 = vmatprep.mubr.bf16.mxu0 %v6008
    %6043 = vmatmul.mubr.bf16.gmra.mxu0 %v5918
    %v6044 = vpop.f32.mrf.mxu0
    %v6045 = vadd.f32 %v5945, %v6044
    %v6046 = vpop.f32.mrf.mxu0
    %v6047 = vpop.f32.mrf.mxu0
    %v6048 = vpop.f32.mrf.mxu0
    %6049 = vdwg.mxu0
    %v6050 = vtanh.pop %v6045
    %v6051 = vld [vmem:[%s9] sm:$0x1]
    %v6053 = vlaneseq
    %v6054 = vshrl.u32 %v6053, 7
    %v6055 = vsub.s32 0, %v6054
    %v6056 = vrot.slane %v6051, %v6055
    %v6058 = vmul.f32 %v6050, %v6056
    %6059 = vst [vmem:[#allocation2] sm:$0xff] %v6058
    // Predicated region
    $region42: #{tpu_custom_call.1} parent=1 // pred_check
      _
    $region43: #{tpu_custom_call.1} parent=1 // pred_check_branch
      %6061 = sbr.rel (0) target = $region45
    $region44: #{tpu_custom_call.1} parent=1 // pred_region
      %s6063 = ssub.s32 128, 128
      %6064 = vsyncadd [#allocation3], %s6063
      %s6066 = sshll.u32 [#allocation2], 4
      %s6067 = int_to_ptr.vmem [resolvable:$true] %s6066
      %6069 = dma.vmem_to_hbm [thread:$0]  %s6067, 128, %s10, [#allocation3]
    $region45: #{tpu_custom_call.1} parent=1 // pred_fallthru
      _
    // Predicated region
    $region46: #{tpu_custom_call.1} parent=1 // pred_check
      _
    $region47: #{tpu_custom_call.1} parent=1 // pred_check_branch
      %6071 = sbr.rel (0) target = $region49
    $region48: #{tpu_custom_call.1} parent=1 // pred_region
      %6072 = dma.done [#allocation3], 128
    $region49: #{tpu_custom_call.1} parent=1 // pred_fallthru
      _
    %6073 = vsyncpa [#allocation3], 1

</llo_original>
